<compile_context>
chip_gen: v7x
topology: tpu7x:2x2x1
jax: 0.10.0
libtpu: 0.0.40
codegen_flags: <defaults>
</compile_context>

<pallas_src>
import functools

import jax
import jax.numpy as jnp
from jax import lax
from jax.experimental import pallas as pl
from jax.experimental.pallas import tpu as pltpu


def head_kernel(qi_tab_ref, kv_tab_ref,            # scalar-prefetch tables (SMEM)
                x_ref, wq_ref, wk_ref, wv_ref,      # inputs (VMEM tiles)
                o_ref,                              # output tile
                q_sc, k_cache, v_cache, m_sc, l_sc, acc_sc,  # VMEM scratch
                *, compute_dtype):
    step = pl.program_id(1)
    qi = qi_tab_ref[step]
    kv = kv_tab_ref[step]

    tq = q_sc.shape[0]
    tk = k_cache.shape[1]
    C = x_ref.shape[-1]

    # PyTorch module scales by the *input's* last dim ** -0.5 (embedding_dim, per the
    # forward's shape unpacking), not the projected head size; reproduce that exactly.
    scale = jnp.float32(C) ** -0.5
    neg_big = jnp.float32(-1e30)  # large finite negative: avoids inf-inf NaN paths

    # ---- once per (batch, q row): project Q (scale folded in), reset softmax state ----
    @pl.when(kv == 0)
    def _init_row():
        xq = x_ref[0]                                                # (tq, C)
        q = jnp.dot(xq, wq_ref[...], preferred_element_type=jnp.float32)
        q_sc[...] = (q * scale).astype(compute_dtype)
        m_sc[...] = jnp.full_like(m_sc, neg_big)
        l_sc[...] = jnp.zeros_like(l_sc)
        acc_sc[...] = jnp.zeros_like(acc_sc)

    def qk_scores(k):
        # Contract over the head dim of both operands (NT form): MXU-native, no XLU
        # transpose per kv step.
        return lax.dot_general(q_sc[...], k, (((1,), (1,)), ((), ())),
                               preferred_element_type=jnp.float32)   # (tq, tk) f32

    def flash_update(s, v):
        m_prev = m_sc[...]
        m_new = jnp.maximum(m_prev, jnp.max(s, axis=-1, keepdims=True))
        alpha = jnp.exp(m_prev - m_new)
        p = jnp.exp(s - m_new)
        l_sc[...] = alpha * l_sc[...] + jnp.sum(p, axis=-1, keepdims=True)
        acc_sc[...] = alpha * acc_sc[...] + jnp.dot(
            p.astype(compute_dtype), v, preferred_element_type=jnp.float32)
        m_sc[...] = m_new

    # ---- strictly-below-diagonal tiles: fully unmasked, reuse cached K/V ----
    @pl.when(kv < qi)
    def _off_diag():
        flash_update(qk_scores(k_cache[kv]), v_cache[kv])

    # ---- diagonal tile (last step of the row): project + cache K/V, mask, finalize ----
    @pl.when(kv == qi)
    def _diag():
        xkv = x_ref[0]  # identical rows to the q tile (tq == tk and qi == kv)
        k = jnp.dot(xkv, wk_ref[...],
                    preferred_element_type=jnp.float32).astype(compute_dtype)
        v = jnp.dot(xkv, wv_ref[...],
                    preferred_element_type=jnp.float32).astype(compute_dtype)
        k_cache[qi] = k
        v_cache[qi] = v

        s = qk_scores(k)
        # tq == tk, so the in-tile lower-triangular compare equals the global causal mask.
        row = lax.broadcasted_iota(jnp.int32, (tq, tk), 0)
        col = lax.broadcasted_iota(jnp.int32, (tq, tk), 1)
        s = jnp.where(col <= row, s, neg_big)
        flash_update(s, v)

        # dropout on the attention weights is identity in eval mode.
        # Exact divide (not approx reciprocal): only tq elements, keeps reference parity.
        o_ref[0] = (acc_sc[...] / l_sc[...]).astype(o_ref.dtype)


def head_forward(x, wq, wk, wv, *, block=128, compute_dtype=jnp.bfloat16,
                 vmem_limit_bytes=32 * 1024 * 1024):
    """x: (B, T, C); wq/wk/wv: (C, H) pre-transposed nn.Linear weights (y = x @ W)."""
    B, T, C = x.shape
    H = wq.shape[1]

    # Lane-dense matmul N-dim / output store: pad H up to a multiple of 128.  The zero
    # columns are inert (contribute 0 to q.k, produce 0 output columns) and are sliced
    # off below.
    Hp = max(128, ((H + 127) // 128) * 128)
    if Hp != H:
        pad = ((0, 0), (0, Hp - H))
        wq = jnp.pad(wq, pad)
        wk = jnp.pad(wk, pad)
        wv = jnp.pad(wv, pad)

    t = min(block, T)
    if T % t != 0:
        raise ValueError(f"seq_len {T} must be a multiple of the tile size {t}")
    nt = T // t

    # Flattened lower-triangular enumeration: for each q row, kv = 0..qi with the
    # diagonal last, so cached K/V tiles are always filled before they are reused and
    # the output row is finalized on its last step.
    steps_q, steps_k = [], []
    for qi in range(nt):
        for kv in range(qi + 1):
            steps_q.append(qi)
            steps_k.append(kv)
    qi_tab = jnp.asarray(steps_q, dtype=jnp.int32)
    kv_tab = jnp.asarray(steps_k, dtype=jnp.int32)
    n_steps = len(steps_q)

    kernel = functools.partial(head_kernel, compute_dtype=compute_dtype)

    out = pl.pallas_call(
        kernel,
        out_shape=jax.ShapeDtypeStruct((B, T, Hp), x.dtype),
        grid_spec=pltpu.PrefetchScalarGridSpec(
            num_scalar_prefetch=2,
            grid=(B, n_steps),
            in_specs=[
                # Single x input: rows for both the Q projection of this row and (on the
                # diagonal step) the K/V projection -- constant within a row, so one DMA
                # per (batch, q row).
                pl.BlockSpec((1, t, C), lambda b, s, qt, kt: (b, qt[s], 0)),
                # Constant-index weight tiles.  (pipeline_mode=pl.Buffered(1) would drop
                # their second buffer; irrelevant at C=64, useful for very large C.)
                pl.BlockSpec((C, Hp), lambda b, s, qt, kt: (0, 0)),
                pl.BlockSpec((C, Hp), lambda b, s, qt, kt: (0, 0)),
                pl.BlockSpec((C, Hp), lambda b, s, qt, kt: (0, 0)),
            ],
            out_specs=pl.BlockSpec((1, t, Hp), lambda b, s, qt, kt: (b, qt[s], 0)),
            scratch_shapes=[
                pltpu.VMEM((t, Hp), compute_dtype),       # pre-scaled Q tile
                pltpu.VMEM((nt, t, Hp), compute_dtype),   # cached K projections (per batch)
                pltpu.VMEM((nt, t, Hp), compute_dtype),   # cached V projections (per batch)
                pltpu.VMEM((t, 1), jnp.float32),          # running max  m
                pltpu.VMEM((t, 1), jnp.float32),          # running sum  l
                pltpu.VMEM((t, Hp), jnp.float32),         # running acc
            ],
        ),
        compiler_params=pltpu.CompilerParams(
            # batch is parallel (megacore-shardable); the step axis must stay sequential
            # because K/V tiles are cached at their diagonal step and reused by later rows.
            dimension_semantics=("parallel", "arbitrary"),
            vmem_limit_bytes=vmem_limit_bytes,
        ),
    )(qi_tab, kv_tab, x, wq, wk, wv)
    return out[..., :H]


def reference_forward(x, wq, wk, wv):
    """Pure-JAX reference matching the PyTorch forward (eval mode), in f32."""
    B, T, C = x.shape
    q = x @ wq
    k = x @ wk
    v = x @ wv
    att = (q @ jnp.swapaxes(k, -2, -1)) * (C ** -0.5)
    mask = jnp.tril(jnp.ones((T, T), dtype=bool))
    att = jnp.where(mask, att, -jnp.inf)
    att = jax.nn.softmax(att, axis=-1)
    return att @ v


def _run_case(key, B, T, C, H, block):
    kx, kq, kk, kv = jax.random.split(key, 4)
    x = jax.random.normal(kx, (B, T, C), dtype=jnp.float32)
    bound = 1.0 / (C ** 0.5)
    wq = jax.random.uniform(kq, (C, H), jnp.float32, -bound, bound)
    wk = jax.random.uniform(kk, (C, H), jnp.float32, -bound, bound)
    wv = jax.random.uniform(kv, (C, H), jnp.float32, -bound, bound)

    ref = reference_forward(x, wq, wk, wv)

    # f32 compute path: exact divide + f32 MXU -> tight tolerance vs the reference.
    out_f32 = jax.block_until_ready(
        head_forward(x, wq, wk, wv, block=block, compute_dtype=jnp.float32))
    assert out_f32.shape == (B, T, H)
    err = float(jnp.max(jnp.abs(out_f32 - ref)))
    assert jnp.allclose(out_f32, ref, atol=1e-4, rtol=1e-4), f"f32 max abs err {err}"

    # bf16 MXU path (production default): looser tolerance vs the f32 reference.
    out_bf16 = jax.block_until_ready(
        head_forward(x, wq, wk, wv, block=block, compute_dtype=jnp.bfloat16))
    assert out_bf16.shape == (B, T, H)
    err = float(jnp.max(jnp.abs(out_bf16 - ref)))
    assert jnp.allclose(out_bf16, ref, atol=5e-2, rtol=5e-2), f"bf16 max abs err {err}"


if __name__ == "__main__":
    key = jax.random.PRNGKey(0)
    k1, k2 = jax.random.split(key)
    # Tiled case: batch=2, seq=256 (2-row causal tile grid -> 3 triangular steps),
    # embedding_dim=64 (module default), head_size=16 -- exercises the triangular grid,
    # causal skip and the K/V cache reuse.
    _run_case(k1, B=2, T=256, C=64, H=16, block=128)
    # Tiny single-tile case with small shapes (seq=8, hidden=32).
    _run_case(k2, B=2, T=8, C=32, H=16, block=128)
    print("KERNEL_OK")
</pallas_src>

<mosaic_0001>
module attributes {stable_mosaic.version = 11 : i64} {
  func.func @head_kernel(%arg0: i32, %arg1: i32, %arg2: memref<3xi32, #tpu.memory_space<smem>>, %arg3: memref<3xi32, #tpu.memory_space<smem>>, %arg4: memref<1x128x64xf32, #tpu.memory_space<vmem>>, %arg5: memref<64x128xf32, #tpu.memory_space<vmem>>, %arg6: memref<64x128xf32, #tpu.memory_space<vmem>>, %arg7: memref<64x128xf32, #tpu.memory_space<vmem>>, %arg8: memref<1x128x128xf32, #tpu.memory_space<vmem>>, %arg9: memref<128x128xf32, #tpu.memory_space<vmem>>, %arg10: memref<2x128x128xf32, #tpu.memory_space<vmem>>, %arg11: memref<2x128x128xf32, #tpu.memory_space<vmem>>, %arg12: memref<128x1xf32, #tpu.memory_space<vmem>>, %arg13: memref<128x1xf32, #tpu.memory_space<vmem>>, %arg14: memref<128x128xf32, #tpu.memory_space<vmem>>) attributes {dimension_semantics = [#tpu.dimension_semantics<parallel>, #tpu.dimension_semantics<arbitrary>], iteration_bounds = array<i64: 2, 3>, scalar_prefetch = 2 : i64, scratch_operands = 6 : i64, tpu.core_type = #tpu.core_type<tc>, window_params = [{transform_indices = @transform_0, window_bounds = array<i64: 1, 128, 64>}, {pipeline_mode = #tpu.pipeline_mode<synchronous>, transform_indices = @transform_1, window_bounds = array<i64: 64, 128>}, {pipeline_mode = #tpu.pipeline_mode<synchronous>, transform_indices = @transform_2, window_bounds = array<i64: 64, 128>}, {pipeline_mode = #tpu.pipeline_mode<synchronous>, transform_indices = @transform_3, window_bounds = array<i64: 64, 128>}, {transform_indices = @transform_4, window_bounds = array<i64: 1, 128, 128>}]} {
    %0 = arith.index_cast %arg1 : i32 to index
    %1 = memref.load %arg2[%0] : memref<3xi32, #tpu.memory_space<smem>>
    %2 = arith.index_cast %arg1 : i32 to index
    %3 = memref.load %arg3[%2] : memref<3xi32, #tpu.memory_space<smem>>
    %cst = arith.constant 6.400000e+01 : f32
    %cst_0 = arith.constant -5.000000e-01 : f32
    %4 = math.powf %cst, %cst_0 : f32
    %c0_i32 = arith.constant 0 : i32
    %5 = arith.cmpi eq, %3, %c0_i32 : i32
    %6 = arith.extui %5 : i1 to i32
    %cst_1 = arith.constant -1.000000e+30 : f32
    %c0_i32_2 = arith.constant 0 : i32
    %7 = arith.cmpi ne, %6, %c0_i32_2 : i32
    scf.if %7 {
      %c0 = arith.constant 0 : index
      %c0_6 = arith.constant 0 : index
      %c0_7 = arith.constant 0 : index
      %14 = vector.load %arg4[%c0, %c0_6, %c0_7] : memref<1x128x64xf32, #tpu.memory_space<vmem>>, vector<1x128x64xf32>
      %15 = vector.shape_cast %14 : vector<1x128x64xf32> to vector<128x64xf32>
      %c0_8 = arith.constant 0 : index
      %c0_9 = arith.constant 0 : index
      %16 = vector.load %arg5[%c0_8, %c0_9] : memref<64x128xf32, #tpu.memory_space<vmem>>, vector<64x128xf32>
      %cst_10 = arith.constant dense<0.000000e+00> : vector<128x128xf32>
      %17 = tpu.matmul %15, %16, %cst_10 {dimension_numbers = #tpu.dot_dimension_numbers<[1], [0], [0], [1], [0, 0, 1, 1], [], []>} : vector<128x64xf32>, vector<64x128xf32>, vector<128x128xf32> -> vector<128x128xf32>
      %18 = vector.broadcast %4 : f32 to vector<128x128xf32>
      %19 = arith.mulf %17, %18 : vector<128x128xf32>
      %c0_11 = arith.constant 0 : index
      %c0_12 = arith.constant 0 : index
      %20 = vector.load %arg9[%c0_11, %c0_12] : memref<128x128xf32, #tpu.memory_space<vmem>>, vector<128x128xf32>
      tpu.vector_store %arg9[%c0_11, %c0_12], %19 {strides = array<i32>} : memref<128x128xf32, #tpu.memory_space<vmem>>, vector<128x128xf32>,
      %21 = vector.broadcast %cst_1 : f32 to vector<128x1xf32>
      %c0_13 = arith.constant 0 : index
      %c0_14 = arith.constant 0 : index
      %22 = vector.load %arg12[%c0_13, %c0_14] : memref<128x1xf32, #tpu.memory_space<vmem>>, vector<128x1xf32>
      tpu.vector_store %arg12[%c0_13, %c0_14], %21 {strides = array<i32>} : memref<128x1xf32, #tpu.memory_space<vmem>>, vector<128x1xf32>,
      %cst_15 = arith.constant 0.000000e+00 : f32
      %23 = vector.broadcast %cst_15 : f32 to vector<128x1xf32>
      %c0_16 = arith.constant 0 : index
      %c0_17 = arith.constant 0 : index
      %24 = vector.load %arg13[%c0_16, %c0_17] : memref<128x1xf32, #tpu.memory_space<vmem>>, vector<128x1xf32>
      tpu.vector_store %arg13[%c0_16, %c0_17], %23 {strides = array<i32>} : memref<128x1xf32, #tpu.memory_space<vmem>>, vector<128x1xf32>,
      %cst_18 = arith.constant 0.000000e+00 : f32
      %25 = vector.broadcast %cst_18 : f32 to vector<128x128xf32>
      %c0_19 = arith.constant 0 : index
      %c0_20 = arith.constant 0 : index
      %26 = vector.load %arg14[%c0_19, %c0_20] : memref<128x128xf32, #tpu.memory_space<vmem>>, vector<128x128xf32>
      tpu.vector_store %arg14[%c0_19, %c0_20], %25 {strides = array<i32>} : memref<128x128xf32, #tpu.memory_space<vmem>>, vector<128x128xf32>,
    } else {
    }
    %8 = arith.cmpi slt, %3, %1 : i32
    %9 = arith.extui %8 : i1 to i32
    %c0_i32_3 = arith.constant 0 : i32
    %10 = arith.cmpi ne, %9, %c0_i32_3 : i32
    scf.if %10 {
      %14 = arith.index_cast %3 : i32 to index
      %c0 = arith.constant 0 : index
      %c0_6 = arith.constant 0 : index
      %15 = vector.load %arg10[%14, %c0, %c0_6] : memref<2x128x128xf32, #tpu.memory_space<vmem>>, vector<1x128x128xf32>
      %16 = vector.shape_cast %15 : vector<1x128x128xf32> to vector<128x128xf32>
      %c0_7 = arith.constant 0 : index
      %c0_8 = arith.constant 0 : index
      %17 = vector.load %arg9[%c0_7, %c0_8] : memref<128x128xf32, #tpu.memory_space<vmem>>, vector<128x128xf32>
      %cst_9 = arith.constant dense<0.000000e+00> : vector<128x128xf32>
      %18 = tpu.matmul %17, %16, %cst_9 {dimension_numbers = #tpu.dot_dimension_numbers<[1], [1], [0], [0], [0, 0, 1, 0], [], []>} : vector<128x128xf32>, vector<128x128xf32>, vector<128x128xf32> -> vector<128x128xf32>
      %19 = arith.index_cast %3 : i32 to index
      %c0_10 = arith.constant 0 : index
      %c0_11 = arith.constant 0 : index
      %20 = vector.load %arg11[%19, %c0_10, %c0_11] : memref<2x128x128xf32, #tpu.memory_space<vmem>>, vector<1x128x128xf32>
      %21 = vector.shape_cast %20 : vector<1x128x128xf32> to vector<128x128xf32>
      %c0_12 = arith.constant 0 : index
      %c0_13 = arith.constant 0 : index
      %22 = vector.load %arg12[%c0_12, %c0_13] : memref<128x1xf32, #tpu.memory_space<vmem>>, vector<128x1xf32>
      %cst_14 = arith.constant dense<0xFF800000> : vector<128xf32>
      %23 = vector.multi_reduction <maximumf>, %18, %cst_14 [1] : vector<128x128xf32> to vector<128xf32>
      %24 = vector.shape_cast %23 : vector<128xf32> to vector<128x1xf32>
      %25 = arith.maximumf %22, %24 : vector<128x1xf32>
      %26 = arith.subf %22, %25 : vector<128x1xf32>
      %27 = math.exp %26 : vector<128x1xf32>
      %28 = vector.broadcast %25 : vector<128x1xf32> to vector<128x128xf32>
      %29 = arith.subf %18, %28 : vector<128x128xf32>
      %30 = math.exp %29 : vector<128x128xf32>
      %c0_15 = arith.constant 0 : index
      %c0_16 = arith.constant 0 : index
      %31 = vector.load %arg13[%c0_15, %c0_16] : memref<128x1xf32, #tpu.memory_space<vmem>>, vector<128x1xf32>
      %32 = arith.mulf %27, %31 : vector<128x1xf32>
      %cst_17 = arith.constant dense<0.000000e+00> : vector<128xf32>
      %33 = vector.multi_reduction <add>, %30, %cst_17 [1] : vector<128x128xf32> to vector<128xf32>
      %34 = vector.shape_cast %33 : vector<128xf32> to vector<128x1xf32>
      %35 = arith.addf %32, %34 : vector<128x1xf32>
      %c0_18 = arith.constant 0 : index
      %c0_19 = arith.constant 0 : index
      %36 = vector.load %arg13[%c0_18, %c0_19] : memref<128x1xf32, #tpu.memory_space<vmem>>, vector<128x1xf32>
      tpu.vector_store %arg13[%c0_18, %c0_19], %35 {strides = array<i32>} : memref<128x1xf32, #tpu.memory_space<vmem>>, vector<128x1xf32>,
      %c0_20 = arith.constant 0 : index
      %c0_21 = arith.constant 0 : index
      %37 = vector.load %arg14[%c0_20, %c0_21] : memref<128x128xf32, #tpu.memory_space<vmem>>, vector<128x128xf32>
      %38 = vector.broadcast %27 : vector<128x1xf32> to vector<128x128xf32>
      %39 = arith.mulf %38, %37 : vector<128x128xf32>
      %cst_22 = arith.constant dense<0.000000e+00> : vector<128x128xf32>
      %40 = tpu.matmul %30, %21, %cst_22 {dimension_numbers = #tpu.dot_dimension_numbers<[1], [0], [0], [1], [0, 0, 1, 1], [], []>} : vector<128x128xf32>, vector<128x128xf32>, vector<128x128xf32> -> vector<128x128xf32>
      %41 = arith.addf %39, %40 : vector<128x128xf32>
      %c0_23 = arith.constant 0 : index
      %c0_24 = arith.constant 0 : index
      %42 = vector.load %arg14[%c0_23, %c0_24] : memref<128x128xf32, #tpu.memory_space<vmem>>, vector<128x128xf32>
      tpu.vector_store %arg14[%c0_23, %c0_24], %41 {strides = array<i32>} : memref<128x128xf32, #tpu.memory_space<vmem>>, vector<128x128xf32>,
      %c0_25 = arith.constant 0 : index
      %c0_26 = arith.constant 0 : index
      %43 = vector.load %arg12[%c0_25, %c0_26] : memref<128x1xf32, #tpu.memory_space<vmem>>, vector<128x1xf32>
      tpu.vector_store %arg12[%c0_25, %c0_26], %25 {strides = array<i32>} : memref<128x1xf32, #tpu.memory_space<vmem>>, vector<128x1xf32>,
    } else {
    }
    %11 = arith.cmpi eq, %3, %1 : i32
    %12 = arith.extui %11 : i1 to i32
    %cst_4 = arith.constant -1.000000e+30 : f32
    %c0_i32_5 = arith.constant 0 : i32
    %13 = arith.cmpi ne, %12, %c0_i32_5 : i32
    scf.if %13 {
      %c0 = arith.constant 0 : index
      %c0_6 = arith.constant 0 : index
      %c0_7 = arith.constant 0 : index
      %14 = vector.load %arg4[%c0, %c0_6, %c0_7] : memref<1x128x64xf32, #tpu.memory_space<vmem>>, vector<1x128x64xf32>
      %15 = vector.shape_cast %14 : vector<1x128x64xf32> to vector<128x64xf32>
      %c0_8 = arith.constant 0 : index
      %c0_9 = arith.constant 0 : index
      %16 = vector.load %arg6[%c0_8, %c0_9] : memref<64x128xf32, #tpu.memory_space<vmem>>, vector<64x128xf32>
      %cst_10 = arith.constant dense<0.000000e+00> : vector<128x128xf32>
      %17 = tpu.matmul %15, %16, %cst_10 {dimension_numbers = #tpu.dot_dimension_numbers<[1], [0], [0], [1], [0, 0, 1, 1], [], []>} : vector<128x64xf32>, vector<64x128xf32>, vector<128x128xf32> -> vector<128x128xf32>
      %c0_11 = arith.constant 0 : index
      %c0_12 = arith.constant 0 : index
      %18 = vector.load %arg7[%c0_11, %c0_12] : memref<64x128xf32, #tpu.memory_space<vmem>>, vector<64x128xf32>
      %cst_13 = arith.constant dense<0.000000e+00> : vector<128x128xf32>
      %19 = tpu.matmul %15, %18, %cst_13 {dimension_numbers = #tpu.dot_dimension_numbers<[1], [0], [0], [1], [0, 0, 1, 1], [], []>} : vector<128x64xf32>, vector<64x128xf32>, vector<128x128xf32> -> vector<128x128xf32>
      %20 = arith.index_cast %1 : i32 to index
      %c0_14 = arith.constant 0 : index
      %c0_15 = arith.constant 0 : index
      %21 = vector.load %arg10[%20, %c0_14, %c0_15] : memref<2x128x128xf32, #tpu.memory_space<vmem>>, vector<1x128x128xf32>
      %22 = vector.shape_cast %21 : vector<1x128x128xf32> to vector<128x128xf32>
      %23 = vector.shape_cast %17 : vector<128x128xf32> to vector<1x128x128xf32>
      tpu.vector_store %arg10[%20, %c0_14, %c0_15], %23 {strides = array<i32>} : memref<2x128x128xf32, #tpu.memory_space<vmem>>, vector<1x128x128xf32>,
      %24 = arith.index_cast %1 : i32 to index
      %c0_16 = arith.constant 0 : index
      %c0_17 = arith.constant 0 : index
      %25 = vector.load %arg11[%24, %c0_16, %c0_17] : memref<2x128x128xf32, #tpu.memory_space<vmem>>, vector<1x128x128xf32>
      %26 = vector.shape_cast %25 : vector<1x128x128xf32> to vector<128x128xf32>
      %27 = vector.shape_cast %19 : vector<128x128xf32> to vector<1x128x128xf32>
      tpu.vector_store %arg11[%24, %c0_16, %c0_17], %27 {strides = array<i32>} : memref<2x128x128xf32, #tpu.memory_space<vmem>>, vector<1x128x128xf32>,
      %c0_18 = arith.constant 0 : index
      %c0_19 = arith.constant 0 : index
      %28 = vector.load %arg9[%c0_18, %c0_19] : memref<128x128xf32, #tpu.memory_space<vmem>>, vector<128x128xf32>
      %cst_20 = arith.constant dense<0.000000e+00> : vector<128x128xf32>
      %29 = tpu.matmul %28, %17, %cst_20 {dimension_numbers = #tpu.dot_dimension_numbers<[1], [1], [0], [0], [0, 0, 1, 0], [], []>} : vector<128x128xf32>, vector<128x128xf32>, vector<128x128xf32> -> vector<128x128xf32>
      %30 = tpu.iota {dimensions = array<i32: 0>} : vector<128x128xi32>
      %31 = tpu.iota {dimensions = array<i32: 1>} : vector<128x128xi32>
      %32 = arith.cmpi sle, %31, %30 : vector<128x128xi32>
      %33 = vector.broadcast %cst_4 : f32 to vector<128x128xf32>
      %34 = arith.select %32, %29, %33 : vector<128x128xi1>, vector<128x128xf32>
      %c0_21 = arith.constant 0 : index
      %c0_22 = arith.constant 0 : index
      %35 = vector.load %arg12[%c0_21, %c0_22] : memref<128x1xf32, #tpu.memory_space<vmem>>, vector<128x1xf32>
      %cst_23 = arith.constant dense<0xFF800000> : vector<128xf32>
      %36 = vector.multi_reduction <maximumf>, %34, %cst_23 [1] : vector<128x128xf32> to vector<128xf32>
      %37 = vector.shape_cast %36 : vector<128xf32> to vector<128x1xf32>
      %38 = arith.maximumf %35, %37 : vector<128x1xf32>
      %39 = arith.subf %35, %38 : vector<128x1xf32>
      %40 = math.exp %39 : vector<128x1xf32>
      %41 = vector.broadcast %38 : vector<128x1xf32> to vector<128x128xf32>
      %42 = arith.subf %34, %41 : vector<128x128xf32>
      %43 = math.exp %42 : vector<128x128xf32>
      %c0_24 = arith.constant 0 : index
      %c0_25 = arith.constant 0 : index
      %44 = vector.load %arg13[%c0_24, %c0_25] : memref<128x1xf32, #tpu.memory_space<vmem>>, vector<128x1xf32>
      %45 = arith.mulf %40, %44 : vector<128x1xf32>
      %cst_26 = arith.constant dense<0.000000e+00> : vector<128xf32>
      %46 = vector.multi_reduction <add>, %43, %cst_26 [1] : vector<128x128xf32> to vector<128xf32>
      %47 = vector.shape_cast %46 : vector<128xf32> to vector<128x1xf32>
      %48 = arith.addf %45, %47 : vector<128x1xf32>
      %c0_27 = arith.constant 0 : index
      %c0_28 = arith.constant 0 : index
      %49 = vector.load %arg13[%c0_27, %c0_28] : memref<128x1xf32, #tpu.memory_space<vmem>>, vector<128x1xf32>
      tpu.vector_store %arg13[%c0_27, %c0_28], %48 {strides = array<i32>} : memref<128x1xf32, #tpu.memory_space<vmem>>, vector<128x1xf32>,
      %c0_29 = arith.constant 0 : index
      %c0_30 = arith.constant 0 : index
      %50 = vector.load %arg14[%c0_29, %c0_30] : memref<128x128xf32, #tpu.memory_space<vmem>>, vector<128x128xf32>
      %51 = vector.broadcast %40 : vector<128x1xf32> to vector<128x128xf32>
      %52 = arith.mulf %51, %50 : vector<128x128xf32>
      %cst_31 = arith.constant dense<0.000000e+00> : vector<128x128xf32>
      %53 = tpu.matmul %43, %19, %cst_31 {dimension_numbers = #tpu.dot_dimension_numbers<[1], [0], [0], [1], [0, 0, 1, 1], [], []>} : vector<128x128xf32>, vector<128x128xf32>, vector<128x128xf32> -> vector<128x128xf32>
      %54 = arith.addf %52, %53 : vector<128x128xf32>
      %c0_32 = arith.constant 0 : index
      %c0_33 = arith.constant 0 : index
      %55 = vector.load %arg14[%c0_32, %c0_33] : memref<128x128xf32, #tpu.memory_space<vmem>>, vector<128x128xf32>
      tpu.vector_store %arg14[%c0_32, %c0_33], %54 {strides = array<i32>} : memref<128x128xf32, #tpu.memory_space<vmem>>, vector<128x128xf32>,
      %c0_34 = arith.constant 0 : index
      %c0_35 = arith.constant 0 : index
      %56 = vector.load %arg12[%c0_34, %c0_35] : memref<128x1xf32, #tpu.memory_space<vmem>>, vector<128x1xf32>
      tpu.vector_store %arg12[%c0_34, %c0_35], %38 {strides = array<i32>} : memref<128x1xf32, #tpu.memory_space<vmem>>, vector<128x1xf32>,
      %c0_36 = arith.constant 0 : index
      %c0_37 = arith.constant 0 : index
      %57 = vector.load %arg14[%c0_36, %c0_37] : memref<128x128xf32, #tpu.memory_space<vmem>>, vector<128x128xf32>
      %c0_38 = arith.constant 0 : index
      %c0_39 = arith.constant 0 : index
      %58 = vector.load %arg13[%c0_38, %c0_39] : memref<128x1xf32, #tpu.memory_space<vmem>>, vector<128x1xf32>
      %59 = vector.broadcast %58 : vector<128x1xf32> to vector<128x128xf32>
      %60 = arith.divf %57, %59 : vector<128x128xf32>
      %c0_40 = arith.constant 0 : index
      %c0_41 = arith.constant 0 : index
      %c0_42 = arith.constant 0 : index
      %61 = vector.load %arg8[%c0_40, %c0_41, %c0_42] : memref<1x128x128xf32, #tpu.memory_space<vmem>>, vector<1x128x128xf32>
      %62 = vector.shape_cast %61 : vector<1x128x128xf32> to vector<128x128xf32>
      %63 = vector.shape_cast %60 : vector<128x128xf32> to vector<1x128x128xf32>
      tpu.vector_store %arg8[%c0_40, %c0_41, %c0_42], %63 {strides = array<i32>} : memref<1x128x128xf32, #tpu.memory_space<vmem>>, vector<1x128x128xf32>,
    } else {
    }
    return
  }
  func.func @transform_0(%arg0: i32, %arg1: i32, %arg2: memref<3xi32, #tpu.memory_space<smem>>, %arg3: memref<3xi32, #tpu.memory_space<smem>>) -> (i32, i32, i32) {
    %0 = arith.index_cast %arg1 : i32 to index
    %1 = memref.load %arg2[%0] : memref<3xi32, #tpu.memory_space<smem>>
    %c0_i32 = arith.constant 0 : i32
    %c0_i32_0 = arith.constant 0 : i32
    return %arg0, %1, %c0_i32 : i32, i32, i32
  }
  func.func @transform_1(%arg0: i32, %arg1: i32, %arg2: memref<3xi32, #tpu.memory_space<smem>>, %arg3: memref<3xi32, #tpu.memory_space<smem>>) -> (i32, i32) {
    %c0_i32 = arith.constant 0 : i32
    %c0_i32_0 = arith.constant 0 : i32
    %c0_i32_1 = arith.constant 0 : i32
    return %c0_i32, %c0_i32_0 : i32, i32
  }
  func.func @transform_2(%arg0: i32, %arg1: i32, %arg2: memref<3xi32, #tpu.memory_space<smem>>, %arg3: memref<3xi32, #tpu.memory_space<smem>>) -> (i32, i32) {
    %c0_i32 = arith.constant 0 : i32
    %c0_i32_0 = arith.constant 0 : i32
    %c0_i32_1 = arith.constant 0 : i32
    return %c0_i32, %c0_i32_0 : i32, i32
  }
  func.func @transform_3(%arg0: i32, %arg1: i32, %arg2: memref<3xi32, #tpu.memory_space<smem>>, %arg3: memref<3xi32, #tpu.memory_space<smem>>) -> (i32, i32) {
    %c0_i32 = arith.constant 0 : i32
    %c0_i32_0 = arith.constant 0 : i32
    %c0_i32_1 = arith.constant 0 : i32
    return %c0_i32, %c0_i32_0 : i32, i32
  }
  func.func @transform_4(%arg0: i32, %arg1: i32, %arg2: memref<3xi32, #tpu.memory_space<smem>>, %arg3: memref<3xi32, #tpu.memory_space<smem>>) -> (i32, i32, i32) {
    %0 = arith.index_cast %arg1 : i32 to index
    %1 = memref.load %arg2[%0] : memref<3xi32, #tpu.memory_space<smem>>
    %c0_i32 = arith.constant 0 : i32
    %c0_i32_0 = arith.constant 0 : i32
    return %arg0, %1, %c0_i32 : i32, i32, i32
  }
}

</mosaic_0001>

<llo_original>
// kernel: tpu_custom_call.1
$region0: #{tpu_custom_call.1}
  #allocation0 [shape = 'u32[]', space=smem, size = 0x4, offset = 0x4, fixed_abs, tag = 'smem constant byte address 0x4 - core index']
  #allocation1 [shape = 'u32[144,128]{1,0:T(1,128)}', space=vmem, size = 0x12000, scoped, tag = 'internal scratch']
  #allocation2 [shape = 'f32[128,128]{1,0:T(8,128)}', space=vmem, size = 0x10000, scoped, tag = 'scratch operand']
  #allocation3 [shape = 'f32[2,128,128]{2,1,0:T(8,128)}', space=vmem, size = 0x20000, scoped, tag = 'scratch operand']
  #allocation4 [shape = 'f32[2,128,128]{2,1,0:T(8,128)}', space=vmem, size = 0x20000, scoped, tag = 'scratch operand']
  #allocation5 [shape = 'f32[128,1]{1,0:T(8,128)}', space=vmem, size = 0x10000, scoped, tag = 'scratch operand']
  #allocation6 [shape = 'f32[128,1]{1,0:T(8,128)}', space=vmem, size = 0x10000, scoped, tag = 'scratch operand']
  #allocation7 [shape = 'f32[128,128]{1,0:T(8,128)}', space=vmem, size = 0x10000, scoped, tag = 'scratch operand']
  #allocation8 [shape = 's32[1]{0}', space=sflag, size = 0x4, scoped, tag = 'scoped memory for tpu_custom_call.1']
  #allocation9 [shape = 'u8[512]{0}', space=smem, size = 0x200, scoped, tag = 'prefetched SMEM operand 0']
  #allocation10 [shape = 'u8[512]{0}', space=smem, size = 0x200, scoped, tag = 'prefetched SMEM operand 1']
  %s0 = inlined_call_operand.vmem [shape: s32[3], index: 0, kind: input, shape index: {}]
  %s1 = inlined_call_operand.vmem [shape: s32[3], index: 1, kind: input, shape index: {}]
  %s2 = inlined_call_operand.vmem [shape: f32[2,256,64], index: 2, kind: input, shape index: {}]
  %s3 = inlined_call_operand.vmem [shape: f32[64,128], index: 3, kind: input, shape index: {}]
  %s4 = inlined_call_operand.vmem [shape: f32[64,128], index: 4, kind: input, shape index: {}]
  %s5 = inlined_call_operand.vmem [shape: f32[64,128], index: 5, kind: input, shape index: {}]
  %s6 = inlined_call_operand.hbm [shape: f32[2,256,128], index: 6, kind: output, shape index: {}]
  %s7 = sld [smem:[#allocation0]]
  $region61: #{tpu_custom_call.1} parent=0
    _
  %s9 = ssub.s32 1, %s7
  %s10 = scalar_select 0, %s9, %s7
  %s11 = sshll.u32 %s0, 4
  %s12 = int_to_ptr.vmem [resolvable:$true] %s11
  %14 = dma.vmem_to_smem %s12, 16, [#allocation9], [#allocation8]
  %s15 = sshll.u32 %s1, 4
  %s16 = int_to_ptr.vmem [resolvable:$true] %s15
  %18 = dma.vmem_to_smem %s16, 16, [#allocation10], [#allocation8]
  %19 = dma.done [#allocation8], 32
  %20 = sfence
  $region1: #{tpu_custom_call.1} parent=0
    #allocation11 [shape = 'u8[131072]{0}', space=vmem, size = 0x20000, scoped, tag = 'output window, operand 0']
    #allocation12 [shape = 's32[2]{0}', space=sflag, size = 0x8, scoped, tag = 'scoped memory for tpu_custom_call.1']
    %21 = vsyncpa [#allocation12], 0
    %s22 = scalar_lea.sflag [#allocation12], 1
    %23 = vsyncpa %s22, 0
    loop: start=0, step=1, limit=8
    $region2: #{tpu_custom_call.1} parent=1 // loop_pre_header
      _
    $region3: #{tpu_custom_call.1} parent=1 // loop_header
      %s25 = sphi 0, %s29
      %p26 = scmp.ge.s32.totalorder %s25, 8
      %s32 = sphi 0, %s44
      %s33 = sphi 0, %s40
      %s34 = sphi 0, %s32
      %s35 = sphi 0, %s33
      %s36 = sphi 0, %s34
      %s37 = sphi 0, %s35
      %s51 = sphi 0, %s53
      %s54 = sphi 0, %s51
      %s55 = sphi 0, %s54
      %s71 = sphi 0, %s55
      %s75 = sphi 0, %s75
      %s77 = sphi 0, %s75
      %s78 = sphi 0, %s77
      %s92 = sphi 0, %s78
      %s96 = sphi 0, %s96
      %s98 = sphi 0, %s96
      %s99 = sphi 0, %s98
      %s113 = sphi 0, %s99
      %s117 = sphi 0, %s117
      %s119 = sphi 0, %s117
      %s120 = sphi 0, %s119
      %s134 = sphi 0, %s120
      %s144 = sphi 0, %s146
      %s147 = sphi 0, %s144
      %s148 = sphi 0, %s147
      %s164 = sphi 0, %s148
    $region4: #{tpu_custom_call.1} parent=1 // loop_header_branch
      %28 = sbr.rel (%p26) target = $region8
    $region5: #{tpu_custom_call.1} parent=1 // loop_body
      %s30 = ssub.s32 %s25, 1
      %s31 = ssub.s32 %s25, 2
      %s38 = sadd.s32 1, %s33
      %p39 = scmp.ge.s32.totalorder %s38, 3
      %s40 = scalar_select %p39, 0, %s38
      %s41 = sadd.s32 1, %s32
      %s42 = scalar_select %p39, %s41, %s32
      %p43 = scmp.ge.s32.totalorder %s42, 2
      %s44 = scalar_select %p43, 0, %s42
      %s45 = sld [smem:[#allocation9 + %s33]]
      %s46 = sld [smem:[#allocation9 + %s40]]
      %s47 = ssub.s32 %s32, %s44
      %s48 = ssub.s32 %s45, %s46
      %s49 = sor.u32 %s47, %s48
      %p50 = scmp.eq.s32.totalorder %s49, 0
      %s52 = sadd.s32 %s51, 1
      %s53 = scalar_select %p50, %s51, %s52
      %p56 = pneg %p50
      %p57 = scmp.eq.s32.totalorder %s25, 5
      %p58 = por %p56, %p57
      %p59 = scmp.ne.s32.totalorder %s51, %s54
      %p60 = scmp.eq.s32.totalorder %s25, 0
      %p61 = por %p59, %p60
      %p62 = scmp.ne.s32.totalorder %s51, %s54
      %p63 = scmp.eq.s32.totalorder %s30, 5
      %p64 = por %p62, %p63
      %p65 = scmp.ne.s32.totalorder %s54, %s55
      %p66 = scmp.eq.s32.totalorder %s30, 0
      %p67 = por %p65, %p66
      %p68 = scmp.ne.s32.totalorder %s54, %s55
      %p69 = scmp.eq.s32.totalorder %s31, 5
      %p70 = por %p68, %p69
      %p72 = scmp.ne.s32.totalorder %s55, %s71
      %p73 = scmp.eq.s32.totalorder %s31, 0
      %p74 = por %p72, %p73
      %s76 = sadd.s32 %s75, 1
      %p79 = scmp.eq.s32.totalorder %s25, 5
      %p80 = scmp.ne.s32.totalorder %s75, %s77
      %p81 = scmp.eq.s32.totalorder %s25, 0
      %p82 = por %p80, %p81
      %p83 = scmp.ne.s32.totalorder %s75, %s77
      %p84 = scmp.eq.s32.totalorder %s30, 5
      %p85 = por %p83, %p84
      %p86 = scmp.ne.s32.totalorder %s77, %s78
      %p87 = scmp.eq.s32.totalorder %s30, 0
      %p88 = por %p86, %p87
      %p89 = scmp.ne.s32.totalorder %s77, %s78
      %p90 = scmp.eq.s32.totalorder %s31, 5
      %p91 = por %p89, %p90
      %p93 = scmp.ne.s32.totalorder %s78, %s92
      %p94 = scmp.eq.s32.totalorder %s31, 0
      %p95 = por %p93, %p94
      %s97 = sadd.s32 %s96, 1
      %p100 = scmp.eq.s32.totalorder %s25, 5
      %p101 = scmp.ne.s32.totalorder %s96, %s98
      %p102 = scmp.eq.s32.totalorder %s25, 0
      %p103 = por %p101, %p102
      %p104 = scmp.ne.s32.totalorder %s96, %s98
      %p105 = scmp.eq.s32.totalorder %s30, 5
      %p106 = por %p104, %p105
      %p107 = scmp.ne.s32.totalorder %s98, %s99
      %p108 = scmp.eq.s32.totalorder %s30, 0
      %p109 = por %p107, %p108
      %p110 = scmp.ne.s32.totalorder %s98, %s99
      %p111 = scmp.eq.s32.totalorder %s31, 5
      %p112 = por %p110, %p111
      %p114 = scmp.ne.s32.totalorder %s99, %s113
      %p115 = scmp.eq.s32.totalorder %s31, 0
      %p116 = por %p114, %p115
      %s118 = sadd.s32 %s117, 1
      %p121 = scmp.eq.s32.totalorder %s25, 5
      %p122 = scmp.ne.s32.totalorder %s117, %s119
      %p123 = scmp.eq.s32.totalorder %s25, 0
      %p124 = por %p122, %p123
      %p125 = scmp.ne.s32.totalorder %s117, %s119
      %p126 = scmp.eq.s32.totalorder %s30, 5
      %p127 = por %p125, %p126
      %p128 = scmp.ne.s32.totalorder %s119, %s120
      %p129 = scmp.eq.s32.totalorder %s30, 0
      %p130 = por %p128, %p129
      %p131 = scmp.ne.s32.totalorder %s119, %s120
      %p132 = scmp.eq.s32.totalorder %s31, 5
      %p133 = por %p131, %p132
      %p135 = scmp.ne.s32.totalorder %s120, %s134
      %p136 = scmp.eq.s32.totalorder %s31, 0
      %p137 = por %p135, %p136
      %s138 = sld [smem:[#allocation9 + %s33]]
      %s139 = sld [smem:[#allocation9 + %s40]]
      %s140 = ssub.s32 %s32, %s44
      %s141 = ssub.s32 %s138, %s139
      %s142 = sor.u32 %s140, %s141
      %p143 = scmp.eq.s32.totalorder %s142, 0
      %s145 = sadd.s32 %s144, 1
      %s146 = scalar_select %p143, %s144, %s145
      %p149 = pneg %p143
      %p150 = scmp.eq.s32.totalorder %s25, 5
      %p151 = por %p149, %p150
      %p152 = scmp.ne.s32.totalorder %s144, %s147
      %p153 = scmp.eq.s32.totalorder %s25, 0
      %p154 = por %p152, %p153
      %p155 = scmp.ne.s32.totalorder %s144, %s147
      %p156 = scmp.eq.s32.totalorder %s30, 5
      %p157 = por %p155, %p156
      %p158 = scmp.ne.s32.totalorder %s147, %s148
      %p159 = scmp.eq.s32.totalorder %s30, 0
      %p160 = por %p158, %p159
      %p161 = scmp.ne.s32.totalorder %s147, %s148
      %p162 = scmp.eq.s32.totalorder %s31, 5
      %p163 = por %p161, %p162
      %p165 = scmp.ne.s32.totalorder %s148, %s164
      %p166 = scmp.eq.s32.totalorder %s31, 0
      %p167 = por %p165, %p166
      %p168 = scmp.le.s32.totalorder 1, %s25
      %p169 = scmp.lt.s32.totalorder %s25, 7
      %p170 = pnand %p168, %p169
      %p171 = pneg %p170
      // Predicated region
      $region9: #{tpu_custom_call.1} parent=5 // pred_check
        _
      $region10: #{tpu_custom_call.1} parent=5 // pred_check_branch
        %173 = sbr.rel (%p170) target = $region12
      $region11: #{tpu_custom_call.1} parent=5 // pred_region
        %s174 = ssub.s32 %s25, 1
        // Predicated region
        $region13: #{tpu_custom_call.1} parent=11 // pred_check
          %p175 = pneg %p88
        $region14: #{tpu_custom_call.1} parent=11 // pred_check_branch
          %177 = sbr.rel (%p175) target = $region16
        $region15: #{tpu_custom_call.1} parent=11 // pred_region
          _
        $region16: #{tpu_custom_call.1} parent=11 // pred_fallthru
          _
        // Predicated region
        $region17: #{tpu_custom_call.1} parent=11 // pred_check
          %p178 = pneg %p109
        $region18: #{tpu_custom_call.1} parent=11 // pred_check_branch
          %180 = sbr.rel (%p178) target = $region20
        $region19: #{tpu_custom_call.1} parent=11 // pred_region
          _
        $region20: #{tpu_custom_call.1} parent=11 // pred_fallthru
          _
        // Predicated region
        $region21: #{tpu_custom_call.1} parent=11 // pred_check
          %p181 = pneg %p130
        $region22: #{tpu_custom_call.1} parent=11 // pred_check_branch
          %183 = sbr.rel (%p181) target = $region24
        $region23: #{tpu_custom_call.1} parent=11 // pred_region
          _
        $region24: #{tpu_custom_call.1} parent=11 // pred_fallthru
          _
      $region12: #{tpu_custom_call.1} parent=5 // pred_fallthru
        _
      %p184 = scmp.lt.s32.totalorder %s25, 6
      // Predicated region
      $region25: #{tpu_custom_call.1} parent=5 // pred_check
        %p185 = pneg %p184
      $region26: #{tpu_custom_call.1} parent=5 // pred_check_branch
        %187 = sbr.rel (%p185) target = $region28
      $region27: #{tpu_custom_call.1} parent=5 // pred_region
        // Predicated region
        $region29: #{tpu_custom_call.1} parent=27 // pred_check
          %p188 = pneg %p61
        $region30: #{tpu_custom_call.1} parent=27 // pred_check_branch
          %190 = sbr.rel (%p188) target = $region32
        $region31: #{tpu_custom_call.1} parent=27 // pred_region
          %s191 = sld [smem:[#allocation9 + %s33]]
          %s192 = smul.u32 16, %s191
          %p193 = scmp.lt.s32.totalorder %s32, 1
          %s194 = scalar_select %p193, %s32, 1
          %p195 = scmp.lt.s32.totalorder %s192, 31
          %s196 = scalar_select %p195, %s192, 31
          %s197 = smul.addr %s194, 32
          %s198 = sadd.s32 %s196, %s197
          %s199 = smul.addr %s198, 8
          %s200 = scalar_lea.vmem %s2, %s199
          %s201 = sld [smem:[#allocation9 + %s33]]
          %s202 = smul.u32 16, %s201
        $region32: #{tpu_custom_call.1} parent=27 // pred_fallthru
          _
      $region28: #{tpu_custom_call.1} parent=5 // pred_fallthru
        _
      %p203 = scmp.le.s32.totalorder 1, %s25
      %p204 = scmp.lt.s32.totalorder %s25, 7
      %p205 = pnand %p203, %p204
      %p206 = pneg %p205
      // Predicated region
      $region33: #{tpu_custom_call.1} parent=5 // pred_check
        _
      $region34: #{tpu_custom_call.1} parent=5 // pred_check_branch
        %208 = sbr.rel (%p205) target = $region36
      $region35: #{tpu_custom_call.1} parent=5 // pred_region
        %s209 = ssub.s32 %s25, 1
        %s210 = sld [smem:[#allocation9 + %s35]]
        %s211 = smul.u32 16, %s210
        %p212 = scmp.lt.s32.totalorder %s34, 1
        %s213 = scalar_select %p212, %s34, 1
        %p214 = scmp.lt.s32.totalorder %s211, 31
        %s215 = scalar_select %p214, %s211, 31
        %s216 = smul.addr %s213, 32
        %s217 = sadd.s32 %s215, %s216
        %s218 = smul.addr %s217, 8
        %s219 = scalar_lea.vmem %s2, %s218
        %p220 = pneg %p67
        %p221 = pneg %p64
        %p222 = pneg %p88
        %p223 = pneg %p85
        %p224 = pneg %p109
        %p225 = pneg %p106
        %p226 = pneg %p130
        %p227 = pneg %p127
        %p228 = pneg %p160
        %p229 = pneg %p157
        %s230 = sand.u32 %s147, 1
        %s231 = scalar_lea.sflag [#allocation12], %s230
        %s232 = sand.u32 %s147, 1
        %s233 = smul.addr %s232, 128
        %s234 = scalar_lea.vmem [#allocation11], %s233
        %s235 = sld [smem:[#allocation9 + %s35]]
        %s236 = smul.u32 16, %s235
        %p237 = scmp.lt.s32.totalorder %s34, 1
        %s238 = scalar_select %p237, %s34, 1
        %p239 = scmp.lt.s32.totalorder %s236, 31
        %s240 = scalar_select %p239, %s236, 31
        %s241 = smul.addr %s238, 32
        %s242 = sadd.s32 %s240, %s241
        %s243 = smul.addr %s242, 8
        %s244 = scalar_lea.vmem %s2, %s243
        %s245 = sld [smem:[#allocation9 + %s35]]
        %s246 = smul.u32 16, %s245
        %s247 = sld [smem:[#allocation9 + %s35]]
        %s248 = smul.u32 16, %s247
        %s249 = sld [smem:[#allocation9 + %s35]]
        %s250 = sld [smem:[#allocation10 + %s35]]
        %p251 = scmp.eq.s32.totalorder %s250, 0
        // Predicated region
        $region37: #{tpu_custom_call.1} parent=35 // pred_check
          %p252 = pneg %p251
        $region38: #{tpu_custom_call.1} parent=35 // pred_check_branch
          %254 = sbr.rel (%p252) target = $region40
        $region39: #{tpu_custom_call.1} parent=35 // pred_region
          %v255 = vld [vmem:[%s244] sm:$0xff]
          %v256 = vld [vmem:[%s244 + $0x8] sm:$0xff]
          %v257 = vld [vmem:[%s244 + $0x10] sm:$0xff]
          %v258 = vld [vmem:[%s244 + $0x18] sm:$0xff]
          %v259 = vld [vmem:[%s244 + $0x20] sm:$0xff]
          %v260 = vld [vmem:[%s244 + $0x28] sm:$0xff]
          %v261 = vld [vmem:[%s244 + $0x30] sm:$0xff]
          %v262 = vld [vmem:[%s244 + $0x38] sm:$0xff]
          %v263 = vld [vmem:[%s244 + $0x40] sm:$0xff]
          %v264 = vld [vmem:[%s244 + $0x48] sm:$0xff]
          %v265 = vld [vmem:[%s244 + $0x50] sm:$0xff]
          %v266 = vld [vmem:[%s244 + $0x58] sm:$0xff]
          %v267 = vld [vmem:[%s244 + $0x60] sm:$0xff]
          %v268 = vld [vmem:[%s244 + $0x68] sm:$0xff]
          %v269 = vld [vmem:[%s244 + $0x70] sm:$0xff]
          %v270 = vld [vmem:[%s244 + $0x78] sm:$0xff]
          %v271 = vld [vmem:[%s3] sm:$0xff]
          %v272 = vld [vmem:[%s3 + $0x8] sm:$0xff]
          %v273 = vld [vmem:[%s3 + $0x10] sm:$0xff]
          %v274 = vld [vmem:[%s3 + $0x18] sm:$0xff]
          %v275 = vld [vmem:[%s3 + $0x20] sm:$0xff]
          %v276 = vld [vmem:[%s3 + $0x28] sm:$0xff]
          %v277 = vld [vmem:[%s3 + $0x30] sm:$0xff]
          %v278 = vld [vmem:[%s3 + $0x38] sm:$0xff]
          %vm279 = vcmask 523264
          %v281 = vsel %vm279, %v255, 0
          %v284 = vsel %vm279, %v256, 0
          %v287 = vsel %vm279, %v257, 0
          %v290 = vsel %vm279, %v258, 0
          %v293 = vsel %vm279, %v259, 0
          %v296 = vsel %vm279, %v260, 0
          %v299 = vsel %vm279, %v261, 0
          %v302 = vsel %vm279, %v262, 0
          %v305 = vsel %vm279, %v263, 0
          %v308 = vsel %vm279, %v264, 0
          %v311 = vsel %vm279, %v265, 0
          %v314 = vsel %vm279, %v266, 0
          %v317 = vsel %vm279, %v267, 0
          %v320 = vsel %vm279, %v268, 0
          %v323 = vsel %vm279, %v269, 0
          %v326 = vsel %vm279, %v270, 0
          %328 = vmatprep.subr.mxu0 0.0
          %329 = vmatpush1.msra.mxu0 %v271
          %330 = vmatprep.subr.mxu0 0.0
          %331 = vmatpush1.msra.mxu0 %v272
          %332 = vmatprep.subr.mxu0 0.0
          %333 = vmatpush1.msra.mxu0 %v273
          %334 = vmatprep.subr.mxu0 0.0
          %335 = vmatpush1.msra.mxu0 %v274
          %336 = vmatprep.subr.mxu0 0.0
          %337 = vmatpush1.msra.mxu0 %v275
          %338 = vmatprep.subr.mxu0 0.0
          %339 = vmatpush1.msra.mxu0 %v276
          %340 = vmatprep.subr.mxu0 0.0
          %341 = vmatpush1.msra.mxu0 %v277
          %342 = vmatprep.subr.mxu0 0.0
          %343 = vmatpush1.msra.mxu0 %v278
          %344 = vmatprep.subr.mxu0 0.0
          %345 = vmatpush1.msra.mxu0 0.0
          %346 = vmatprep.subr.mxu0 0.0
          %347 = vmatpush1.msra.mxu0 0.0
          %348 = vmatprep.subr.mxu0 0.0
          %349 = vmatpush1.msra.mxu0 0.0
          %350 = vmatprep.subr.mxu0 0.0
          %351 = vmatpush1.msra.mxu0 0.0
          %352 = vmatprep.subr.mxu0 0.0
          %353 = vmatpush1.msra.mxu0 0.0
          %354 = vmatprep.subr.mxu0 0.0
          %355 = vmatpush1.msra.mxu0 0.0
          %356 = vmatprep.subr.mxu0 0.0
          %357 = vmatpush1.msra.mxu0 0.0
          %358 = vmatprep.subr.mxu0 0.0
          %359 = vmatpush1.msra.mxu0 0.0
          %360 = vmatprep.subr.mxu0 0.0
          %361 = vmatpush1.msra.mxu0 0.0
          %362 = vmatprep.subr.mxu0 0.0
          %363 = vmatpush1.msra.mxu0 0.0
          %364 = vmatprep.subr.mxu0 0.0
          %365 = vmatpush1.msra.mxu0 0.0
          %366 = vmatprep.subr.mxu0 0.0
          %367 = vmatpush1.msra.mxu0 0.0
          %368 = vmatprep.subr.mxu0 0.0
          %369 = vmatpush1.msra.mxu0 0.0
          %370 = vmatprep.subr.mxu0 0.0
          %371 = vmatpush1.msra.mxu0 0.0
          %372 = vmatprep.subr.mxu0 0.0
          %373 = vmatpush1.msra.mxu0 0.0
          %374 = vmatprep.subr.mxu0 0.0
          %375 = vmatpush1.msra.mxu0 0.0
          %376 = vmatprep.subr.mxu0 0.0
          %377 = vmatpush1.msra.mxu0 0.0
          %378 = vmatprep.subr.mxu0 0.0
          %379 = vmatpush1.msra.mxu0 0.0
          %380 = vmatprep.subr.mxu0 0.0
          %381 = vmatpush1.msra.mxu0 0.0
          %382 = vmatprep.subr.mxu0 0.0
          %383 = vmatpush1.msra.mxu0 0.0
          %384 = vmatprep.subr.mxu0 0.0
          %385 = vmatpush1.msra.mxu0 0.0
          %386 = vmatprep.subr.mxu0 0.0
          %387 = vmatpush1.msra.mxu0 0.0
          %388 = vmatprep.subr.mxu0 0.0
          %389 = vmatpush1.msra.mxu0 0.0
          %390 = vmatprep.subr.mxu0 0.0
          %391 = vmatpush1.msra.mxu0 0.0
          %392 = vmatprep.mubr.f32.mxu0 0.0
          %393 = vmatmul.mubr.f32.gmra.mrb[0].mxu0 %v281
          %v394 = vpop.f32.mrb[0].mxu0
          %v395 = vadd.f32 0.0, %v394
          %v396 = vpop.f32.mrb[0].mxu0
          %397 = vmatprep.mubr.f32.mxu0 0.0
          %398 = vmatmul.mubr.f32.gmra.mrb[0].mxu0 %v284
          %v399 = vpop.f32.mrb[0].mxu0
          %v400 = vadd.f32 0.0, %v399
          %v401 = vpop.f32.mrb[0].mxu0
          %402 = vmatprep.mubr.f32.mxu0 0.0
          %403 = vmatmul.mubr.f32.gmra.mrb[0].mxu0 %v287
          %v404 = vpop.f32.mrb[0].mxu0
          %v405 = vadd.f32 0.0, %v404
          %v406 = vpop.f32.mrb[0].mxu0
          %407 = vmatprep.mubr.f32.mxu0 0.0
          %408 = vmatmul.mubr.f32.gmra.mrb[0].mxu0 %v290
          %v409 = vpop.f32.mrb[0].mxu0
          %v410 = vadd.f32 0.0, %v409
          %v411 = vpop.f32.mrb[0].mxu0
          %412 = vmatprep.mubr.f32.mxu0 0.0
          %413 = vmatmul.mubr.f32.gmra.mrb[0].mxu0 %v293
          %v414 = vpop.f32.mrb[0].mxu0
          %v415 = vadd.f32 0.0, %v414
          %v416 = vpop.f32.mrb[0].mxu0
          %417 = vmatprep.mubr.f32.mxu0 0.0
          %418 = vmatmul.mubr.f32.gmra.mrb[0].mxu0 %v296
          %v419 = vpop.f32.mrb[0].mxu0
          %v420 = vadd.f32 0.0, %v419
          %v421 = vpop.f32.mrb[0].mxu0
          %422 = vmatprep.mubr.f32.mxu0 0.0
          %423 = vmatmul.mubr.f32.gmra.mrb[0].mxu0 %v299
          %v424 = vpop.f32.mrb[0].mxu0
          %v425 = vadd.f32 0.0, %v424
          %v426 = vpop.f32.mrb[0].mxu0
          %427 = vmatprep.mubr.f32.mxu0 0.0
          %428 = vmatmul.mubr.f32.gmra.mrb[0].mxu0 %v302
          %v429 = vpop.f32.mrb[0].mxu0
          %v430 = vadd.f32 0.0, %v429
          %v431 = vpop.f32.mrb[0].mxu0
          %432 = vmatprep.mubr.f32.mxu0 0.0
          %433 = vmatmul.mubr.f32.gmra.mrb[0].mxu0 %v305
          %v434 = vpop.f32.mrb[0].mxu0
          %v435 = vadd.f32 0.0, %v434
          %v436 = vpop.f32.mrb[0].mxu0
          %437 = vmatprep.mubr.f32.mxu0 0.0
          %438 = vmatmul.mubr.f32.gmra.mrb[0].mxu0 %v308
          %v439 = vpop.f32.mrb[0].mxu0
          %v440 = vadd.f32 0.0, %v439
          %v441 = vpop.f32.mrb[0].mxu0
          %442 = vmatprep.mubr.f32.mxu0 0.0
          %443 = vmatmul.mubr.f32.gmra.mrb[0].mxu0 %v311
          %v444 = vpop.f32.mrb[0].mxu0
          %v445 = vadd.f32 0.0, %v444
          %v446 = vpop.f32.mrb[0].mxu0
          %447 = vmatprep.mubr.f32.mxu0 0.0
          %448 = vmatmul.mubr.f32.gmra.mrb[0].mxu0 %v314
          %v449 = vpop.f32.mrb[0].mxu0
          %v450 = vadd.f32 0.0, %v449
          %v451 = vpop.f32.mrb[0].mxu0
          %452 = vmatprep.mubr.f32.mxu0 0.0
          %453 = vmatmul.mubr.f32.gmra.mrb[0].mxu0 %v317
          %v454 = vpop.f32.mrb[0].mxu0
          %v455 = vadd.f32 0.0, %v454
          %v456 = vpop.f32.mrb[0].mxu0
          %457 = vmatprep.mubr.f32.mxu0 0.0
          %458 = vmatmul.mubr.f32.gmra.mrb[0].mxu0 %v320
          %v459 = vpop.f32.mrb[0].mxu0
          %v460 = vadd.f32 0.0, %v459
          %v461 = vpop.f32.mrb[0].mxu0
          %462 = vmatprep.mubr.f32.mxu0 0.0
          %463 = vmatmul.mubr.f32.gmra.mrb[0].mxu0 %v323
          %v464 = vpop.f32.mrb[0].mxu0
          %v465 = vadd.f32 0.0, %v464
          %v466 = vpop.f32.mrb[0].mxu0
          %467 = vmatprep.mubr.f32.mxu0 0.0
          %468 = vmatmul.mubr.f32.gmra.mrb[0].mxu0 %v326
          %v469 = vpop.f32.mrb[0].mxu0
          %v470 = vadd.f32 0.0, %v469
          %v471 = vpop.f32.mrb[0].mxu0
          %472 = vdwg.mxu0
          %v473 = vmul.f32 %v395, 0.125
          %v474 = vmul.f32 %v400, 0.125
          %v475 = vmul.f32 %v405, 0.125
          %v476 = vmul.f32 %v410, 0.125
          %v477 = vmul.f32 %v415, 0.125
          %v478 = vmul.f32 %v420, 0.125
          %v479 = vmul.f32 %v425, 0.125
          %v480 = vmul.f32 %v430, 0.125
          %v481 = vmul.f32 %v435, 0.125
          %v482 = vmul.f32 %v440, 0.125
          %v483 = vmul.f32 %v445, 0.125
          %v484 = vmul.f32 %v450, 0.125
          %v485 = vmul.f32 %v455, 0.125
          %v486 = vmul.f32 %v460, 0.125
          %v487 = vmul.f32 %v465, 0.125
          %v488 = vmul.f32 %v470, 0.125
          %489 = vst [vmem:[#allocation2] sm:$0xff] %v473
          %490 = vst [vmem:[#allocation2 + $0x8] sm:$0xff] %v474
          %491 = vst [vmem:[#allocation2 + $0x10] sm:$0xff] %v475
          %492 = vst [vmem:[#allocation2 + $0x18] sm:$0xff] %v476
          %493 = vst [vmem:[#allocation2 + $0x20] sm:$0xff] %v477
          %494 = vst [vmem:[#allocation2 + $0x28] sm:$0xff] %v478
          %495 = vst [vmem:[#allocation2 + $0x30] sm:$0xff] %v479
          %496 = vst [vmem:[#allocation2 + $0x38] sm:$0xff] %v480
          %497 = vst [vmem:[#allocation2 + $0x40] sm:$0xff] %v481
          %498 = vst [vmem:[#allocation2 + $0x48] sm:$0xff] %v482
          %499 = vst [vmem:[#allocation2 + $0x50] sm:$0xff] %v483
          %500 = vst [vmem:[#allocation2 + $0x58] sm:$0xff] %v484
          %501 = vst [vmem:[#allocation2 + $0x60] sm:$0xff] %v485
          %502 = vst [vmem:[#allocation2 + $0x68] sm:$0xff] %v486
          %503 = vst [vmem:[#allocation2 + $0x70] sm:$0xff] %v487
          %504 = vst [vmem:[#allocation2 + $0x78] sm:$0xff] %v488
          %vm505 = vcmask 7168
          %506 = vst.msk [vmem:[#allocation5] sm:$0xff] %vm505, -1e+30
          %507 = vst.msk [vmem:[#allocation5 + $0x8] sm:$0xff] %vm505, -1e+30
          %508 = vst.msk [vmem:[#allocation5 + $0x10] sm:$0xff] %vm505, -1e+30
          %509 = vst.msk [vmem:[#allocation5 + $0x18] sm:$0xff] %vm505, -1e+30
          %510 = vst.msk [vmem:[#allocation5 + $0x20] sm:$0xff] %vm505, -1e+30
          %511 = vst.msk [vmem:[#allocation5 + $0x28] sm:$0xff] %vm505, -1e+30
          %512 = vst.msk [vmem:[#allocation5 + $0x30] sm:$0xff] %vm505, -1e+30
          %513 = vst.msk [vmem:[#allocation5 + $0x38] sm:$0xff] %vm505, -1e+30
          %514 = vst.msk [vmem:[#allocation5 + $0x40] sm:$0xff] %vm505, -1e+30
          %515 = vst.msk [vmem:[#allocation5 + $0x48] sm:$0xff] %vm505, -1e+30
          %516 = vst.msk [vmem:[#allocation5 + $0x50] sm:$0xff] %vm505, -1e+30
          %517 = vst.msk [vmem:[#allocation5 + $0x58] sm:$0xff] %vm505, -1e+30
          %518 = vst.msk [vmem:[#allocation5 + $0x60] sm:$0xff] %vm505, -1e+30
          %519 = vst.msk [vmem:[#allocation5 + $0x68] sm:$0xff] %vm505, -1e+30
          %520 = vst.msk [vmem:[#allocation5 + $0x70] sm:$0xff] %vm505, -1e+30
          %521 = vst.msk [vmem:[#allocation5 + $0x78] sm:$0xff] %vm505, -1e+30
          %522 = vst.msk [vmem:[#allocation6] sm:$0xff] %vm505, 0.0
          %523 = vst.msk [vmem:[#allocation6 + $0x8] sm:$0xff] %vm505, 0.0
          %524 = vst.msk [vmem:[#allocation6 + $0x10] sm:$0xff] %vm505, 0.0
          %525 = vst.msk [vmem:[#allocation6 + $0x18] sm:$0xff] %vm505, 0.0
          %526 = vst.msk [vmem:[#allocation6 + $0x20] sm:$0xff] %vm505, 0.0
          %527 = vst.msk [vmem:[#allocation6 + $0x28] sm:$0xff] %vm505, 0.0
          %528 = vst.msk [vmem:[#allocation6 + $0x30] sm:$0xff] %vm505, 0.0
          %529 = vst.msk [vmem:[#allocation6 + $0x38] sm:$0xff] %vm505, 0.0
          %530 = vst.msk [vmem:[#allocation6 + $0x40] sm:$0xff] %vm505, 0.0
          %531 = vst.msk [vmem:[#allocation6 + $0x48] sm:$0xff] %vm505, 0.0
          %532 = vst.msk [vmem:[#allocation6 + $0x50] sm:$0xff] %vm505, 0.0
          %533 = vst.msk [vmem:[#allocation6 + $0x58] sm:$0xff] %vm505, 0.0
          %534 = vst.msk [vmem:[#allocation6 + $0x60] sm:$0xff] %vm505, 0.0
          %535 = vst.msk [vmem:[#allocation6 + $0x68] sm:$0xff] %vm505, 0.0
          %536 = vst.msk [vmem:[#allocation6 + $0x70] sm:$0xff] %vm505, 0.0
          %537 = vst.msk [vmem:[#allocation6 + $0x78] sm:$0xff] %vm505, 0.0
          %538 = vst [vmem:[#allocation7] sm:$0xff] 0.0
          %539 = vst [vmem:[#allocation7 + $0x8] sm:$0xff] 0.0
          %540 = vst [vmem:[#allocation7 + $0x10] sm:$0xff] 0.0
          %541 = vst [vmem:[#allocation7 + $0x18] sm:$0xff] 0.0
          %542 = vst [vmem:[#allocation7 + $0x20] sm:$0xff] 0.0
          %543 = vst [vmem:[#allocation7 + $0x28] sm:$0xff] 0.0
          %544 = vst [vmem:[#allocation7 + $0x30] sm:$0xff] 0.0
          %545 = vst [vmem:[#allocation7 + $0x38] sm:$0xff] 0.0
          %546 = vst [vmem:[#allocation7 + $0x40] sm:$0xff] 0.0
          %547 = vst [vmem:[#allocation7 + $0x48] sm:$0xff] 0.0
          %548 = vst [vmem:[#allocation7 + $0x50] sm:$0xff] 0.0
          %549 = vst [vmem:[#allocation7 + $0x58] sm:$0xff] 0.0
          %550 = vst [vmem:[#allocation7 + $0x60] sm:$0xff] 0.0
          %551 = vst [vmem:[#allocation7 + $0x68] sm:$0xff] 0.0
          %552 = vst [vmem:[#allocation7 + $0x70] sm:$0xff] 0.0
          %553 = vst [vmem:[#allocation7 + $0x78] sm:$0xff] 0.0
        $region40: #{tpu_custom_call.1} parent=35 // pred_fallthru
          _
        %p554 = scmp.lt.s32.totalorder %s250, %s249
        // Predicated region
        $region41: #{tpu_custom_call.1} parent=35 // pred_check
          %p555 = pneg %p554
        $region42: #{tpu_custom_call.1} parent=35 // pred_check_branch
          %557 = sbr.rel (%p555) target = $region44
        $region43: #{tpu_custom_call.1} parent=35 // pred_region
          %s558 = smul.u32 %s250, 128
          %s559 = scalar_lea.vmem [#allocation3], %s558
          %v560 = vld [vmem:[%s559] sm:$0xff]
          %v561 = vld [vmem:[%s559 + $0x8] sm:$0xff]
          %v562 = vld [vmem:[%s559 + $0x10] sm:$0xff]
          %v563 = vld [vmem:[%s559 + $0x18] sm:$0xff]
          %v564 = vld [vmem:[%s559 + $0x20] sm:$0xff]
          %v565 = vld [vmem:[%s559 + $0x28] sm:$0xff]
          %v566 = vld [vmem:[%s559 + $0x30] sm:$0xff]
          %v567 = vld [vmem:[%s559 + $0x38] sm:$0xff]
          %v568 = vld [vmem:[%s559 + $0x40] sm:$0xff]
          %v569 = vld [vmem:[%s559 + $0x48] sm:$0xff]
          %v570 = vld [vmem:[%s559 + $0x50] sm:$0xff]
          %v571 = vld [vmem:[%s559 + $0x58] sm:$0xff]
          %v572 = vld [vmem:[%s559 + $0x60] sm:$0xff]
          %v573 = vld [vmem:[%s559 + $0x68] sm:$0xff]
          %v574 = vld [vmem:[%s559 + $0x70] sm:$0xff]
          %v575 = vld [vmem:[%s559 + $0x78] sm:$0xff]
          %v576 = vld [vmem:[#allocation2] sm:$0xff]
          %v577 = vld [vmem:[#allocation2 + $0x8] sm:$0xff]
          %v578 = vld [vmem:[#allocation2 + $0x10] sm:$0xff]
          %v579 = vld [vmem:[#allocation2 + $0x18] sm:$0xff]
          %v580 = vld [vmem:[#allocation2 + $0x20] sm:$0xff]
          %v581 = vld [vmem:[#allocation2 + $0x28] sm:$0xff]
          %v582 = vld [vmem:[#allocation2 + $0x30] sm:$0xff]
          %v583 = vld [vmem:[#allocation2 + $0x38] sm:$0xff]
          %v584 = vld [vmem:[#allocation2 + $0x40] sm:$0xff]
          %v585 = vld [vmem:[#allocation2 + $0x48] sm:$0xff]
          %v586 = vld [vmem:[#allocation2 + $0x50] sm:$0xff]
          %v587 = vld [vmem:[#allocation2 + $0x58] sm:$0xff]
          %v588 = vld [vmem:[#allocation2 + $0x60] sm:$0xff]
          %v589 = vld [vmem:[#allocation2 + $0x68] sm:$0xff]
          %v590 = vld [vmem:[#allocation2 + $0x70] sm:$0xff]
          %v591 = vld [vmem:[#allocation2 + $0x78] sm:$0xff]
          %592 = vmatprep.subr.mxu0 0.0
          %593 = vmatpush1.xpose.msra.mxu0 %v560
          %594 = vmatprep.subr.mxu0 0.0
          %595 = vmatpush1.xpose.msra.mxu0 %v561
          %596 = vmatprep.subr.mxu0 0.0
          %597 = vmatpush1.xpose.msra.mxu0 %v562
          %598 = vmatprep.subr.mxu0 0.0
          %599 = vmatpush1.xpose.msra.mxu0 %v563
          %600 = vmatprep.subr.mxu0 0.0
          %601 = vmatpush1.xpose.msra.mxu0 %v564
          %602 = vmatprep.subr.mxu0 0.0
          %603 = vmatpush1.xpose.msra.mxu0 %v565
          %604 = vmatprep.subr.mxu0 0.0
          %605 = vmatpush1.xpose.msra.mxu0 %v566
          %606 = vmatprep.subr.mxu0 0.0
          %607 = vmatpush1.xpose.msra.mxu0 %v567
          %608 = vmatprep.subr.mxu0 0.0
          %609 = vmatpush1.xpose.msra.mxu0 %v568
          %610 = vmatprep.subr.mxu0 0.0
          %611 = vmatpush1.xpose.msra.mxu0 %v569
          %612 = vmatprep.subr.mxu0 0.0
          %613 = vmatpush1.xpose.msra.mxu0 %v570
          %614 = vmatprep.subr.mxu0 0.0
          %615 = vmatpush1.xpose.msra.mxu0 %v571
          %616 = vmatprep.subr.mxu0 0.0
          %617 = vmatpush1.xpose.msra.mxu0 %v572
          %618 = vmatprep.subr.mxu0 0.0
          %619 = vmatpush1.xpose.msra.mxu0 %v573
          %620 = vmatprep.subr.mxu0 0.0
          %621 = vmatpush1.xpose.msra.mxu0 %v574
          %622 = vmatprep.subr.mxu0 0.0
          %623 = vmatpush1.xpose.msra.mxu0 %v575
          %624 = vmatprep.subr.mxu0 0.0
          %625 = vmatpush1.xpose.msra.mxu0 0.0
          %626 = vmatprep.subr.mxu0 0.0
          %627 = vmatpush1.xpose.msra.mxu0 0.0
          %628 = vmatprep.subr.mxu0 0.0
          %629 = vmatpush1.xpose.msra.mxu0 0.0
          %630 = vmatprep.subr.mxu0 0.0
          %631 = vmatpush1.xpose.msra.mxu0 0.0
          %632 = vmatprep.subr.mxu0 0.0
          %633 = vmatpush1.xpose.msra.mxu0 0.0
          %634 = vmatprep.subr.mxu0 0.0
          %635 = vmatpush1.xpose.msra.mxu0 0.0
          %636 = vmatprep.subr.mxu0 0.0
          %637 = vmatpush1.xpose.msra.mxu0 0.0
          %638 = vmatprep.subr.mxu0 0.0
          %639 = vmatpush1.xpose.msra.mxu0 0.0
          %640 = vmatprep.subr.mxu0 0.0
          %641 = vmatpush1.xpose.msra.mxu0 0.0
          %642 = vmatprep.subr.mxu0 0.0
          %643 = vmatpush1.xpose.msra.mxu0 0.0
          %644 = vmatprep.subr.mxu0 0.0
          %645 = vmatpush1.xpose.msra.mxu0 0.0
          %646 = vmatprep.subr.mxu0 0.0
          %647 = vmatpush1.xpose.msra.mxu0 0.0
          %648 = vmatprep.subr.mxu0 0.0
          %649 = vmatpush1.xpose.msra.mxu0 0.0
          %650 = vmatprep.subr.mxu0 0.0
          %651 = vmatpush1.xpose.msra.mxu0 0.0
          %652 = vmatprep.subr.mxu0 0.0
          %653 = vmatpush1.xpose.msra.mxu0 0.0
          %654 = vmatprep.subr.mxu0 0.0
          %655 = vmatpush1.xpose.msra.mxu0 0.0
          %656 = vmatprep.mubr.f32.mxu0 0.0
          %657 = vmatmul.mubr.f32.gmra.mrb[0].mxu0 %v576
          %v658 = vpop.f32.mrb[0].mxu0
          %v659 = vadd.f32 0.0, %v658
          %v660 = vpop.f32.mrb[0].mxu0
          %661 = vmatprep.mubr.f32.mxu0 0.0
          %662 = vmatmul.mubr.f32.gmra.mrb[0].mxu0 %v577
          %v663 = vpop.f32.mrb[0].mxu0
          %v664 = vadd.f32 0.0, %v663
          %v665 = vpop.f32.mrb[0].mxu0
          %666 = vmatprep.mubr.f32.mxu0 0.0
          %667 = vmatmul.mubr.f32.gmra.mrb[0].mxu0 %v578
          %v668 = vpop.f32.mrb[0].mxu0
          %v669 = vadd.f32 0.0, %v668
          %v670 = vpop.f32.mrb[0].mxu0
          %671 = vmatprep.mubr.f32.mxu0 0.0
          %672 = vmatmul.mubr.f32.gmra.mrb[0].mxu0 %v579
          %v673 = vpop.f32.mrb[0].mxu0
          %v674 = vadd.f32 0.0, %v673
          %v675 = vpop.f32.mrb[0].mxu0
          %676 = vmatprep.mubr.f32.mxu0 0.0
          %677 = vmatmul.mubr.f32.gmra.mrb[0].mxu0 %v580
          %v678 = vpop.f32.mrb[0].mxu0
          %v679 = vadd.f32 0.0, %v678
          %v680 = vpop.f32.mrb[0].mxu0
          %681 = vmatprep.mubr.f32.mxu0 0.0
          %682 = vmatmul.mubr.f32.gmra.mrb[0].mxu0 %v581
          %v683 = vpop.f32.mrb[0].mxu0
          %v684 = vadd.f32 0.0, %v683
          %v685 = vpop.f32.mrb[0].mxu0
          %686 = vmatprep.mubr.f32.mxu0 0.0
          %687 = vmatmul.mubr.f32.gmra.mrb[0].mxu0 %v582
          %v688 = vpop.f32.mrb[0].mxu0
          %v689 = vadd.f32 0.0, %v688
          %v690 = vpop.f32.mrb[0].mxu0
          %691 = vmatprep.mubr.f32.mxu0 0.0
          %692 = vmatmul.mubr.f32.gmra.mrb[0].mxu0 %v583
          %v693 = vpop.f32.mrb[0].mxu0
          %v694 = vadd.f32 0.0, %v693
          %v695 = vpop.f32.mrb[0].mxu0
          %696 = vmatprep.mubr.f32.mxu0 0.0
          %697 = vmatmul.mubr.f32.gmra.mrb[0].mxu0 %v584
          %v698 = vpop.f32.mrb[0].mxu0
          %v699 = vadd.f32 0.0, %v698
          %v700 = vpop.f32.mrb[0].mxu0
          %701 = vmatprep.mubr.f32.mxu0 0.0
          %702 = vmatmul.mubr.f32.gmra.mrb[0].mxu0 %v585
          %v703 = vpop.f32.mrb[0].mxu0
          %v704 = vadd.f32 0.0, %v703
          %v705 = vpop.f32.mrb[0].mxu0
          %706 = vmatprep.mubr.f32.mxu0 0.0
          %707 = vmatmul.mubr.f32.gmra.mrb[0].mxu0 %v586
          %v708 = vpop.f32.mrb[0].mxu0
          %v709 = vadd.f32 0.0, %v708
          %v710 = vpop.f32.mrb[0].mxu0
          %711 = vmatprep.mubr.f32.mxu0 0.0
          %712 = vmatmul.mubr.f32.gmra.mrb[0].mxu0 %v587
          %v713 = vpop.f32.mrb[0].mxu0
          %v714 = vadd.f32 0.0, %v713
          %v715 = vpop.f32.mrb[0].mxu0
          %716 = vmatprep.mubr.f32.mxu0 0.0
          %717 = vmatmul.mubr.f32.gmra.mrb[0].mxu0 %v588
          %v718 = vpop.f32.mrb[0].mxu0
          %v719 = vadd.f32 0.0, %v718
          %v720 = vpop.f32.mrb[0].mxu0
          %721 = vmatprep.mubr.f32.mxu0 0.0
          %722 = vmatmul.mubr.f32.gmra.mrb[0].mxu0 %v589
          %v723 = vpop.f32.mrb[0].mxu0
          %v724 = vadd.f32 0.0, %v723
          %v725 = vpop.f32.mrb[0].mxu0
          %726 = vmatprep.mubr.f32.mxu0 0.0
          %727 = vmatmul.mubr.f32.gmra.mrb[0].mxu0 %v590
          %v728 = vpop.f32.mrb[0].mxu0
          %v729 = vadd.f32 0.0, %v728
          %v730 = vpop.f32.mrb[0].mxu0
          %731 = vmatprep.mubr.f32.mxu0 0.0
          %732 = vmatmul.mubr.f32.gmra.mrb[0].mxu0 %v591
          %v733 = vpop.f32.mrb[0].mxu0
          %v734 = vadd.f32 0.0, %v733
          %v735 = vpop.f32.mrb[0].mxu0
          %736 = vdwg.mxu0
          %s737 = scalar_lea.vmem [#allocation4], %s558
          %v738 = vld [vmem:[%s737] sm:$0xff]
          %v739 = vld [vmem:[%s737 + $0x8] sm:$0xff]
          %v740 = vld [vmem:[%s737 + $0x10] sm:$0xff]
          %v741 = vld [vmem:[%s737 + $0x18] sm:$0xff]
          %v742 = vld [vmem:[%s737 + $0x20] sm:$0xff]
          %v743 = vld [vmem:[%s737 + $0x28] sm:$0xff]
          %v744 = vld [vmem:[%s737 + $0x30] sm:$0xff]
          %v745 = vld [vmem:[%s737 + $0x38] sm:$0xff]
          %v746 = vld [vmem:[%s737 + $0x40] sm:$0xff]
          %v747 = vld [vmem:[%s737 + $0x48] sm:$0xff]
          %v748 = vld [vmem:[%s737 + $0x50] sm:$0xff]
          %v749 = vld [vmem:[%s737 + $0x58] sm:$0xff]
          %v750 = vld [vmem:[%s737 + $0x60] sm:$0xff]
          %v751 = vld [vmem:[%s737 + $0x68] sm:$0xff]
          %v752 = vld [vmem:[%s737 + $0x70] sm:$0xff]
          %v753 = vld [vmem:[%s737 + $0x78] sm:$0xff]
          %v754 = vld [vmem:[#allocation5] sm:$0xff]
          %v755 = vld [vmem:[#allocation5 + $0x8] sm:$0xff]
          %v756 = vld [vmem:[#allocation5 + $0x10] sm:$0xff]
          %v757 = vld [vmem:[#allocation5 + $0x18] sm:$0xff]
          %v758 = vld [vmem:[#allocation5 + $0x20] sm:$0xff]
          %v759 = vld [vmem:[#allocation5 + $0x28] sm:$0xff]
          %v760 = vld [vmem:[#allocation5 + $0x30] sm:$0xff]
          %v761 = vld [vmem:[#allocation5 + $0x38] sm:$0xff]
          %v762 = vld [vmem:[#allocation5 + $0x40] sm:$0xff]
          %v763 = vld [vmem:[#allocation5 + $0x48] sm:$0xff]
          %v764 = vld [vmem:[#allocation5 + $0x50] sm:$0xff]
          %v765 = vld [vmem:[#allocation5 + $0x58] sm:$0xff]
          %v766 = vld [vmem:[#allocation5 + $0x60] sm:$0xff]
          %v767 = vld [vmem:[#allocation5 + $0x68] sm:$0xff]
          %v768 = vld [vmem:[#allocation5 + $0x70] sm:$0xff]
          %v769 = vld [vmem:[#allocation5 + $0x78] sm:$0xff]
          %770 = vmax.xlane.f32.xlu0 %v659
          %v771 = vpop.xlane.xlu0 %770
          %772 = vmax.xlane.f32.xlu0 %v664
          %v773 = vpop.xlane.xlu0 %772
          %774 = vmax.xlane.f32.xlu0 %v669
          %v775 = vpop.xlane.xlu0 %774
          %776 = vmax.xlane.f32.xlu0 %v674
          %v777 = vpop.xlane.xlu0 %776
          %778 = vmax.xlane.f32.xlu0 %v679
          %v779 = vpop.xlane.xlu0 %778
          %780 = vmax.xlane.f32.xlu0 %v684
          %v781 = vpop.xlane.xlu0 %780
          %782 = vmax.xlane.f32.xlu0 %v689
          %v783 = vpop.xlane.xlu0 %782
          %784 = vmax.xlane.f32.xlu0 %v694
          %v785 = vpop.xlane.xlu0 %784
          %786 = vmax.xlane.f32.xlu0 %v699
          %v787 = vpop.xlane.xlu0 %786
          %788 = vmax.xlane.f32.xlu0 %v704
          %v789 = vpop.xlane.xlu0 %788
          %790 = vmax.xlane.f32.xlu0 %v709
          %v791 = vpop.xlane.xlu0 %790
          %792 = vmax.xlane.f32.xlu0 %v714
          %v793 = vpop.xlane.xlu0 %792
          %794 = vmax.xlane.f32.xlu0 %v719
          %v795 = vpop.xlane.xlu0 %794
          %796 = vmax.xlane.f32.xlu0 %v724
          %v797 = vpop.xlane.xlu0 %796
          %798 = vmax.xlane.f32.xlu0 %v729
          %v799 = vpop.xlane.xlu0 %798
          %800 = vmax.xlane.f32.xlu0 %v734
          %v801 = vpop.xlane.xlu0 %800
          %v802 = vmax.f32 %v754, %v771
          %v803 = vmax.f32 %v755, %v773
          %v804 = vmax.f32 %v756, %v775
          %v805 = vmax.f32 %v757, %v777
          %v806 = vmax.f32 %v758, %v779
          %v807 = vmax.f32 %v759, %v781
          %v808 = vmax.f32 %v760, %v783
          %v809 = vmax.f32 %v761, %v785
          %v810 = vmax.f32 %v762, %v787
          %v811 = vmax.f32 %v763, %v789
          %v812 = vmax.f32 %v764, %v791
          %v813 = vmax.f32 %v765, %v793
          %v814 = vmax.f32 %v766, %v795
          %v815 = vmax.f32 %v767, %v797
          %v816 = vmax.f32 %v768, %v799
          %v817 = vmax.f32 %v769, %v801
          %v818 = vsub.f32 %v754, %v802
          %v819 = vsub.f32 %v755, %v803
          %v820 = vsub.f32 %v756, %v804
          %v821 = vsub.f32 %v757, %v805
          %v822 = vsub.f32 %v758, %v806
          %v823 = vsub.f32 %v759, %v807
          %v824 = vsub.f32 %v760, %v808
          %v825 = vsub.f32 %v761, %v809
          %v826 = vsub.f32 %v762, %v810
          %v827 = vsub.f32 %v763, %v811
          %v828 = vsub.f32 %v764, %v812
          %v829 = vsub.f32 %v765, %v813
          %v830 = vsub.f32 %v766, %v814
          %v831 = vsub.f32 %v767, %v815
          %v832 = vsub.f32 %v768, %v816
          %v833 = vsub.f32 %v769, %v817
          %v834 = vmul.f32 %v818, 1.442695
          %v835 = vpow.pop %v834
          %v836 = vmul.f32 %v819, 1.442695
          %v837 = vpow.pop %v836
          %v838 = vmul.f32 %v820, 1.442695
          %v839 = vpow.pop %v838
          %v840 = vmul.f32 %v821, 1.442695
          %v841 = vpow.pop %v840
          %v842 = vmul.f32 %v822, 1.442695
          %v843 = vpow.pop %v842
          %v844 = vmul.f32 %v823, 1.442695
          %v845 = vpow.pop %v844
          %v846 = vmul.f32 %v824, 1.442695
          %v847 = vpow.pop %v846
          %v848 = vmul.f32 %v825, 1.442695
          %v849 = vpow.pop %v848
          %v850 = vmul.f32 %v826, 1.442695
          %v851 = vpow.pop %v850
          %v852 = vmul.f32 %v827, 1.442695
          %v853 = vpow.pop %v852
          %v854 = vmul.f32 %v828, 1.442695
          %v855 = vpow.pop %v854
          %v856 = vmul.f32 %v829, 1.442695
          %v857 = vpow.pop %v856
          %v858 = vmul.f32 %v830, 1.442695
          %v859 = vpow.pop %v858
          %v860 = vmul.f32 %v831, 1.442695
          %v861 = vpow.pop %v860
          %v862 = vmul.f32 %v832, 1.442695
          %v863 = vpow.pop %v862
          %v864 = vmul.f32 %v833, 1.442695
          %v865 = vpow.pop %v864
          %867 = vset.pattern.permute.xlu0 0
          %868 = vperm.xlu0 %867, %v802
          %v869 = vpop.permute.xlu0 %868
          %872 = vset.pattern.permute.xlu0 0
          %873 = vperm.xlu0 %872, %v803
          %v874 = vpop.permute.xlu0 %873
          %877 = vset.pattern.permute.xlu0 0
          %878 = vperm.xlu0 %877, %v804
          %v879 = vpop.permute.xlu0 %878
          %882 = vset.pattern.permute.xlu0 0
          %883 = vperm.xlu0 %882, %v805
          %v884 = vpop.permute.xlu0 %883
          %887 = vset.pattern.permute.xlu0 0
          %888 = vperm.xlu0 %887, %v806
          %v889 = vpop.permute.xlu0 %888
          %892 = vset.pattern.permute.xlu0 0
          %893 = vperm.xlu0 %892, %v807
          %v894 = vpop.permute.xlu0 %893
          %897 = vset.pattern.permute.xlu0 0
          %898 = vperm.xlu0 %897, %v808
          %v899 = vpop.permute.xlu0 %898
          %902 = vset.pattern.permute.xlu0 0
          %903 = vperm.xlu0 %902, %v809
          %v904 = vpop.permute.xlu0 %903
          %907 = vset.pattern.permute.xlu0 0
          %908 = vperm.xlu0 %907, %v810
          %v909 = vpop.permute.xlu0 %908
          %912 = vset.pattern.permute.xlu0 0
          %913 = vperm.xlu0 %912, %v811
          %v914 = vpop.permute.xlu0 %913
          %917 = vset.pattern.permute.xlu0 0
          %918 = vperm.xlu0 %917, %v812
          %v919 = vpop.permute.xlu0 %918
          %922 = vset.pattern.permute.xlu0 0
          %923 = vperm.xlu0 %922, %v813
          %v924 = vpop.permute.xlu0 %923
          %927 = vset.pattern.permute.xlu0 0
          %928 = vperm.xlu0 %927, %v814
          %v929 = vpop.permute.xlu0 %928
          %932 = vset.pattern.permute.xlu0 0
          %933 = vperm.xlu0 %932, %v815
          %v934 = vpop.permute.xlu0 %933
          %937 = vset.pattern.permute.xlu0 0
          %938 = vperm.xlu0 %937, %v816
          %v939 = vpop.permute.xlu0 %938
          %942 = vset.pattern.permute.xlu0 0
          %943 = vperm.xlu0 %942, %v817
          %v944 = vpop.permute.xlu0 %943
          %v946 = vsub.f32 %v659, %v869
          %v947 = vsub.f32 %v664, %v874
          %v948 = vsub.f32 %v669, %v879
          %v949 = vsub.f32 %v674, %v884
          %v950 = vsub.f32 %v679, %v889
          %v951 = vsub.f32 %v684, %v894
          %v952 = vsub.f32 %v689, %v899
          %v953 = vsub.f32 %v694, %v904
          %v954 = vsub.f32 %v699, %v909
          %v955 = vsub.f32 %v704, %v914
          %v956 = vsub.f32 %v709, %v919
          %v957 = vsub.f32 %v714, %v924
          %v958 = vsub.f32 %v719, %v929
          %v959 = vsub.f32 %v724, %v934
          %v960 = vsub.f32 %v729, %v939
          %v961 = vsub.f32 %v734, %v944
          %v962 = vmul.f32 %v946, 1.442695
          %v963 = vpow.pop %v962
          %v964 = vmul.f32 %v947, 1.442695
          %v965 = vpow.pop %v964
          %v966 = vmul.f32 %v948, 1.442695
          %v967 = vpow.pop %v966
          %v968 = vmul.f32 %v949, 1.442695
          %v969 = vpow.pop %v968
          %v970 = vmul.f32 %v950, 1.442695
          %v971 = vpow.pop %v970
          %v972 = vmul.f32 %v951, 1.442695
          %v973 = vpow.pop %v972
          %v974 = vmul.f32 %v952, 1.442695
          %v975 = vpow.pop %v974
          %v976 = vmul.f32 %v953, 1.442695
          %v977 = vpow.pop %v976
          %v978 = vmul.f32 %v954, 1.442695
          %v979 = vpow.pop %v978
          %v980 = vmul.f32 %v955, 1.442695
          %v981 = vpow.pop %v980
          %v982 = vmul.f32 %v956, 1.442695
          %v983 = vpow.pop %v982
          %v984 = vmul.f32 %v957, 1.442695
          %v985 = vpow.pop %v984
          %v986 = vmul.f32 %v958, 1.442695
          %v987 = vpow.pop %v986
          %v988 = vmul.f32 %v959, 1.442695
          %v989 = vpow.pop %v988
          %v990 = vmul.f32 %v960, 1.442695
          %v991 = vpow.pop %v990
          %v992 = vmul.f32 %v961, 1.442695
          %v993 = vpow.pop %v992
          %v994 = vld [vmem:[#allocation6] sm:$0xff]
          %v995 = vld [vmem:[#allocation6 + $0x8] sm:$0xff]
          %v996 = vld [vmem:[#allocation6 + $0x10] sm:$0xff]
          %v997 = vld [vmem:[#allocation6 + $0x18] sm:$0xff]
          %v998 = vld [vmem:[#allocation6 + $0x20] sm:$0xff]
          %v999 = vld [vmem:[#allocation6 + $0x28] sm:$0xff]
          %v1000 = vld [vmem:[#allocation6 + $0x30] sm:$0xff]
          %v1001 = vld [vmem:[#allocation6 + $0x38] sm:$0xff]
          %v1002 = vld [vmem:[#allocation6 + $0x40] sm:$0xff]
          %v1003 = vld [vmem:[#allocation6 + $0x48] sm:$0xff]
          %v1004 = vld [vmem:[#allocation6 + $0x50] sm:$0xff]
          %v1005 = vld [vmem:[#allocation6 + $0x58] sm:$0xff]
          %v1006 = vld [vmem:[#allocation6 + $0x60] sm:$0xff]
          %v1007 = vld [vmem:[#allocation6 + $0x68] sm:$0xff]
          %v1008 = vld [vmem:[#allocation6 + $0x70] sm:$0xff]
          %v1009 = vld [vmem:[#allocation6 + $0x78] sm:$0xff]
          %v1010 = vmul.f32 %v835, %v994
          %v1011 = vmul.f32 %v837, %v995
          %v1012 = vmul.f32 %v839, %v996
          %v1013 = vmul.f32 %v841, %v997
          %v1014 = vmul.f32 %v843, %v998
          %v1015 = vmul.f32 %v845, %v999
          %v1016 = vmul.f32 %v847, %v1000
          %v1017 = vmul.f32 %v849, %v1001
          %v1018 = vmul.f32 %v851, %v1002
          %v1019 = vmul.f32 %v853, %v1003
          %v1020 = vmul.f32 %v855, %v1004
          %v1021 = vmul.f32 %v857, %v1005
          %v1022 = vmul.f32 %v859, %v1006
          %v1023 = vmul.f32 %v861, %v1007
          %v1024 = vmul.f32 %v863, %v1008
          %v1025 = vmul.f32 %v865, %v1009
          %1026 = vadd.xlane.f32.xlu0 %v963
          %v1027 = vpop.xlane.xlu0 %1026
          %1028 = vadd.xlane.f32.xlu0 %v965
          %v1029 = vpop.xlane.xlu0 %1028
          %1030 = vadd.xlane.f32.xlu0 %v967
          %v1031 = vpop.xlane.xlu0 %1030
          %1032 = vadd.xlane.f32.xlu0 %v969
          %v1033 = vpop.xlane.xlu0 %1032
          %1034 = vadd.xlane.f32.xlu0 %v971
          %v1035 = vpop.xlane.xlu0 %1034
          %1036 = vadd.xlane.f32.xlu0 %v973
          %v1037 = vpop.xlane.xlu0 %1036
          %1038 = vadd.xlane.f32.xlu0 %v975
          %v1039 = vpop.xlane.xlu0 %1038
          %1040 = vadd.xlane.f32.xlu0 %v977
          %v1041 = vpop.xlane.xlu0 %1040
          %1042 = vadd.xlane.f32.xlu0 %v979
          %v1043 = vpop.xlane.xlu0 %1042
          %1044 = vadd.xlane.f32.xlu0 %v981
          %v1045 = vpop.xlane.xlu0 %1044
          %1046 = vadd.xlane.f32.xlu0 %v983
          %v1047 = vpop.xlane.xlu0 %1046
          %1048 = vadd.xlane.f32.xlu0 %v985
          %v1049 = vpop.xlane.xlu0 %1048
          %1050 = vadd.xlane.f32.xlu0 %v987
          %v1051 = vpop.xlane.xlu0 %1050
          %1052 = vadd.xlane.f32.xlu0 %v989
          %v1053 = vpop.xlane.xlu0 %1052
          %1054 = vadd.xlane.f32.xlu0 %v991
          %v1055 = vpop.xlane.xlu0 %1054
          %1056 = vadd.xlane.f32.xlu0 %v993
          %v1057 = vpop.xlane.xlu0 %1056
          %v1058 = vadd.f32 %v1010, %v1027
          %v1059 = vadd.f32 %v1011, %v1029
          %v1060 = vadd.f32 %v1012, %v1031
          %v1061 = vadd.f32 %v1013, %v1033
          %v1062 = vadd.f32 %v1014, %v1035
          %v1063 = vadd.f32 %v1015, %v1037
          %v1064 = vadd.f32 %v1016, %v1039
          %v1065 = vadd.f32 %v1017, %v1041
          %v1066 = vadd.f32 %v1018, %v1043
          %v1067 = vadd.f32 %v1019, %v1045
          %v1068 = vadd.f32 %v1020, %v1047
          %v1069 = vadd.f32 %v1021, %v1049
          %v1070 = vadd.f32 %v1022, %v1051
          %v1071 = vadd.f32 %v1023, %v1053
          %v1072 = vadd.f32 %v1024, %v1055
          %v1073 = vadd.f32 %v1025, %v1057
          %vm1074 = vcmask 7168
          %1075 = vst.msk [vmem:[#allocation6] sm:$0xff] %vm1074, %v1058
          %1076 = vst.msk [vmem:[#allocation6 + $0x8] sm:$0xff] %vm1074, %v1059
          %1077 = vst.msk [vmem:[#allocation6 + $0x10] sm:$0xff] %vm1074, %v1060
          %1078 = vst.msk [vmem:[#allocation6 + $0x18] sm:$0xff] %vm1074, %v1061
          %1079 = vst.msk [vmem:[#allocation6 + $0x20] sm:$0xff] %vm1074, %v1062
          %1080 = vst.msk [vmem:[#allocation6 + $0x28] sm:$0xff] %vm1074, %v1063
          %1081 = vst.msk [vmem:[#allocation6 + $0x30] sm:$0xff] %vm1074, %v1064
          %1082 = vst.msk [vmem:[#allocation6 + $0x38] sm:$0xff] %vm1074, %v1065
          %1083 = vst.msk [vmem:[#allocation6 + $0x40] sm:$0xff] %vm1074, %v1066
          %1084 = vst.msk [vmem:[#allocation6 + $0x48] sm:$0xff] %vm1074, %v1067
          %1085 = vst.msk [vmem:[#allocation6 + $0x50] sm:$0xff] %vm1074, %v1068
          %1086 = vst.msk [vmem:[#allocation6 + $0x58] sm:$0xff] %vm1074, %v1069
          %1087 = vst.msk [vmem:[#allocation6 + $0x60] sm:$0xff] %vm1074, %v1070
          %1088 = vst.msk [vmem:[#allocation6 + $0x68] sm:$0xff] %vm1074, %v1071
          %1089 = vst.msk [vmem:[#allocation6 + $0x70] sm:$0xff] %vm1074, %v1072
          %1090 = vst.msk [vmem:[#allocation6 + $0x78] sm:$0xff] %vm1074, %v1073
          %v1091 = vld [vmem:[#allocation7] sm:$0xff]
          %v1092 = vld [vmem:[#allocation7 + $0x8] sm:$0xff]
          %v1093 = vld [vmem:[#allocation7 + $0x10] sm:$0xff]
          %v1094 = vld [vmem:[#allocation7 + $0x18] sm:$0xff]
          %v1095 = vld [vmem:[#allocation7 + $0x20] sm:$0xff]
          %v1096 = vld [vmem:[#allocation7 + $0x28] sm:$0xff]
          %v1097 = vld [vmem:[#allocation7 + $0x30] sm:$0xff]
          %v1098 = vld [vmem:[#allocation7 + $0x38] sm:$0xff]
          %v1099 = vld [vmem:[#allocation7 + $0x40] sm:$0xff]
          %v1100 = vld [vmem:[#allocation7 + $0x48] sm:$0xff]
          %v1101 = vld [vmem:[#allocation7 + $0x50] sm:$0xff]
          %v1102 = vld [vmem:[#allocation7 + $0x58] sm:$0xff]
          %v1103 = vld [vmem:[#allocation7 + $0x60] sm:$0xff]
          %v1104 = vld [vmem:[#allocation7 + $0x68] sm:$0xff]
          %v1105 = vld [vmem:[#allocation7 + $0x70] sm:$0xff]
          %v1106 = vld [vmem:[#allocation7 + $0x78] sm:$0xff]
          %1108 = vset.pattern.permute.xlu0 0
          %1109 = vperm.xlu0 %1108, %v835
          %v1110 = vpop.permute.xlu0 %1109
          %1113 = vset.pattern.permute.xlu0 0
          %1114 = vperm.xlu0 %1113, %v837
          %v1115 = vpop.permute.xlu0 %1114
          %1118 = vset.pattern.permute.xlu0 0
          %1119 = vperm.xlu0 %1118, %v839
          %v1120 = vpop.permute.xlu0 %1119
          %1123 = vset.pattern.permute.xlu0 0
          %1124 = vperm.xlu0 %1123, %v841
          %v1125 = vpop.permute.xlu0 %1124
          %1128 = vset.pattern.permute.xlu0 0
          %1129 = vperm.xlu0 %1128, %v843
          %v1130 = vpop.permute.xlu0 %1129
          %1133 = vset.pattern.permute.xlu0 0
          %1134 = vperm.xlu0 %1133, %v845
          %v1135 = vpop.permute.xlu0 %1134
          %1138 = vset.pattern.permute.xlu0 0
          %1139 = vperm.xlu0 %1138, %v847
          %v1140 = vpop.permute.xlu0 %1139
          %1143 = vset.pattern.permute.xlu0 0
          %1144 = vperm.xlu0 %1143, %v849
          %v1145 = vpop.permute.xlu0 %1144
          %1148 = vset.pattern.permute.xlu0 0
          %1149 = vperm.xlu0 %1148, %v851
          %v1150 = vpop.permute.xlu0 %1149
          %1153 = vset.pattern.permute.xlu0 0
          %1154 = vperm.xlu0 %1153, %v853
          %v1155 = vpop.permute.xlu0 %1154
          %1158 = vset.pattern.permute.xlu0 0
          %1159 = vperm.xlu0 %1158, %v855
          %v1160 = vpop.permute.xlu0 %1159
          %1163 = vset.pattern.permute.xlu0 0
          %1164 = vperm.xlu0 %1163, %v857
          %v1165 = vpop.permute.xlu0 %1164
          %1168 = vset.pattern.permute.xlu0 0
          %1169 = vperm.xlu0 %1168, %v859
          %v1170 = vpop.permute.xlu0 %1169
          %1173 = vset.pattern.permute.xlu0 0
          %1174 = vperm.xlu0 %1173, %v861
          %v1175 = vpop.permute.xlu0 %1174
          %1178 = vset.pattern.permute.xlu0 0
          %1179 = vperm.xlu0 %1178, %v863
          %v1180 = vpop.permute.xlu0 %1179
          %1183 = vset.pattern.permute.xlu0 0
          %1184 = vperm.xlu0 %1183, %v865
          %v1185 = vpop.permute.xlu0 %1184
          %v1187 = vmul.f32 %v1110, %v1091
          %v1188 = vmul.f32 %v1115, %v1092
          %v1189 = vmul.f32 %v1120, %v1093
          %v1190 = vmul.f32 %v1125, %v1094
          %v1191 = vmul.f32 %v1130, %v1095
          %v1192 = vmul.f32 %v1135, %v1096
          %v1193 = vmul.f32 %v1140, %v1097
          %v1194 = vmul.f32 %v1145, %v1098
          %v1195 = vmul.f32 %v1150, %v1099
          %v1196 = vmul.f32 %v1155, %v1100
          %v1197 = vmul.f32 %v1160, %v1101
          %v1198 = vmul.f32 %v1165, %v1102
          %v1199 = vmul.f32 %v1170, %v1103
          %v1200 = vmul.f32 %v1175, %v1104
          %v1201 = vmul.f32 %v1180, %v1105
          %v1202 = vmul.f32 %v1185, %v1106
          %1203 = vmatprep.subr.mxu0 0.0
          %1204 = vmatpush1.msra.mxu0 %v738
          %1205 = vmatprep.subr.mxu0 0.0
          %1206 = vmatpush1.msra.mxu0 %v739
          %1207 = vmatprep.subr.mxu0 0.0
          %1208 = vmatpush1.msra.mxu0 %v740
          %1209 = vmatprep.subr.mxu0 0.0
          %1210 = vmatpush1.msra.mxu0 %v741
          %1211 = vmatprep.subr.mxu0 0.0
          %1212 = vmatpush1.msra.mxu0 %v742
          %1213 = vmatprep.subr.mxu0 0.0
          %1214 = vmatpush1.msra.mxu0 %v743
          %1215 = vmatprep.subr.mxu0 0.0
          %1216 = vmatpush1.msra.mxu0 %v744
          %1217 = vmatprep.subr.mxu0 0.0
          %1218 = vmatpush1.msra.mxu0 %v745
          %1219 = vmatprep.subr.mxu0 0.0
          %1220 = vmatpush1.msra.mxu0 %v746
          %1221 = vmatprep.subr.mxu0 0.0
          %1222 = vmatpush1.msra.mxu0 %v747
          %1223 = vmatprep.subr.mxu0 0.0
          %1224 = vmatpush1.msra.mxu0 %v748
          %1225 = vmatprep.subr.mxu0 0.0
          %1226 = vmatpush1.msra.mxu0 %v749
          %1227 = vmatprep.subr.mxu0 0.0
          %1228 = vmatpush1.msra.mxu0 %v750
          %1229 = vmatprep.subr.mxu0 0.0
          %1230 = vmatpush1.msra.mxu0 %v751
          %1231 = vmatprep.subr.mxu0 0.0
          %1232 = vmatpush1.msra.mxu0 %v752
          %1233 = vmatprep.subr.mxu0 0.0
          %1234 = vmatpush1.msra.mxu0 %v753
          %1235 = vmatprep.subr.mxu0 0.0
          %1236 = vmatpush1.msra.mxu0 0.0
          %1237 = vmatprep.subr.mxu0 0.0
          %1238 = vmatpush1.msra.mxu0 0.0
          %1239 = vmatprep.subr.mxu0 0.0
          %1240 = vmatpush1.msra.mxu0 0.0
          %1241 = vmatprep.subr.mxu0 0.0
          %1242 = vmatpush1.msra.mxu0 0.0
          %1243 = vmatprep.subr.mxu0 0.0
          %1244 = vmatpush1.msra.mxu0 0.0
          %1245 = vmatprep.subr.mxu0 0.0
          %1246 = vmatpush1.msra.mxu0 0.0
          %1247 = vmatprep.subr.mxu0 0.0
          %1248 = vmatpush1.msra.mxu0 0.0
          %1249 = vmatprep.subr.mxu0 0.0
          %1250 = vmatpush1.msra.mxu0 0.0
          %1251 = vmatprep.subr.mxu0 0.0
          %1252 = vmatpush1.msra.mxu0 0.0
          %1253 = vmatprep.subr.mxu0 0.0
          %1254 = vmatpush1.msra.mxu0 0.0
          %1255 = vmatprep.subr.mxu0 0.0
          %1256 = vmatpush1.msra.mxu0 0.0
          %1257 = vmatprep.subr.mxu0 0.0
          %1258 = vmatpush1.msra.mxu0 0.0
          %1259 = vmatprep.subr.mxu0 0.0
          %1260 = vmatpush1.msra.mxu0 0.0
          %1261 = vmatprep.subr.mxu0 0.0
          %1262 = vmatpush1.msra.mxu0 0.0
          %1263 = vmatprep.subr.mxu0 0.0
          %1264 = vmatpush1.msra.mxu0 0.0
          %1265 = vmatprep.subr.mxu0 0.0
          %1266 = vmatpush1.msra.mxu0 0.0
          %1267 = vmatprep.mubr.f32.mxu0 0.0
          %1268 = vmatmul.mubr.f32.gmra.mrb[0].mxu0 %v963
          %v1269 = vpop.f32.mrb[0].mxu0
          %v1270 = vadd.f32 0.0, %v1269
          %v1271 = vpop.f32.mrb[0].mxu0
          %1272 = vmatprep.mubr.f32.mxu0 0.0
          %1273 = vmatmul.mubr.f32.gmra.mrb[0].mxu0 %v965
          %v1274 = vpop.f32.mrb[0].mxu0
          %v1275 = vadd.f32 0.0, %v1274
          %v1276 = vpop.f32.mrb[0].mxu0
          %1277 = vmatprep.mubr.f32.mxu0 0.0
          %1278 = vmatmul.mubr.f32.gmra.mrb[0].mxu0 %v967
          %v1279 = vpop.f32.mrb[0].mxu0
          %v1280 = vadd.f32 0.0, %v1279
          %v1281 = vpop.f32.mrb[0].mxu0
          %1282 = vmatprep.mubr.f32.mxu0 0.0
          %1283 = vmatmul.mubr.f32.gmra.mrb[0].mxu0 %v969
          %v1284 = vpop.f32.mrb[0].mxu0
          %v1285 = vadd.f32 0.0, %v1284
          %v1286 = vpop.f32.mrb[0].mxu0
          %1287 = vmatprep.mubr.f32.mxu0 0.0
          %1288 = vmatmul.mubr.f32.gmra.mrb[0].mxu0 %v971
          %v1289 = vpop.f32.mrb[0].mxu0
          %v1290 = vadd.f32 0.0, %v1289
          %v1291 = vpop.f32.mrb[0].mxu0
          %1292 = vmatprep.mubr.f32.mxu0 0.0
          %1293 = vmatmul.mubr.f32.gmra.mrb[0].mxu0 %v973
          %v1294 = vpop.f32.mrb[0].mxu0
          %v1295 = vadd.f32 0.0, %v1294
          %v1296 = vpop.f32.mrb[0].mxu0
          %1297 = vmatprep.mubr.f32.mxu0 0.0
          %1298 = vmatmul.mubr.f32.gmra.mrb[0].mxu0 %v975
          %v1299 = vpop.f32.mrb[0].mxu0
          %v1300 = vadd.f32 0.0, %v1299
          %v1301 = vpop.f32.mrb[0].mxu0
          %1302 = vmatprep.mubr.f32.mxu0 0.0
          %1303 = vmatmul.mubr.f32.gmra.mrb[0].mxu0 %v977
          %v1304 = vpop.f32.mrb[0].mxu0
          %v1305 = vadd.f32 0.0, %v1304
          %v1306 = vpop.f32.mrb[0].mxu0
          %1307 = vmatprep.mubr.f32.mxu0 0.0
          %1308 = vmatmul.mubr.f32.gmra.mrb[0].mxu0 %v979
          %v1309 = vpop.f32.mrb[0].mxu0
          %v1310 = vadd.f32 0.0, %v1309
          %v1311 = vpop.f32.mrb[0].mxu0
          %1312 = vmatprep.mubr.f32.mxu0 0.0
          %1313 = vmatmul.mubr.f32.gmra.mrb[0].mxu0 %v981
          %v1314 = vpop.f32.mrb[0].mxu0
          %v1315 = vadd.f32 0.0, %v1314
          %v1316 = vpop.f32.mrb[0].mxu0
          %1317 = vmatprep.mubr.f32.mxu0 0.0
          %1318 = vmatmul.mubr.f32.gmra.mrb[0].mxu0 %v983
          %v1319 = vpop.f32.mrb[0].mxu0
          %v1320 = vadd.f32 0.0, %v1319
          %v1321 = vpop.f32.mrb[0].mxu0
          %1322 = vmatprep.mubr.f32.mxu0 0.0
          %1323 = vmatmul.mubr.f32.gmra.mrb[0].mxu0 %v985
          %v1324 = vpop.f32.mrb[0].mxu0
          %v1325 = vadd.f32 0.0, %v1324
          %v1326 = vpop.f32.mrb[0].mxu0
          %1327 = vmatprep.mubr.f32.mxu0 0.0
          %1328 = vmatmul.mubr.f32.gmra.mrb[0].mxu0 %v987
          %v1329 = vpop.f32.mrb[0].mxu0
          %v1330 = vadd.f32 0.0, %v1329
          %v1331 = vpop.f32.mrb[0].mxu0
          %1332 = vmatprep.mubr.f32.mxu0 0.0
          %1333 = vmatmul.mubr.f32.gmra.mrb[0].mxu0 %v989
          %v1334 = vpop.f32.mrb[0].mxu0
          %v1335 = vadd.f32 0.0, %v1334
          %v1336 = vpop.f32.mrb[0].mxu0
          %1337 = vmatprep.mubr.f32.mxu0 0.0
          %1338 = vmatmul.mubr.f32.gmra.mrb[0].mxu0 %v991
          %v1339 = vpop.f32.mrb[0].mxu0
          %v1340 = vadd.f32 0.0, %v1339
          %v1341 = vpop.f32.mrb[0].mxu0
          %1342 = vmatprep.mubr.f32.mxu0 0.0
          %1343 = vmatmul.mubr.f32.gmra.mrb[0].mxu0 %v993
          %v1344 = vpop.f32.mrb[0].mxu0
          %v1345 = vadd.f32 0.0, %v1344
          %v1346 = vpop.f32.mrb[0].mxu0
          %1347 = vdwg.mxu0
          %v1348 = vadd.f32 %v1187, %v1270
          %v1349 = vadd.f32 %v1188, %v1275
          %v1350 = vadd.f32 %v1189, %v1280
          %v1351 = vadd.f32 %v1190, %v1285
          %v1352 = vadd.f32 %v1191, %v1290
          %v1353 = vadd.f32 %v1192, %v1295
          %v1354 = vadd.f32 %v1193, %v1300
          %v1355 = vadd.f32 %v1194, %v1305
          %v1356 = vadd.f32 %v1195, %v1310
          %v1357 = vadd.f32 %v1196, %v1315
          %v1358 = vadd.f32 %v1197, %v1320
          %v1359 = vadd.f32 %v1198, %v1325
          %v1360 = vadd.f32 %v1199, %v1330
          %v1361 = vadd.f32 %v1200, %v1335
          %v1362 = vadd.f32 %v1201, %v1340
          %v1363 = vadd.f32 %v1202, %v1345
          %1364 = vst [vmem:[#allocation7] sm:$0xff] %v1348
          %1365 = vst [vmem:[#allocation7 + $0x8] sm:$0xff] %v1349
          %1366 = vst [vmem:[#allocation7 + $0x10] sm:$0xff] %v1350
          %1367 = vst [vmem:[#allocation7 + $0x18] sm:$0xff] %v1351
          %1368 = vst [vmem:[#allocation7 + $0x20] sm:$0xff] %v1352
          %1369 = vst [vmem:[#allocation7 + $0x28] sm:$0xff] %v1353
          %1370 = vst [vmem:[#allocation7 + $0x30] sm:$0xff] %v1354
          %1371 = vst [vmem:[#allocation7 + $0x38] sm:$0xff] %v1355
          %1372 = vst [vmem:[#allocation7 + $0x40] sm:$0xff] %v1356
          %1373 = vst [vmem:[#allocation7 + $0x48] sm:$0xff] %v1357
          %1374 = vst [vmem:[#allocation7 + $0x50] sm:$0xff] %v1358
          %1375 = vst [vmem:[#allocation7 + $0x58] sm:$0xff] %v1359
          %1376 = vst [vmem:[#allocation7 + $0x60] sm:$0xff] %v1360
          %1377 = vst [vmem:[#allocation7 + $0x68] sm:$0xff] %v1361
          %1378 = vst [vmem:[#allocation7 + $0x70] sm:$0xff] %v1362
          %1379 = vst [vmem:[#allocation7 + $0x78] sm:$0xff] %v1363
          %1380 = vst.msk [vmem:[#allocation5] sm:$0xff] %vm1074, %v802
          %1381 = vst.msk [vmem:[#allocation5 + $0x8] sm:$0xff] %vm1074, %v803
          %1382 = vst.msk [vmem:[#allocation5 + $0x10] sm:$0xff] %vm1074, %v804
          %1383 = vst.msk [vmem:[#allocation5 + $0x18] sm:$0xff] %vm1074, %v805
          %1384 = vst.msk [vmem:[#allocation5 + $0x20] sm:$0xff] %vm1074, %v806
          %1385 = vst.msk [vmem:[#allocation5 + $0x28] sm:$0xff] %vm1074, %v807
          %1386 = vst.msk [vmem:[#allocation5 + $0x30] sm:$0xff] %vm1074, %v808
          %1387 = vst.msk [vmem:[#allocation5 + $0x38] sm:$0xff] %vm1074, %v809
          %1388 = vst.msk [vmem:[#allocation5 + $0x40] sm:$0xff] %vm1074, %v810
          %1389 = vst.msk [vmem:[#allocation5 + $0x48] sm:$0xff] %vm1074, %v811
          %1390 = vst.msk [vmem:[#allocation5 + $0x50] sm:$0xff] %vm1074, %v812
          %1391 = vst.msk [vmem:[#allocation5 + $0x58] sm:$0xff] %vm1074, %v813
          %1392 = vst.msk [vmem:[#allocation5 + $0x60] sm:$0xff] %vm1074, %v814
          %1393 = vst.msk [vmem:[#allocation5 + $0x68] sm:$0xff] %vm1074, %v815
          %1394 = vst.msk [vmem:[#allocation5 + $0x70] sm:$0xff] %vm1074, %v816
          %1395 = vst.msk [vmem:[#allocation5 + $0x78] sm:$0xff] %vm1074, %v817
        $region44: #{tpu_custom_call.1} parent=35 // pred_fallthru
          _
        %p1396 = scmp.eq.s32.totalorder %s250, %s249
        // Predicated region
        $region45: #{tpu_custom_call.1} parent=35 // pred_check
          %p1397 = pneg %p1396
        $region46: #{tpu_custom_call.1} parent=35 // pred_check_branch
          %1399 = sbr.rel (%p1397) target = $region48
        $region47: #{tpu_custom_call.1} parent=35 // pred_region
          %v1400 = vld [vmem:[%s244] sm:$0xff]
          %v1401 = vld [vmem:[%s244 + $0x8] sm:$0xff]
          %v1402 = vld [vmem:[%s244 + $0x10] sm:$0xff]
          %v1403 = vld [vmem:[%s244 + $0x18] sm:$0xff]
          %v1404 = vld [vmem:[%s244 + $0x20] sm:$0xff]
          %v1405 = vld [vmem:[%s244 + $0x28] sm:$0xff]
          %v1406 = vld [vmem:[%s244 + $0x30] sm:$0xff]
          %v1407 = vld [vmem:[%s244 + $0x38] sm:$0xff]
          %v1408 = vld [vmem:[%s244 + $0x40] sm:$0xff]
          %v1409 = vld [vmem:[%s244 + $0x48] sm:$0xff]
          %v1410 = vld [vmem:[%s244 + $0x50] sm:$0xff]
          %v1411 = vld [vmem:[%s244 + $0x58] sm:$0xff]
          %v1412 = vld [vmem:[%s244 + $0x60] sm:$0xff]
          %v1413 = vld [vmem:[%s244 + $0x68] sm:$0xff]
          %v1414 = vld [vmem:[%s244 + $0x70] sm:$0xff]
          %v1415 = vld [vmem:[%s244 + $0x78] sm:$0xff]
          %v1416 = vld [vmem:[%s4] sm:$0xff]
          %v1417 = vld [vmem:[%s4 + $0x8] sm:$0xff]
          %v1418 = vld [vmem:[%s4 + $0x10] sm:$0xff]
          %v1419 = vld [vmem:[%s4 + $0x18] sm:$0xff]
          %v1420 = vld [vmem:[%s4 + $0x20] sm:$0xff]
          %v1421 = vld [vmem:[%s4 + $0x28] sm:$0xff]
          %v1422 = vld [vmem:[%s4 + $0x30] sm:$0xff]
          %v1423 = vld [vmem:[%s4 + $0x38] sm:$0xff]
          %vm1424 = vcmask 523264
          %v1426 = vsel %vm1424, %v1400, 0
          %v1429 = vsel %vm1424, %v1401, 0
          %v1432 = vsel %vm1424, %v1402, 0
          %v1435 = vsel %vm1424, %v1403, 0
          %v1438 = vsel %vm1424, %v1404, 0
          %v1441 = vsel %vm1424, %v1405, 0
          %v1444 = vsel %vm1424, %v1406, 0
          %v1447 = vsel %vm1424, %v1407, 0
          %v1450 = vsel %vm1424, %v1408, 0
          %v1453 = vsel %vm1424, %v1409, 0
          %v1456 = vsel %vm1424, %v1410, 0
          %v1459 = vsel %vm1424, %v1411, 0
          %v1462 = vsel %vm1424, %v1412, 0
          %v1465 = vsel %vm1424, %v1413, 0
          %v1468 = vsel %vm1424, %v1414, 0
          %v1471 = vsel %vm1424, %v1415, 0
          %1473 = vmatprep.subr.mxu0 0.0
          %1474 = vmatpush1.msra.mxu0 %v1416
          %1475 = vmatprep.subr.mxu0 0.0
          %1476 = vmatpush1.msra.mxu0 %v1417
          %1477 = vmatprep.subr.mxu0 0.0
          %1478 = vmatpush1.msra.mxu0 %v1418
          %1479 = vmatprep.subr.mxu0 0.0
          %1480 = vmatpush1.msra.mxu0 %v1419
          %1481 = vmatprep.subr.mxu0 0.0
          %1482 = vmatpush1.msra.mxu0 %v1420
          %1483 = vmatprep.subr.mxu0 0.0
          %1484 = vmatpush1.msra.mxu0 %v1421
          %1485 = vmatprep.subr.mxu0 0.0
          %1486 = vmatpush1.msra.mxu0 %v1422
          %1487 = vmatprep.subr.mxu0 0.0
          %1488 = vmatpush1.msra.mxu0 %v1423
          %1489 = vmatprep.subr.mxu0 0.0
          %1490 = vmatpush1.msra.mxu0 0.0
          %1491 = vmatprep.subr.mxu0 0.0
          %1492 = vmatpush1.msra.mxu0 0.0
          %1493 = vmatprep.subr.mxu0 0.0
          %1494 = vmatpush1.msra.mxu0 0.0
          %1495 = vmatprep.subr.mxu0 0.0
          %1496 = vmatpush1.msra.mxu0 0.0
          %1497 = vmatprep.subr.mxu0 0.0
          %1498 = vmatpush1.msra.mxu0 0.0
          %1499 = vmatprep.subr.mxu0 0.0
          %1500 = vmatpush1.msra.mxu0 0.0
          %1501 = vmatprep.subr.mxu0 0.0
          %1502 = vmatpush1.msra.mxu0 0.0
          %1503 = vmatprep.subr.mxu0 0.0
          %1504 = vmatpush1.msra.mxu0 0.0
          %1505 = vmatprep.subr.mxu0 0.0
          %1506 = vmatpush1.msra.mxu0 0.0
          %1507 = vmatprep.subr.mxu0 0.0
          %1508 = vmatpush1.msra.mxu0 0.0
          %1509 = vmatprep.subr.mxu0 0.0
          %1510 = vmatpush1.msra.mxu0 0.0
          %1511 = vmatprep.subr.mxu0 0.0
          %1512 = vmatpush1.msra.mxu0 0.0
          %1513 = vmatprep.subr.mxu0 0.0
          %1514 = vmatpush1.msra.mxu0 0.0
          %1515 = vmatprep.subr.mxu0 0.0
          %1516 = vmatpush1.msra.mxu0 0.0
          %1517 = vmatprep.subr.mxu0 0.0
          %1518 = vmatpush1.msra.mxu0 0.0
          %1519 = vmatprep.subr.mxu0 0.0
          %1520 = vmatpush1.msra.mxu0 0.0
          %1521 = vmatprep.subr.mxu0 0.0
          %1522 = vmatpush1.msra.mxu0 0.0
          %1523 = vmatprep.subr.mxu0 0.0
          %1524 = vmatpush1.msra.mxu0 0.0
          %1525 = vmatprep.subr.mxu0 0.0
          %1526 = vmatpush1.msra.mxu0 0.0
          %1527 = vmatprep.subr.mxu0 0.0
          %1528 = vmatpush1.msra.mxu0 0.0
          %1529 = vmatprep.subr.mxu0 0.0
          %1530 = vmatpush1.msra.mxu0 0.0
          %1531 = vmatprep.subr.mxu0 0.0
          %1532 = vmatpush1.msra.mxu0 0.0
          %1533 = vmatprep.subr.mxu0 0.0
          %1534 = vmatpush1.msra.mxu0 0.0
          %1535 = vmatprep.subr.mxu0 0.0
          %1536 = vmatpush1.msra.mxu0 0.0
          %1537 = vmatprep.mubr.f32.mxu0 0.0
          %1538 = vmatmul.mubr.f32.gmra.mrb[0].mxu0 %v1426
          %v1539 = vpop.f32.mrb[0].mxu0
          %v1540 = vadd.f32 0.0, %v1539
          %v1541 = vpop.f32.mrb[0].mxu0
          %1542 = vmatprep.mubr.f32.mxu0 0.0
          %1543 = vmatmul.mubr.f32.gmra.mrb[0].mxu0 %v1429
          %v1544 = vpop.f32.mrb[0].mxu0
          %v1545 = vadd.f32 0.0, %v1544
          %v1546 = vpop.f32.mrb[0].mxu0
          %1547 = vmatprep.mubr.f32.mxu0 0.0
          %1548 = vmatmul.mubr.f32.gmra.mrb[0].mxu0 %v1432
          %v1549 = vpop.f32.mrb[0].mxu0
          %v1550 = vadd.f32 0.0, %v1549
          %v1551 = vpop.f32.mrb[0].mxu0
          %1552 = vmatprep.mubr.f32.mxu0 0.0
          %1553 = vmatmul.mubr.f32.gmra.mrb[0].mxu0 %v1435
          %v1554 = vpop.f32.mrb[0].mxu0
          %v1555 = vadd.f32 0.0, %v1554
          %v1556 = vpop.f32.mrb[0].mxu0
          %1557 = vmatprep.mubr.f32.mxu0 0.0
          %1558 = vmatmul.mubr.f32.gmra.mrb[0].mxu0 %v1438
          %v1559 = vpop.f32.mrb[0].mxu0
          %v1560 = vadd.f32 0.0, %v1559
          %v1561 = vpop.f32.mrb[0].mxu0
          %1562 = vmatprep.mubr.f32.mxu0 0.0
          %1563 = vmatmul.mubr.f32.gmra.mrb[0].mxu0 %v1441
          %v1564 = vpop.f32.mrb[0].mxu0
          %v1565 = vadd.f32 0.0, %v1564
          %v1566 = vpop.f32.mrb[0].mxu0
          %1567 = vmatprep.mubr.f32.mxu0 0.0
          %1568 = vmatmul.mubr.f32.gmra.mrb[0].mxu0 %v1444
          %v1569 = vpop.f32.mrb[0].mxu0
          %v1570 = vadd.f32 0.0, %v1569
          %v1571 = vpop.f32.mrb[0].mxu0
          %1572 = vmatprep.mubr.f32.mxu0 0.0
          %1573 = vmatmul.mubr.f32.gmra.mrb[0].mxu0 %v1447
          %v1574 = vpop.f32.mrb[0].mxu0
          %v1575 = vadd.f32 0.0, %v1574
          %v1576 = vpop.f32.mrb[0].mxu0
          %1577 = vmatprep.mubr.f32.mxu0 0.0
          %1578 = vmatmul.mubr.f32.gmra.mrb[0].mxu0 %v1450
          %v1579 = vpop.f32.mrb[0].mxu0
          %v1580 = vadd.f32 0.0, %v1579
          %v1581 = vpop.f32.mrb[0].mxu0
          %1582 = vmatprep.mubr.f32.mxu0 0.0
          %1583 = vmatmul.mubr.f32.gmra.mrb[0].mxu0 %v1453
          %v1584 = vpop.f32.mrb[0].mxu0
          %v1585 = vadd.f32 0.0, %v1584
          %v1586 = vpop.f32.mrb[0].mxu0
          %1587 = vmatprep.mubr.f32.mxu0 0.0
          %1588 = vmatmul.mubr.f32.gmra.mrb[0].mxu0 %v1456
          %v1589 = vpop.f32.mrb[0].mxu0
          %v1590 = vadd.f32 0.0, %v1589
          %v1591 = vpop.f32.mrb[0].mxu0
          %1592 = vmatprep.mubr.f32.mxu0 0.0
          %1593 = vmatmul.mubr.f32.gmra.mrb[0].mxu0 %v1459
          %v1594 = vpop.f32.mrb[0].mxu0
          %v1595 = vadd.f32 0.0, %v1594
          %v1596 = vpop.f32.mrb[0].mxu0
          %1597 = vmatprep.mubr.f32.mxu0 0.0
          %1598 = vmatmul.mubr.f32.gmra.mrb[0].mxu0 %v1462
          %v1599 = vpop.f32.mrb[0].mxu0
          %v1600 = vadd.f32 0.0, %v1599
          %v1601 = vpop.f32.mrb[0].mxu0
          %1602 = vmatprep.mubr.f32.mxu0 0.0
          %1603 = vmatmul.mubr.f32.gmra.mrb[0].mxu0 %v1465
          %v1604 = vpop.f32.mrb[0].mxu0
          %v1605 = vadd.f32 0.0, %v1604
          %v1606 = vpop.f32.mrb[0].mxu0
          %1607 = vmatprep.mubr.f32.mxu0 0.0
          %1608 = vmatmul.mubr.f32.gmra.mrb[0].mxu0 %v1468
          %v1609 = vpop.f32.mrb[0].mxu0
          %v1610 = vadd.f32 0.0, %v1609
          %v1611 = vpop.f32.mrb[0].mxu0
          %1612 = vmatprep.mubr.f32.mxu0 0.0
          %1613 = vmatmul.mubr.f32.gmra.mrb[0].mxu0 %v1471
          %v1614 = vpop.f32.mrb[0].mxu0
          %v1615 = vadd.f32 0.0, %v1614
          %v1616 = vpop.f32.mrb[0].mxu0
          %1617 = vdwg.mxu0
          %v1618 = vld [vmem:[%s5] sm:$0xff]
          %v1619 = vld [vmem:[%s5 + $0x8] sm:$0xff]
          %v1620 = vld [vmem:[%s5 + $0x10] sm:$0xff]
          %v1621 = vld [vmem:[%s5 + $0x18] sm:$0xff]
          %v1622 = vld [vmem:[%s5 + $0x20] sm:$0xff]
          %v1623 = vld [vmem:[%s5 + $0x28] sm:$0xff]
          %v1624 = vld [vmem:[%s5 + $0x30] sm:$0xff]
          %v1625 = vld [vmem:[%s5 + $0x38] sm:$0xff]
          %1626 = vmatprep.subr.mxu0 0.0
          %1627 = vmatpush1.msra.mxu0 %v1618
          %1628 = vmatprep.subr.mxu0 0.0
          %1629 = vmatpush1.msra.mxu0 %v1619
          %1630 = vmatprep.subr.mxu0 0.0
          %1631 = vmatpush1.msra.mxu0 %v1620
          %1632 = vmatprep.subr.mxu0 0.0
          %1633 = vmatpush1.msra.mxu0 %v1621
          %1634 = vmatprep.subr.mxu0 0.0
          %1635 = vmatpush1.msra.mxu0 %v1622
          %1636 = vmatprep.subr.mxu0 0.0
          %1637 = vmatpush1.msra.mxu0 %v1623
          %1638 = vmatprep.subr.mxu0 0.0
          %1639 = vmatpush1.msra.mxu0 %v1624
          %1640 = vmatprep.subr.mxu0 0.0
          %1641 = vmatpush1.msra.mxu0 %v1625
          %1642 = vmatprep.subr.mxu0 0.0
          %1643 = vmatpush1.msra.mxu0 0.0
          %1644 = vmatprep.subr.mxu0 0.0
          %1645 = vmatpush1.msra.mxu0 0.0
          %1646 = vmatprep.subr.mxu0 0.0
          %1647 = vmatpush1.msra.mxu0 0.0
          %1648 = vmatprep.subr.mxu0 0.0
          %1649 = vmatpush1.msra.mxu0 0.0
          %1650 = vmatprep.subr.mxu0 0.0
          %1651 = vmatpush1.msra.mxu0 0.0
          %1652 = vmatprep.subr.mxu0 0.0
          %1653 = vmatpush1.msra.mxu0 0.0
          %1654 = vmatprep.subr.mxu0 0.0
          %1655 = vmatpush1.msra.mxu0 0.0
          %1656 = vmatprep.subr.mxu0 0.0
          %1657 = vmatpush1.msra.mxu0 0.0
          %1658 = vmatprep.subr.mxu0 0.0
          %1659 = vmatpush1.msra.mxu0 0.0
          %1660 = vmatprep.subr.mxu0 0.0
          %1661 = vmatpush1.msra.mxu0 0.0
          %1662 = vmatprep.subr.mxu0 0.0
          %1663 = vmatpush1.msra.mxu0 0.0
          %1664 = vmatprep.subr.mxu0 0.0
          %1665 = vmatpush1.msra.mxu0 0.0
          %1666 = vmatprep.subr.mxu0 0.0
          %1667 = vmatpush1.msra.mxu0 0.0
          %1668 = vmatprep.subr.mxu0 0.0
          %1669 = vmatpush1.msra.mxu0 0.0
          %1670 = vmatprep.subr.mxu0 0.0
          %1671 = vmatpush1.msra.mxu0 0.0
          %1672 = vmatprep.subr.mxu0 0.0
          %1673 = vmatpush1.msra.mxu0 0.0
          %1674 = vmatprep.subr.mxu0 0.0
          %1675 = vmatpush1.msra.mxu0 0.0
          %1676 = vmatprep.subr.mxu0 0.0
          %1677 = vmatpush1.msra.mxu0 0.0
          %1678 = vmatprep.subr.mxu0 0.0
          %1679 = vmatpush1.msra.mxu0 0.0
          %1680 = vmatprep.subr.mxu0 0.0
          %1681 = vmatpush1.msra.mxu0 0.0
          %1682 = vmatprep.subr.mxu0 0.0
          %1683 = vmatpush1.msra.mxu0 0.0
          %1684 = vmatprep.subr.mxu0 0.0
          %1685 = vmatpush1.msra.mxu0 0.0
          %1686 = vmatprep.subr.mxu0 0.0
          %1687 = vmatpush1.msra.mxu0 0.0
          %1688 = vmatprep.subr.mxu0 0.0
          %1689 = vmatpush1.msra.mxu0 0.0
          %1690 = vmatprep.mubr.f32.mxu0 0.0
          %1691 = vmatmul.mubr.f32.gmra.mrb[0].mxu0 %v1426
          %v1692 = vpop.f32.mrb[0].mxu0
          %v1693 = vadd.f32 0.0, %v1692
          %v1694 = vpop.f32.mrb[0].mxu0
          %1695 = vmatprep.mubr.f32.mxu0 0.0
          %1696 = vmatmul.mubr.f32.gmra.mrb[0].mxu0 %v1429
          %v1697 = vpop.f32.mrb[0].mxu0
          %v1698 = vadd.f32 0.0, %v1697
          %v1699 = vpop.f32.mrb[0].mxu0
          %1700 = vmatprep.mubr.f32.mxu0 0.0
          %1701 = vmatmul.mubr.f32.gmra.mrb[0].mxu0 %v1432
          %v1702 = vpop.f32.mrb[0].mxu0
          %v1703 = vadd.f32 0.0, %v1702
          %v1704 = vpop.f32.mrb[0].mxu0
          %1705 = vmatprep.mubr.f32.mxu0 0.0
          %1706 = vmatmul.mubr.f32.gmra.mrb[0].mxu0 %v1435
          %v1707 = vpop.f32.mrb[0].mxu0
          %v1708 = vadd.f32 0.0, %v1707
          %v1709 = vpop.f32.mrb[0].mxu0
          %1710 = vmatprep.mubr.f32.mxu0 0.0
          %1711 = vmatmul.mubr.f32.gmra.mrb[0].mxu0 %v1438
          %v1712 = vpop.f32.mrb[0].mxu0
          %v1713 = vadd.f32 0.0, %v1712
          %v1714 = vpop.f32.mrb[0].mxu0
          %1715 = vmatprep.mubr.f32.mxu0 0.0
          %1716 = vmatmul.mubr.f32.gmra.mrb[0].mxu0 %v1441
          %v1717 = vpop.f32.mrb[0].mxu0
          %v1718 = vadd.f32 0.0, %v1717
          %v1719 = vpop.f32.mrb[0].mxu0
          %1720 = vmatprep.mubr.f32.mxu0 0.0
          %1721 = vmatmul.mubr.f32.gmra.mrb[0].mxu0 %v1444
          %v1722 = vpop.f32.mrb[0].mxu0
          %v1723 = vadd.f32 0.0, %v1722
          %v1724 = vpop.f32.mrb[0].mxu0
          %1725 = vmatprep.mubr.f32.mxu0 0.0
          %1726 = vmatmul.mubr.f32.gmra.mrb[0].mxu0 %v1447
          %v1727 = vpop.f32.mrb[0].mxu0
          %v1728 = vadd.f32 0.0, %v1727
          %v1729 = vpop.f32.mrb[0].mxu0
          %1730 = vmatprep.mubr.f32.mxu0 0.0
          %1731 = vmatmul.mubr.f32.gmra.mrb[0].mxu0 %v1450
          %v1732 = vpop.f32.mrb[0].mxu0
          %v1733 = vadd.f32 0.0, %v1732
          %v1734 = vpop.f32.mrb[0].mxu0
          %1735 = vmatprep.mubr.f32.mxu0 0.0
          %1736 = vmatmul.mubr.f32.gmra.mrb[0].mxu0 %v1453
          %v1737 = vpop.f32.mrb[0].mxu0
          %v1738 = vadd.f32 0.0, %v1737
          %v1739 = vpop.f32.mrb[0].mxu0
          %1740 = vmatprep.mubr.f32.mxu0 0.0
          %1741 = vmatmul.mubr.f32.gmra.mrb[0].mxu0 %v1456
          %v1742 = vpop.f32.mrb[0].mxu0
          %v1743 = vadd.f32 0.0, %v1742
          %v1744 = vpop.f32.mrb[0].mxu0
          %1745 = vmatprep.mubr.f32.mxu0 0.0
          %1746 = vmatmul.mubr.f32.gmra.mrb[0].mxu0 %v1459
          %v1747 = vpop.f32.mrb[0].mxu0
          %v1748 = vadd.f32 0.0, %v1747
          %v1749 = vpop.f32.mrb[0].mxu0
          %1750 = vmatprep.mubr.f32.mxu0 0.0
          %1751 = vmatmul.mubr.f32.gmra.mrb[0].mxu0 %v1462
          %v1752 = vpop.f32.mrb[0].mxu0
          %v1753 = vadd.f32 0.0, %v1752
          %v1754 = vpop.f32.mrb[0].mxu0
          %1755 = vmatprep.mubr.f32.mxu0 0.0
          %1756 = vmatmul.mubr.f32.gmra.mrb[0].mxu0 %v1465
          %v1757 = vpop.f32.mrb[0].mxu0
          %v1758 = vadd.f32 0.0, %v1757
          %v1759 = vpop.f32.mrb[0].mxu0
          %1760 = vmatprep.mubr.f32.mxu0 0.0
          %1761 = vmatmul.mubr.f32.gmra.mrb[0].mxu0 %v1468
          %v1762 = vpop.f32.mrb[0].mxu0
          %v1763 = vadd.f32 0.0, %v1762
          %v1764 = vpop.f32.mrb[0].mxu0
          %1765 = vmatprep.mubr.f32.mxu0 0.0
          %1766 = vmatmul.mubr.f32.gmra.mrb[0].mxu0 %v1471
          %v1767 = vpop.f32.mrb[0].mxu0
          %v1768 = vadd.f32 0.0, %v1767
          %v1769 = vpop.f32.mrb[0].mxu0
          %1770 = vdwg.mxu0
          %s1771 = smul.u32 %s249, 128
          %s1772 = scalar_lea.vmem [#allocation3], %s1771
          %1773 = vst [vmem:[%s1772] sm:$0xff] %v1540
          %1774 = vst [vmem:[%s1772 + $0x8] sm:$0xff] %v1545
          %1775 = vst [vmem:[%s1772 + $0x10] sm:$0xff] %v1550
          %1776 = vst [vmem:[%s1772 + $0x18] sm:$0xff] %v1555
          %1777 = vst [vmem:[%s1772 + $0x20] sm:$0xff] %v1560
          %1778 = vst [vmem:[%s1772 + $0x28] sm:$0xff] %v1565
          %1779 = vst [vmem:[%s1772 + $0x30] sm:$0xff] %v1570
          %1780 = vst [vmem:[%s1772 + $0x38] sm:$0xff] %v1575
          %1781 = vst [vmem:[%s1772 + $0x40] sm:$0xff] %v1580
          %1782 = vst [vmem:[%s1772 + $0x48] sm:$0xff] %v1585
          %1783 = vst [vmem:[%s1772 + $0x50] sm:$0xff] %v1590
          %1784 = vst [vmem:[%s1772 + $0x58] sm:$0xff] %v1595
          %1785 = vst [vmem:[%s1772 + $0x60] sm:$0xff] %v1600
          %1786 = vst [vmem:[%s1772 + $0x68] sm:$0xff] %v1605
          %1787 = vst [vmem:[%s1772 + $0x70] sm:$0xff] %v1610
          %1788 = vst [vmem:[%s1772 + $0x78] sm:$0xff] %v1615
          %s1789 = scalar_lea.vmem [#allocation4], %s1771
          %1790 = vst [vmem:[%s1789] sm:$0xff] %v1693
          %1791 = vst [vmem:[%s1789 + $0x8] sm:$0xff] %v1698
          %1792 = vst [vmem:[%s1789 + $0x10] sm:$0xff] %v1703
          %1793 = vst [vmem:[%s1789 + $0x18] sm:$0xff] %v1708
          %1794 = vst [vmem:[%s1789 + $0x20] sm:$0xff] %v1713
          %1795 = vst [vmem:[%s1789 + $0x28] sm:$0xff] %v1718
          %1796 = vst [vmem:[%s1789 + $0x30] sm:$0xff] %v1723
          %1797 = vst [vmem:[%s1789 + $0x38] sm:$0xff] %v1728
          %1798 = vst [vmem:[%s1789 + $0x40] sm:$0xff] %v1733
          %1799 = vst [vmem:[%s1789 + $0x48] sm:$0xff] %v1738
          %1800 = vst [vmem:[%s1789 + $0x50] sm:$0xff] %v1743
          %1801 = vst [vmem:[%s1789 + $0x58] sm:$0xff] %v1748
          %1802 = vst [vmem:[%s1789 + $0x60] sm:$0xff] %v1753
          %1803 = vst [vmem:[%s1789 + $0x68] sm:$0xff] %v1758
          %1804 = vst [vmem:[%s1789 + $0x70] sm:$0xff] %v1763
          %1805 = vst [vmem:[%s1789 + $0x78] sm:$0xff] %v1768
          %v1806 = vld [vmem:[#allocation2] sm:$0xff]
          %v1807 = vld [vmem:[#allocation2 + $0x8] sm:$0xff]
          %v1808 = vld [vmem:[#allocation2 + $0x10] sm:$0xff]
          %v1809 = vld [vmem:[#allocation2 + $0x18] sm:$0xff]
          %v1810 = vld [vmem:[#allocation2 + $0x20] sm:$0xff]
          %v1811 = vld [vmem:[#allocation2 + $0x28] sm:$0xff]
          %v1812 = vld [vmem:[#allocation2 + $0x30] sm:$0xff]
          %v1813 = vld [vmem:[#allocation2 + $0x38] sm:$0xff]
          %v1814 = vld [vmem:[#allocation2 + $0x40] sm:$0xff]
          %v1815 = vld [vmem:[#allocation2 + $0x48] sm:$0xff]
          %v1816 = vld [vmem:[#allocation2 + $0x50] sm:$0xff]
          %v1817 = vld [vmem:[#allocation2 + $0x58] sm:$0xff]
          %v1818 = vld [vmem:[#allocation2 + $0x60] sm:$0xff]
          %v1819 = vld [vmem:[#allocation2 + $0x68] sm:$0xff]
          %v1820 = vld [vmem:[#allocation2 + $0x70] sm:$0xff]
          %v1821 = vld [vmem:[#allocation2 + $0x78] sm:$0xff]
          %1822 = vmatprep.subr.mxu0 0.0
          %1823 = vmatpush1.xpose.msra.mxu0 %v1540
          %1824 = vmatprep.subr.mxu0 0.0
          %1825 = vmatpush1.xpose.msra.mxu0 %v1545
          %1826 = vmatprep.subr.mxu0 0.0
          %1827 = vmatpush1.xpose.msra.mxu0 %v1550
          %1828 = vmatprep.subr.mxu0 0.0
          %1829 = vmatpush1.xpose.msra.mxu0 %v1555
          %1830 = vmatprep.subr.mxu0 0.0
          %1831 = vmatpush1.xpose.msra.mxu0 %v1560
          %1832 = vmatprep.subr.mxu0 0.0
          %1833 = vmatpush1.xpose.msra.mxu0 %v1565
          %1834 = vmatprep.subr.mxu0 0.0
          %1835 = vmatpush1.xpose.msra.mxu0 %v1570
          %1836 = vmatprep.subr.mxu0 0.0
          %1837 = vmatpush1.xpose.msra.mxu0 %v1575
          %1838 = vmatprep.subr.mxu0 0.0
          %1839 = vmatpush1.xpose.msra.mxu0 %v1580
          %1840 = vmatprep.subr.mxu0 0.0
          %1841 = vmatpush1.xpose.msra.mxu0 %v1585
          %1842 = vmatprep.subr.mxu0 0.0
          %1843 = vmatpush1.xpose.msra.mxu0 %v1590
          %1844 = vmatprep.subr.mxu0 0.0
          %1845 = vmatpush1.xpose.msra.mxu0 %v1595
          %1846 = vmatprep.subr.mxu0 0.0
          %1847 = vmatpush1.xpose.msra.mxu0 %v1600
          %1848 = vmatprep.subr.mxu0 0.0
          %1849 = vmatpush1.xpose.msra.mxu0 %v1605
          %1850 = vmatprep.subr.mxu0 0.0
          %1851 = vmatpush1.xpose.msra.mxu0 %v1610
          %1852 = vmatprep.subr.mxu0 0.0
          %1853 = vmatpush1.xpose.msra.mxu0 %v1615
          %1854 = vmatprep.subr.mxu0 0.0
          %1855 = vmatpush1.xpose.msra.mxu0 0.0
          %1856 = vmatprep.subr.mxu0 0.0
          %1857 = vmatpush1.xpose.msra.mxu0 0.0
          %1858 = vmatprep.subr.mxu0 0.0
          %1859 = vmatpush1.xpose.msra.mxu0 0.0
          %1860 = vmatprep.subr.mxu0 0.0
          %1861 = vmatpush1.xpose.msra.mxu0 0.0
          %1862 = vmatprep.subr.mxu0 0.0
          %1863 = vmatpush1.xpose.msra.mxu0 0.0
          %1864 = vmatprep.subr.mxu0 0.0
          %1865 = vmatpush1.xpose.msra.mxu0 0.0
          %1866 = vmatprep.subr.mxu0 0.0
          %1867 = vmatpush1.xpose.msra.mxu0 0.0
          %1868 = vmatprep.subr.mxu0 0.0
          %1869 = vmatpush1.xpose.msra.mxu0 0.0
          %1870 = vmatprep.subr.mxu0 0.0
          %1871 = vmatpush1.xpose.msra.mxu0 0.0
          %1872 = vmatprep.subr.mxu0 0.0
          %1873 = vmatpush1.xpose.msra.mxu0 0.0
          %1874 = vmatprep.subr.mxu0 0.0
          %1875 = vmatpush1.xpose.msra.mxu0 0.0
          %1876 = vmatprep.subr.mxu0 0.0
          %1877 = vmatpush1.xpose.msra.mxu0 0.0
          %1878 = vmatprep.subr.mxu0 0.0
          %1879 = vmatpush1.xpose.msra.mxu0 0.0
          %1880 = vmatprep.subr.mxu0 0.0
          %1881 = vmatpush1.xpose.msra.mxu0 0.0
          %1882 = vmatprep.subr.mxu0 0.0
          %1883 = vmatpush1.xpose.msra.mxu0 0.0
          %1884 = vmatprep.subr.mxu0 0.0
          %1885 = vmatpush1.xpose.msra.mxu0 0.0
          %1886 = vmatprep.mubr.f32.mxu0 0.0
          %1887 = vmatmul.mubr.f32.gmra.mrb[0].mxu0 %v1806
          %v1888 = vpop.f32.mrb[0].mxu0
          %v1889 = vadd.f32 0.0, %v1888
          %v1890 = vpop.f32.mrb[0].mxu0
          %1891 = vmatprep.mubr.f32.mxu0 0.0
          %1892 = vmatmul.mubr.f32.gmra.mrb[0].mxu0 %v1807
          %v1893 = vpop.f32.mrb[0].mxu0
          %v1894 = vadd.f32 0.0, %v1893
          %v1895 = vpop.f32.mrb[0].mxu0
          %1896 = vmatprep.mubr.f32.mxu0 0.0
          %1897 = vmatmul.mubr.f32.gmra.mrb[0].mxu0 %v1808
          %v1898 = vpop.f32.mrb[0].mxu0
          %v1899 = vadd.f32 0.0, %v1898
          %v1900 = vpop.f32.mrb[0].mxu0
          %1901 = vmatprep.mubr.f32.mxu0 0.0
          %1902 = vmatmul.mubr.f32.gmra.mrb[0].mxu0 %v1809
          %v1903 = vpop.f32.mrb[0].mxu0
          %v1904 = vadd.f32 0.0, %v1903
          %v1905 = vpop.f32.mrb[0].mxu0
          %1906 = vmatprep.mubr.f32.mxu0 0.0
          %1907 = vmatmul.mubr.f32.gmra.mrb[0].mxu0 %v1810
          %v1908 = vpop.f32.mrb[0].mxu0
          %v1909 = vadd.f32 0.0, %v1908
          %v1910 = vpop.f32.mrb[0].mxu0
          %1911 = vmatprep.mubr.f32.mxu0 0.0
          %1912 = vmatmul.mubr.f32.gmra.mrb[0].mxu0 %v1811
          %v1913 = vpop.f32.mrb[0].mxu0
          %v1914 = vadd.f32 0.0, %v1913
          %v1915 = vpop.f32.mrb[0].mxu0
          %1916 = vmatprep.mubr.f32.mxu0 0.0
          %1917 = vmatmul.mubr.f32.gmra.mrb[0].mxu0 %v1812
          %v1918 = vpop.f32.mrb[0].mxu0
          %v1919 = vadd.f32 0.0, %v1918
          %v1920 = vpop.f32.mrb[0].mxu0
          %1921 = vmatprep.mubr.f32.mxu0 0.0
          %1922 = vmatmul.mubr.f32.gmra.mrb[0].mxu0 %v1813
          %v1923 = vpop.f32.mrb[0].mxu0
          %v1924 = vadd.f32 0.0, %v1923
          %v1925 = vpop.f32.mrb[0].mxu0
          %1926 = vmatprep.mubr.f32.mxu0 0.0
          %1927 = vmatmul.mubr.f32.gmra.mrb[0].mxu0 %v1814
          %v1928 = vpop.f32.mrb[0].mxu0
          %v1929 = vadd.f32 0.0, %v1928
          %v1930 = vpop.f32.mrb[0].mxu0
          %1931 = vmatprep.mubr.f32.mxu0 0.0
          %1932 = vmatmul.mubr.f32.gmra.mrb[0].mxu0 %v1815
          %v1933 = vpop.f32.mrb[0].mxu0
          %v1934 = vadd.f32 0.0, %v1933
          %v1935 = vpop.f32.mrb[0].mxu0
          %1936 = vmatprep.mubr.f32.mxu0 0.0
          %1937 = vmatmul.mubr.f32.gmra.mrb[0].mxu0 %v1816
          %v1938 = vpop.f32.mrb[0].mxu0
          %v1939 = vadd.f32 0.0, %v1938
          %v1940 = vpop.f32.mrb[0].mxu0
          %1941 = vmatprep.mubr.f32.mxu0 0.0
          %1942 = vmatmul.mubr.f32.gmra.mrb[0].mxu0 %v1817
          %v1943 = vpop.f32.mrb[0].mxu0
          %v1944 = vadd.f32 0.0, %v1943
          %v1945 = vpop.f32.mrb[0].mxu0
          %1946 = vmatprep.mubr.f32.mxu0 0.0
          %1947 = vmatmul.mubr.f32.gmra.mrb[0].mxu0 %v1818
          %v1948 = vpop.f32.mrb[0].mxu0
          %v1949 = vadd.f32 0.0, %v1948
          %v1950 = vpop.f32.mrb[0].mxu0
          %1951 = vmatprep.mubr.f32.mxu0 0.0
          %1952 = vmatmul.mubr.f32.gmra.mrb[0].mxu0 %v1819
          %v1953 = vpop.f32.mrb[0].mxu0
          %v1954 = vadd.f32 0.0, %v1953
          %v1955 = vpop.f32.mrb[0].mxu0
          %1956 = vmatprep.mubr.f32.mxu0 0.0
          %1957 = vmatmul.mubr.f32.gmra.mrb[0].mxu0 %v1820
          %v1958 = vpop.f32.mrb[0].mxu0
          %v1959 = vadd.f32 0.0, %v1958
          %v1960 = vpop.f32.mrb[0].mxu0
          %1961 = vmatprep.mubr.f32.mxu0 0.0
          %1962 = vmatmul.mubr.f32.gmra.mrb[0].mxu0 %v1821
          %v1963 = vpop.f32.mrb[0].mxu0
          %v1964 = vadd.f32 0.0, %v1963
          %v1965 = vpop.f32.mrb[0].mxu0
          %1966 = vdwg.mxu0
          %v1967 = vlaneseq
          %v1968 = vshrl.u32 %v1967, 7
          %v1969 = vadd.s32 %v1968, 8
          %v1970 = vadd.s32 %v1968, 16
          %v1971 = vadd.s32 %v1968, 24
          %v1972 = vadd.s32 %v1968, 32
          %v1973 = vadd.s32 %v1968, 40
          %v1974 = vadd.s32 %v1968, 48
          %v1975 = vadd.s32 %v1968, 56
          %v1976 = vadd.s32 %v1968, 64
          %v1977 = vadd.s32 %v1968, 72
          %v1978 = vadd.s32 %v1968, 80
          %v1979 = vadd.s32 %v1968, 88
          %v1980 = vadd.s32 %v1968, 96
          %v1981 = vadd.s32 %v1968, 104
          %v1982 = vadd.s32 %v1968, 112
          %v1983 = vadd.s32 %v1968, 120
          %v1984 = vlaneseq
          %v1985 = vand.u32 %v1984, 127
          %vm1986 = vcmp.le.s32.totalorder %v1985, %v1968
          %vm1987 = vcmp.le.s32.totalorder %v1985, %v1969
          %vm1988 = vcmp.le.s32.totalorder %v1985, %v1970
          %vm1989 = vcmp.le.s32.totalorder %v1985, %v1971
          %vm1990 = vcmp.le.s32.totalorder %v1985, %v1972
          %vm1991 = vcmp.le.s32.totalorder %v1985, %v1973
          %vm1992 = vcmp.le.s32.totalorder %v1985, %v1974
          %vm1993 = vcmp.le.s32.totalorder %v1985, %v1975
          %vm1994 = vcmp.le.s32.totalorder %v1985, %v1976
          %vm1995 = vcmp.le.s32.totalorder %v1985, %v1977
          %vm1996 = vcmp.le.s32.totalorder %v1985, %v1978
          %vm1997 = vcmp.le.s32.totalorder %v1985, %v1979
          %vm1998 = vcmp.le.s32.totalorder %v1985, %v1980
          %vm1999 = vcmp.le.s32.totalorder %v1985, %v1981
          %vm2000 = vcmp.le.s32.totalorder %v1985, %v1982
          %vm2001 = vcmp.le.s32.totalorder %v1985, %v1983
          %v2002 = vsel %vm1986, %v1889, -1e+30
          %v2003 = vsel %vm1987, %v1894, -1e+30
          %v2004 = vsel %vm1988, %v1899, -1e+30
          %v2005 = vsel %vm1989, %v1904, -1e+30
          %v2006 = vsel %vm1990, %v1909, -1e+30
          %v2007 = vsel %vm1991, %v1914, -1e+30
          %v2008 = vsel %vm1992, %v1919, -1e+30
          %v2009 = vsel %vm1993, %v1924, -1e+30
          %v2010 = vsel %vm1994, %v1929, -1e+30
          %v2011 = vsel %vm1995, %v1934, -1e+30
          %v2012 = vsel %vm1996, %v1939, -1e+30
          %v2013 = vsel %vm1997, %v1944, -1e+30
          %v2014 = vsel %vm1998, %v1949, -1e+30
          %v2015 = vsel %vm1999, %v1954, -1e+30
          %v2016 = vsel %vm2000, %v1959, -1e+30
          %v2017 = vsel %vm2001, %v1964, -1e+30
          %v2018 = vld [vmem:[#allocation5] sm:$0xff]
          %v2019 = vld [vmem:[#allocation5 + $0x8] sm:$0xff]
          %v2020 = vld [vmem:[#allocation5 + $0x10] sm:$0xff]
          %v2021 = vld [vmem:[#allocation5 + $0x18] sm:$0xff]
          %v2022 = vld [vmem:[#allocation5 + $0x20] sm:$0xff]
          %v2023 = vld [vmem:[#allocation5 + $0x28] sm:$0xff]
          %v2024 = vld [vmem:[#allocation5 + $0x30] sm:$0xff]
          %v2025 = vld [vmem:[#allocation5 + $0x38] sm:$0xff]
          %v2026 = vld [vmem:[#allocation5 + $0x40] sm:$0xff]
          %v2027 = vld [vmem:[#allocation5 + $0x48] sm:$0xff]
          %v2028 = vld [vmem:[#allocation5 + $0x50] sm:$0xff]
          %v2029 = vld [vmem:[#allocation5 + $0x58] sm:$0xff]
          %v2030 = vld [vmem:[#allocation5 + $0x60] sm:$0xff]
          %v2031 = vld [vmem:[#allocation5 + $0x68] sm:$0xff]
          %v2032 = vld [vmem:[#allocation5 + $0x70] sm:$0xff]
          %v2033 = vld [vmem:[#allocation5 + $0x78] sm:$0xff]
          %2034 = vmax.xlane.f32.xlu0 %v2002
          %v2035 = vpop.xlane.xlu0 %2034
          %2036 = vmax.xlane.f32.xlu0 %v2003
          %v2037 = vpop.xlane.xlu0 %2036
          %2038 = vmax.xlane.f32.xlu0 %v2004
          %v2039 = vpop.xlane.xlu0 %2038
          %2040 = vmax.xlane.f32.xlu0 %v2005
          %v2041 = vpop.xlane.xlu0 %2040
          %2042 = vmax.xlane.f32.xlu0 %v2006
          %v2043 = vpop.xlane.xlu0 %2042
          %2044 = vmax.xlane.f32.xlu0 %v2007
          %v2045 = vpop.xlane.xlu0 %2044
          %2046 = vmax.xlane.f32.xlu0 %v2008
          %v2047 = vpop.xlane.xlu0 %2046
          %2048 = vmax.xlane.f32.xlu0 %v2009
          %v2049 = vpop.xlane.xlu0 %2048
          %2050 = vmax.xlane.f32.xlu0 %v2010
          %v2051 = vpop.xlane.xlu0 %2050
          %2052 = vmax.xlane.f32.xlu0 %v2011
          %v2053 = vpop.xlane.xlu0 %2052
          %2054 = vmax.xlane.f32.xlu0 %v2012
          %v2055 = vpop.xlane.xlu0 %2054
          %2056 = vmax.xlane.f32.xlu0 %v2013
          %v2057 = vpop.xlane.xlu0 %2056
          %2058 = vmax.xlane.f32.xlu0 %v2014
          %v2059 = vpop.xlane.xlu0 %2058
          %2060 = vmax.xlane.f32.xlu0 %v2015
          %v2061 = vpop.xlane.xlu0 %2060
          %2062 = vmax.xlane.f32.xlu0 %v2016
          %v2063 = vpop.xlane.xlu0 %2062
          %2064 = vmax.xlane.f32.xlu0 %v2017
          %v2065 = vpop.xlane.xlu0 %2064
          %v2066 = vmax.f32 %v2018, %v2035
          %v2067 = vmax.f32 %v2019, %v2037
          %v2068 = vmax.f32 %v2020, %v2039
          %v2069 = vmax.f32 %v2021, %v2041
          %v2070 = vmax.f32 %v2022, %v2043
          %v2071 = vmax.f32 %v2023, %v2045
          %v2072 = vmax.f32 %v2024, %v2047
          %v2073 = vmax.f32 %v2025, %v2049
          %v2074 = vmax.f32 %v2026, %v2051
          %v2075 = vmax.f32 %v2027, %v2053
          %v2076 = vmax.f32 %v2028, %v2055
          %v2077 = vmax.f32 %v2029, %v2057
          %v2078 = vmax.f32 %v2030, %v2059
          %v2079 = vmax.f32 %v2031, %v2061
          %v2080 = vmax.f32 %v2032, %v2063
          %v2081 = vmax.f32 %v2033, %v2065
          %v2082 = vsub.f32 %v2018, %v2066
          %v2083 = vsub.f32 %v2019, %v2067
          %v2084 = vsub.f32 %v2020, %v2068
          %v2085 = vsub.f32 %v2021, %v2069
          %v2086 = vsub.f32 %v2022, %v2070
          %v2087 = vsub.f32 %v2023, %v2071
          %v2088 = vsub.f32 %v2024, %v2072
          %v2089 = vsub.f32 %v2025, %v2073
          %v2090 = vsub.f32 %v2026, %v2074
          %v2091 = vsub.f32 %v2027, %v2075
          %v2092 = vsub.f32 %v2028, %v2076
          %v2093 = vsub.f32 %v2029, %v2077
          %v2094 = vsub.f32 %v2030, %v2078
          %v2095 = vsub.f32 %v2031, %v2079
          %v2096 = vsub.f32 %v2032, %v2080
          %v2097 = vsub.f32 %v2033, %v2081
          %v2098 = vmul.f32 %v2082, 1.442695
          %v2099 = vpow.pop %v2098
          %v2100 = vmul.f32 %v2083, 1.442695
          %v2101 = vpow.pop %v2100
          %v2102 = vmul.f32 %v2084, 1.442695
          %v2103 = vpow.pop %v2102
          %v2104 = vmul.f32 %v2085, 1.442695
          %v2105 = vpow.pop %v2104
          %v2106 = vmul.f32 %v2086, 1.442695
          %v2107 = vpow.pop %v2106
          %v2108 = vmul.f32 %v2087, 1.442695
          %v2109 = vpow.pop %v2108
          %v2110 = vmul.f32 %v2088, 1.442695
          %v2111 = vpow.pop %v2110
          %v2112 = vmul.f32 %v2089, 1.442695
          %v2113 = vpow.pop %v2112
          %v2114 = vmul.f32 %v2090, 1.442695
          %v2115 = vpow.pop %v2114
          %v2116 = vmul.f32 %v2091, 1.442695
          %v2117 = vpow.pop %v2116
          %v2118 = vmul.f32 %v2092, 1.442695
          %v2119 = vpow.pop %v2118
          %v2120 = vmul.f32 %v2093, 1.442695
          %v2121 = vpow.pop %v2120
          %v2122 = vmul.f32 %v2094, 1.442695
          %v2123 = vpow.pop %v2122
          %v2124 = vmul.f32 %v2095, 1.442695
          %v2125 = vpow.pop %v2124
          %v2126 = vmul.f32 %v2096, 1.442695
          %v2127 = vpow.pop %v2126
          %v2128 = vmul.f32 %v2097, 1.442695
          %v2129 = vpow.pop %v2128
          %2131 = vset.pattern.permute.xlu0 0
          %2132 = vperm.xlu0 %2131, %v2066
          %v2133 = vpop.permute.xlu0 %2132
          %2136 = vset.pattern.permute.xlu0 0
          %2137 = vperm.xlu0 %2136, %v2067
          %v2138 = vpop.permute.xlu0 %2137
          %2141 = vset.pattern.permute.xlu0 0
          %2142 = vperm.xlu0 %2141, %v2068
          %v2143 = vpop.permute.xlu0 %2142
          %2146 = vset.pattern.permute.xlu0 0
          %2147 = vperm.xlu0 %2146, %v2069
          %v2148 = vpop.permute.xlu0 %2147
          %2151 = vset.pattern.permute.xlu0 0
          %2152 = vperm.xlu0 %2151, %v2070
          %v2153 = vpop.permute.xlu0 %2152
          %2156 = vset.pattern.permute.xlu0 0
          %2157 = vperm.xlu0 %2156, %v2071
          %v2158 = vpop.permute.xlu0 %2157
          %2161 = vset.pattern.permute.xlu0 0
          %2162 = vperm.xlu0 %2161, %v2072
          %v2163 = vpop.permute.xlu0 %2162
          %2166 = vset.pattern.permute.xlu0 0
          %2167 = vperm.xlu0 %2166, %v2073
          %v2168 = vpop.permute.xlu0 %2167
          %2171 = vset.pattern.permute.xlu0 0
          %2172 = vperm.xlu0 %2171, %v2074
          %v2173 = vpop.permute.xlu0 %2172
          %2176 = vset.pattern.permute.xlu0 0
          %2177 = vperm.xlu0 %2176, %v2075
          %v2178 = vpop.permute.xlu0 %2177
          %2181 = vset.pattern.permute.xlu0 0
          %2182 = vperm.xlu0 %2181, %v2076
          %v2183 = vpop.permute.xlu0 %2182
          %2186 = vset.pattern.permute.xlu0 0
          %2187 = vperm.xlu0 %2186, %v2077
          %v2188 = vpop.permute.xlu0 %2187
          %2191 = vset.pattern.permute.xlu0 0
          %2192 = vperm.xlu0 %2191, %v2078
          %v2193 = vpop.permute.xlu0 %2192
          %2196 = vset.pattern.permute.xlu0 0
          %2197 = vperm.xlu0 %2196, %v2079
          %v2198 = vpop.permute.xlu0 %2197
          %2201 = vset.pattern.permute.xlu0 0
          %2202 = vperm.xlu0 %2201, %v2080
          %v2203 = vpop.permute.xlu0 %2202
          %2206 = vset.pattern.permute.xlu0 0
          %2207 = vperm.xlu0 %2206, %v2081
          %v2208 = vpop.permute.xlu0 %2207
          %v2210 = vsub.f32 %v2002, %v2133
          %v2211 = vsub.f32 %v2003, %v2138
          %v2212 = vsub.f32 %v2004, %v2143
          %v2213 = vsub.f32 %v2005, %v2148
          %v2214 = vsub.f32 %v2006, %v2153
          %v2215 = vsub.f32 %v2007, %v2158
          %v2216 = vsub.f32 %v2008, %v2163
          %v2217 = vsub.f32 %v2009, %v2168
          %v2218 = vsub.f32 %v2010, %v2173
          %v2219 = vsub.f32 %v2011, %v2178
          %v2220 = vsub.f32 %v2012, %v2183
          %v2221 = vsub.f32 %v2013, %v2188
          %v2222 = vsub.f32 %v2014, %v2193
          %v2223 = vsub.f32 %v2015, %v2198
          %v2224 = vsub.f32 %v2016, %v2203
          %v2225 = vsub.f32 %v2017, %v2208
          %v2226 = vmul.f32 %v2210, 1.442695
          %v2227 = vpow.pop %v2226
          %v2228 = vmul.f32 %v2211, 1.442695
          %v2229 = vpow.pop %v2228
          %v2230 = vmul.f32 %v2212, 1.442695
          %v2231 = vpow.pop %v2230
          %v2232 = vmul.f32 %v2213, 1.442695
          %v2233 = vpow.pop %v2232
          %v2234 = vmul.f32 %v2214, 1.442695
          %v2235 = vpow.pop %v2234
          %v2236 = vmul.f32 %v2215, 1.442695
          %v2237 = vpow.pop %v2236
          %v2238 = vmul.f32 %v2216, 1.442695
          %v2239 = vpow.pop %v2238
          %v2240 = vmul.f32 %v2217, 1.442695
          %v2241 = vpow.pop %v2240
          %v2242 = vmul.f32 %v2218, 1.442695
          %v2243 = vpow.pop %v2242
          %v2244 = vmul.f32 %v2219, 1.442695
          %v2245 = vpow.pop %v2244
          %v2246 = vmul.f32 %v2220, 1.442695
          %v2247 = vpow.pop %v2246
          %v2248 = vmul.f32 %v2221, 1.442695
          %v2249 = vpow.pop %v2248
          %v2250 = vmul.f32 %v2222, 1.442695
          %v2251 = vpow.pop %v2250
          %v2252 = vmul.f32 %v2223, 1.442695
          %v2253 = vpow.pop %v2252
          %v2254 = vmul.f32 %v2224, 1.442695
          %v2255 = vpow.pop %v2254
          %v2256 = vmul.f32 %v2225, 1.442695
          %v2257 = vpow.pop %v2256
          %v2258 = vld [vmem:[#allocation6] sm:$0xff]
          %v2259 = vld [vmem:[#allocation6 + $0x8] sm:$0xff]
          %v2260 = vld [vmem:[#allocation6 + $0x10] sm:$0xff]
          %v2261 = vld [vmem:[#allocation6 + $0x18] sm:$0xff]
          %v2262 = vld [vmem:[#allocation6 + $0x20] sm:$0xff]
          %v2263 = vld [vmem:[#allocation6 + $0x28] sm:$0xff]
          %v2264 = vld [vmem:[#allocation6 + $0x30] sm:$0xff]
          %v2265 = vld [vmem:[#allocation6 + $0x38] sm:$0xff]
          %v2266 = vld [vmem:[#allocation6 + $0x40] sm:$0xff]
          %v2267 = vld [vmem:[#allocation6 + $0x48] sm:$0xff]
          %v2268 = vld [vmem:[#allocation6 + $0x50] sm:$0xff]
          %v2269 = vld [vmem:[#allocation6 + $0x58] sm:$0xff]
          %v2270 = vld [vmem:[#allocation6 + $0x60] sm:$0xff]
          %v2271 = vld [vmem:[#allocation6 + $0x68] sm:$0xff]
          %v2272 = vld [vmem:[#allocation6 + $0x70] sm:$0xff]
          %v2273 = vld [vmem:[#allocation6 + $0x78] sm:$0xff]
          %v2274 = vmul.f32 %v2099, %v2258
          %v2275 = vmul.f32 %v2101, %v2259
          %v2276 = vmul.f32 %v2103, %v2260
          %v2277 = vmul.f32 %v2105, %v2261
          %v2278 = vmul.f32 %v2107, %v2262
          %v2279 = vmul.f32 %v2109, %v2263
          %v2280 = vmul.f32 %v2111, %v2264
          %v2281 = vmul.f32 %v2113, %v2265
          %v2282 = vmul.f32 %v2115, %v2266
          %v2283 = vmul.f32 %v2117, %v2267
          %v2284 = vmul.f32 %v2119, %v2268
          %v2285 = vmul.f32 %v2121, %v2269
          %v2286 = vmul.f32 %v2123, %v2270
          %v2287 = vmul.f32 %v2125, %v2271
          %v2288 = vmul.f32 %v2127, %v2272
          %v2289 = vmul.f32 %v2129, %v2273
          %2290 = vadd.xlane.f32.xlu0 %v2227
          %v2291 = vpop.xlane.xlu0 %2290
          %2292 = vadd.xlane.f32.xlu0 %v2229
          %v2293 = vpop.xlane.xlu0 %2292
          %2294 = vadd.xlane.f32.xlu0 %v2231
          %v2295 = vpop.xlane.xlu0 %2294
          %2296 = vadd.xlane.f32.xlu0 %v2233
          %v2297 = vpop.xlane.xlu0 %2296
          %2298 = vadd.xlane.f32.xlu0 %v2235
          %v2299 = vpop.xlane.xlu0 %2298
          %2300 = vadd.xlane.f32.xlu0 %v2237
          %v2301 = vpop.xlane.xlu0 %2300
          %2302 = vadd.xlane.f32.xlu0 %v2239
          %v2303 = vpop.xlane.xlu0 %2302
          %2304 = vadd.xlane.f32.xlu0 %v2241
          %v2305 = vpop.xlane.xlu0 %2304
          %2306 = vadd.xlane.f32.xlu0 %v2243
          %v2307 = vpop.xlane.xlu0 %2306
          %2308 = vadd.xlane.f32.xlu0 %v2245
          %v2309 = vpop.xlane.xlu0 %2308
          %2310 = vadd.xlane.f32.xlu0 %v2247
          %v2311 = vpop.xlane.xlu0 %2310
          %2312 = vadd.xlane.f32.xlu0 %v2249
          %v2313 = vpop.xlane.xlu0 %2312
          %2314 = vadd.xlane.f32.xlu0 %v2251
          %v2315 = vpop.xlane.xlu0 %2314
          %2316 = vadd.xlane.f32.xlu0 %v2253
          %v2317 = vpop.xlane.xlu0 %2316
          %2318 = vadd.xlane.f32.xlu0 %v2255
          %v2319 = vpop.xlane.xlu0 %2318
          %2320 = vadd.xlane.f32.xlu0 %v2257
          %v2321 = vpop.xlane.xlu0 %2320
          %v2322 = vadd.f32 %v2274, %v2291
          %v2323 = vadd.f32 %v2275, %v2293
          %v2324 = vadd.f32 %v2276, %v2295
          %v2325 = vadd.f32 %v2277, %v2297
          %v2326 = vadd.f32 %v2278, %v2299
          %v2327 = vadd.f32 %v2279, %v2301
          %v2328 = vadd.f32 %v2280, %v2303
          %v2329 = vadd.f32 %v2281, %v2305
          %v2330 = vadd.f32 %v2282, %v2307
          %v2331 = vadd.f32 %v2283, %v2309
          %v2332 = vadd.f32 %v2284, %v2311
          %v2333 = vadd.f32 %v2285, %v2313
          %v2334 = vadd.f32 %v2286, %v2315
          %v2335 = vadd.f32 %v2287, %v2317
          %v2336 = vadd.f32 %v2288, %v2319
          %v2337 = vadd.f32 %v2289, %v2321
          %vm2338 = vcmask 7168
          %2339 = vst.msk [vmem:[#allocation6] sm:$0xff] %vm2338, %v2322
          %2340 = vst.msk [vmem:[#allocation6 + $0x8] sm:$0xff] %vm2338, %v2323
          %2341 = vst.msk [vmem:[#allocation6 + $0x10] sm:$0xff] %vm2338, %v2324
          %2342 = vst.msk [vmem:[#allocation6 + $0x18] sm:$0xff] %vm2338, %v2325
          %2343 = vst.msk [vmem:[#allocation6 + $0x20] sm:$0xff] %vm2338, %v2326
          %2344 = vst.msk [vmem:[#allocation6 + $0x28] sm:$0xff] %vm2338, %v2327
          %2345 = vst.msk [vmem:[#allocation6 + $0x30] sm:$0xff] %vm2338, %v2328
          %2346 = vst.msk [vmem:[#allocation6 + $0x38] sm:$0xff] %vm2338, %v2329
          %2347 = vst.msk [vmem:[#allocation6 + $0x40] sm:$0xff] %vm2338, %v2330
          %2348 = vst.msk [vmem:[#allocation6 + $0x48] sm:$0xff] %vm2338, %v2331
          %2349 = vst.msk [vmem:[#allocation6 + $0x50] sm:$0xff] %vm2338, %v2332
          %2350 = vst.msk [vmem:[#allocation6 + $0x58] sm:$0xff] %vm2338, %v2333
          %2351 = vst.msk [vmem:[#allocation6 + $0x60] sm:$0xff] %vm2338, %v2334
          %2352 = vst.msk [vmem:[#allocation6 + $0x68] sm:$0xff] %vm2338, %v2335
          %2353 = vst.msk [vmem:[#allocation6 + $0x70] sm:$0xff] %vm2338, %v2336
          %2354 = vst.msk [vmem:[#allocation6 + $0x78] sm:$0xff] %vm2338, %v2337
          %v2355 = vld [vmem:[#allocation7] sm:$0xff]
          %v2356 = vld [vmem:[#allocation7 + $0x8] sm:$0xff]
          %v2357 = vld [vmem:[#allocation7 + $0x10] sm:$0xff]
          %v2358 = vld [vmem:[#allocation7 + $0x18] sm:$0xff]
          %v2359 = vld [vmem:[#allocation7 + $0x20] sm:$0xff]
          %v2360 = vld [vmem:[#allocation7 + $0x28] sm:$0xff]
          %v2361 = vld [vmem:[#allocation7 + $0x30] sm:$0xff]
          %v2362 = vld [vmem:[#allocation7 + $0x38] sm:$0xff]
          %v2363 = vld [vmem:[#allocation7 + $0x40] sm:$0xff]
          %v2364 = vld [vmem:[#allocation7 + $0x48] sm:$0xff]
          %v2365 = vld [vmem:[#allocation7 + $0x50] sm:$0xff]
          %v2366 = vld [vmem:[#allocation7 + $0x58] sm:$0xff]
          %v2367 = vld [vmem:[#allocation7 + $0x60] sm:$0xff]
          %v2368 = vld [vmem:[#allocation7 + $0x68] sm:$0xff]
          %v2369 = vld [vmem:[#allocation7 + $0x70] sm:$0xff]
          %v2370 = vld [vmem:[#allocation7 + $0x78] sm:$0xff]
          %2372 = vset.pattern.permute.xlu0 0
          %2373 = vperm.xlu0 %2372, %v2099
          %v2374 = vpop.permute.xlu0 %2373
          %2377 = vset.pattern.permute.xlu0 0
          %2378 = vperm.xlu0 %2377, %v2101
          %v2379 = vpop.permute.xlu0 %2378
          %2382 = vset.pattern.permute.xlu0 0
          %2383 = vperm.xlu0 %2382, %v2103
          %v2384 = vpop.permute.xlu0 %2383
          %2387 = vset.pattern.permute.xlu0 0
          %2388 = vperm.xlu0 %2387, %v2105
          %v2389 = vpop.permute.xlu0 %2388
          %2392 = vset.pattern.permute.xlu0 0
          %2393 = vperm.xlu0 %2392, %v2107
          %v2394 = vpop.permute.xlu0 %2393
          %2397 = vset.pattern.permute.xlu0 0
          %2398 = vperm.xlu0 %2397, %v2109
          %v2399 = vpop.permute.xlu0 %2398
          %2402 = vset.pattern.permute.xlu0 0
          %2403 = vperm.xlu0 %2402, %v2111
          %v2404 = vpop.permute.xlu0 %2403
          %2407 = vset.pattern.permute.xlu0 0
          %2408 = vperm.xlu0 %2407, %v2113
          %v2409 = vpop.permute.xlu0 %2408
          %2412 = vset.pattern.permute.xlu0 0
          %2413 = vperm.xlu0 %2412, %v2115
          %v2414 = vpop.permute.xlu0 %2413
          %2417 = vset.pattern.permute.xlu0 0
          %2418 = vperm.xlu0 %2417, %v2117
          %v2419 = vpop.permute.xlu0 %2418
          %2422 = vset.pattern.permute.xlu0 0
          %2423 = vperm.xlu0 %2422, %v2119
          %v2424 = vpop.permute.xlu0 %2423
          %2427 = vset.pattern.permute.xlu0 0
          %2428 = vperm.xlu0 %2427, %v2121
          %v2429 = vpop.permute.xlu0 %2428
          %2432 = vset.pattern.permute.xlu0 0
          %2433 = vperm.xlu0 %2432, %v2123
          %v2434 = vpop.permute.xlu0 %2433
          %2437 = vset.pattern.permute.xlu0 0
          %2438 = vperm.xlu0 %2437, %v2125
          %v2439 = vpop.permute.xlu0 %2438
          %2442 = vset.pattern.permute.xlu0 0
          %2443 = vperm.xlu0 %2442, %v2127
          %v2444 = vpop.permute.xlu0 %2443
          %2447 = vset.pattern.permute.xlu0 0
          %2448 = vperm.xlu0 %2447, %v2129
          %v2449 = vpop.permute.xlu0 %2448
          %v2451 = vmul.f32 %v2374, %v2355
          %v2452 = vmul.f32 %v2379, %v2356
          %v2453 = vmul.f32 %v2384, %v2357
          %v2454 = vmul.f32 %v2389, %v2358
          %v2455 = vmul.f32 %v2394, %v2359
          %v2456 = vmul.f32 %v2399, %v2360
          %v2457 = vmul.f32 %v2404, %v2361
          %v2458 = vmul.f32 %v2409, %v2362
          %v2459 = vmul.f32 %v2414, %v2363
          %v2460 = vmul.f32 %v2419, %v2364
          %v2461 = vmul.f32 %v2424, %v2365
          %v2462 = vmul.f32 %v2429, %v2366
          %v2463 = vmul.f32 %v2434, %v2367
          %v2464 = vmul.f32 %v2439, %v2368
          %v2465 = vmul.f32 %v2444, %v2369
          %v2466 = vmul.f32 %v2449, %v2370
          %2467 = vmatprep.subr.mxu0 0.0
          %2468 = vmatpush1.msra.mxu0 %v1693
          %2469 = vmatprep.subr.mxu0 0.0
          %2470 = vmatpush1.msra.mxu0 %v1698
          %2471 = vmatprep.subr.mxu0 0.0
          %2472 = vmatpush1.msra.mxu0 %v1703
          %2473 = vmatprep.subr.mxu0 0.0
          %2474 = vmatpush1.msra.mxu0 %v1708
          %2475 = vmatprep.subr.mxu0 0.0
          %2476 = vmatpush1.msra.mxu0 %v1713
          %2477 = vmatprep.subr.mxu0 0.0
          %2478 = vmatpush1.msra.mxu0 %v1718
          %2479 = vmatprep.subr.mxu0 0.0
          %2480 = vmatpush1.msra.mxu0 %v1723
          %2481 = vmatprep.subr.mxu0 0.0
          %2482 = vmatpush1.msra.mxu0 %v1728
          %2483 = vmatprep.subr.mxu0 0.0
          %2484 = vmatpush1.msra.mxu0 %v1733
          %2485 = vmatprep.subr.mxu0 0.0
          %2486 = vmatpush1.msra.mxu0 %v1738
          %2487 = vmatprep.subr.mxu0 0.0
          %2488 = vmatpush1.msra.mxu0 %v1743
          %2489 = vmatprep.subr.mxu0 0.0
          %2490 = vmatpush1.msra.mxu0 %v1748
          %2491 = vmatprep.subr.mxu0 0.0
          %2492 = vmatpush1.msra.mxu0 %v1753
          %2493 = vmatprep.subr.mxu0 0.0
          %2494 = vmatpush1.msra.mxu0 %v1758
          %2495 = vmatprep.subr.mxu0 0.0
          %2496 = vmatpush1.msra.mxu0 %v1763
          %2497 = vmatprep.subr.mxu0 0.0
          %2498 = vmatpush1.msra.mxu0 %v1768
          %2499 = vmatprep.subr.mxu0 0.0
          %2500 = vmatpush1.msra.mxu0 0.0
          %2501 = vmatprep.subr.mxu0 0.0
          %2502 = vmatpush1.msra.mxu0 0.0
          %2503 = vmatprep.subr.mxu0 0.0
          %2504 = vmatpush1.msra.mxu0 0.0
          %2505 = vmatprep.subr.mxu0 0.0
          %2506 = vmatpush1.msra.mxu0 0.0
          %2507 = vmatprep.subr.mxu0 0.0
          %2508 = vmatpush1.msra.mxu0 0.0
          %2509 = vmatprep.subr.mxu0 0.0
          %2510 = vmatpush1.msra.mxu0 0.0
          %2511 = vmatprep.subr.mxu0 0.0
          %2512 = vmatpush1.msra.mxu0 0.0
          %2513 = vmatprep.subr.mxu0 0.0
          %2514 = vmatpush1.msra.mxu0 0.0
          %2515 = vmatprep.subr.mxu0 0.0
          %2516 = vmatpush1.msra.mxu0 0.0
          %2517 = vmatprep.subr.mxu0 0.0
          %2518 = vmatpush1.msra.mxu0 0.0
          %2519 = vmatprep.subr.mxu0 0.0
          %2520 = vmatpush1.msra.mxu0 0.0
          %2521 = vmatprep.subr.mxu0 0.0
          %2522 = vmatpush1.msra.mxu0 0.0
          %2523 = vmatprep.subr.mxu0 0.0
          %2524 = vmatpush1.msra.mxu0 0.0
          %2525 = vmatprep.subr.mxu0 0.0
          %2526 = vmatpush1.msra.mxu0 0.0
          %2527 = vmatprep.subr.mxu0 0.0
          %2528 = vmatpush1.msra.mxu0 0.0
          %2529 = vmatprep.subr.mxu0 0.0
          %2530 = vmatpush1.msra.mxu0 0.0
          %2531 = vmatprep.mubr.f32.mxu0 0.0
          %2532 = vmatmul.mubr.f32.gmra.mrb[0].mxu0 %v2227
          %v2533 = vpop.f32.mrb[0].mxu0
          %v2534 = vadd.f32 0.0, %v2533
          %v2535 = vpop.f32.mrb[0].mxu0
          %2536 = vmatprep.mubr.f32.mxu0 0.0
          %2537 = vmatmul.mubr.f32.gmra.mrb[0].mxu0 %v2229
          %v2538 = vpop.f32.mrb[0].mxu0
          %v2539 = vadd.f32 0.0, %v2538
          %v2540 = vpop.f32.mrb[0].mxu0
          %2541 = vmatprep.mubr.f32.mxu0 0.0
          %2542 = vmatmul.mubr.f32.gmra.mrb[0].mxu0 %v2231
          %v2543 = vpop.f32.mrb[0].mxu0
          %v2544 = vadd.f32 0.0, %v2543
          %v2545 = vpop.f32.mrb[0].mxu0
          %2546 = vmatprep.mubr.f32.mxu0 0.0
          %2547 = vmatmul.mubr.f32.gmra.mrb[0].mxu0 %v2233
          %v2548 = vpop.f32.mrb[0].mxu0
          %v2549 = vadd.f32 0.0, %v2548
          %v2550 = vpop.f32.mrb[0].mxu0
          %2551 = vmatprep.mubr.f32.mxu0 0.0
          %2552 = vmatmul.mubr.f32.gmra.mrb[0].mxu0 %v2235
          %v2553 = vpop.f32.mrb[0].mxu0
          %v2554 = vadd.f32 0.0, %v2553
          %v2555 = vpop.f32.mrb[0].mxu0
          %2556 = vmatprep.mubr.f32.mxu0 0.0
          %2557 = vmatmul.mubr.f32.gmra.mrb[0].mxu0 %v2237
          %v2558 = vpop.f32.mrb[0].mxu0
          %v2559 = vadd.f32 0.0, %v2558
          %v2560 = vpop.f32.mrb[0].mxu0
          %2561 = vmatprep.mubr.f32.mxu0 0.0
          %2562 = vmatmul.mubr.f32.gmra.mrb[0].mxu0 %v2239
          %v2563 = vpop.f32.mrb[0].mxu0
          %v2564 = vadd.f32 0.0, %v2563
          %v2565 = vpop.f32.mrb[0].mxu0
          %2566 = vmatprep.mubr.f32.mxu0 0.0
          %2567 = vmatmul.mubr.f32.gmra.mrb[0].mxu0 %v2241
          %v2568 = vpop.f32.mrb[0].mxu0
          %v2569 = vadd.f32 0.0, %v2568
          %v2570 = vpop.f32.mrb[0].mxu0
          %2571 = vmatprep.mubr.f32.mxu0 0.0
          %2572 = vmatmul.mubr.f32.gmra.mrb[0].mxu0 %v2243
          %v2573 = vpop.f32.mrb[0].mxu0
          %v2574 = vadd.f32 0.0, %v2573
          %v2575 = vpop.f32.mrb[0].mxu0
          %2576 = vmatprep.mubr.f32.mxu0 0.0
          %2577 = vmatmul.mubr.f32.gmra.mrb[0].mxu0 %v2245
          %v2578 = vpop.f32.mrb[0].mxu0
          %v2579 = vadd.f32 0.0, %v2578
          %v2580 = vpop.f32.mrb[0].mxu0
          %2581 = vmatprep.mubr.f32.mxu0 0.0
          %2582 = vmatmul.mubr.f32.gmra.mrb[0].mxu0 %v2247
          %v2583 = vpop.f32.mrb[0].mxu0
          %v2584 = vadd.f32 0.0, %v2583
          %v2585 = vpop.f32.mrb[0].mxu0
          %2586 = vmatprep.mubr.f32.mxu0 0.0
          %2587 = vmatmul.mubr.f32.gmra.mrb[0].mxu0 %v2249
          %v2588 = vpop.f32.mrb[0].mxu0
          %v2589 = vadd.f32 0.0, %v2588
          %v2590 = vpop.f32.mrb[0].mxu0
          %2591 = vmatprep.mubr.f32.mxu0 0.0
          %2592 = vmatmul.mubr.f32.gmra.mrb[0].mxu0 %v2251
          %v2593 = vpop.f32.mrb[0].mxu0
          %v2594 = vadd.f32 0.0, %v2593
          %v2595 = vpop.f32.mrb[0].mxu0
          %2596 = vmatprep.mubr.f32.mxu0 0.0
          %2597 = vmatmul.mubr.f32.gmra.mrb[0].mxu0 %v2253
          %v2598 = vpop.f32.mrb[0].mxu0
          %v2599 = vadd.f32 0.0, %v2598
          %v2600 = vpop.f32.mrb[0].mxu0
          %2601 = vmatprep.mubr.f32.mxu0 0.0
          %2602 = vmatmul.mubr.f32.gmra.mrb[0].mxu0 %v2255
          %v2603 = vpop.f32.mrb[0].mxu0
          %v2604 = vadd.f32 0.0, %v2603
          %v2605 = vpop.f32.mrb[0].mxu0
          %2606 = vmatprep.mubr.f32.mxu0 0.0
          %2607 = vmatmul.mubr.f32.gmra.mrb[0].mxu0 %v2257
          %v2608 = vpop.f32.mrb[0].mxu0
          %v2609 = vadd.f32 0.0, %v2608
          %v2610 = vpop.f32.mrb[0].mxu0
          %2611 = vdwg.mxu0
          %v2612 = vadd.f32 %v2451, %v2534
          %v2613 = vadd.f32 %v2452, %v2539
          %v2614 = vadd.f32 %v2453, %v2544
          %v2615 = vadd.f32 %v2454, %v2549
          %v2616 = vadd.f32 %v2455, %v2554
          %v2617 = vadd.f32 %v2456, %v2559
          %v2618 = vadd.f32 %v2457, %v2564
          %v2619 = vadd.f32 %v2458, %v2569
          %v2620 = vadd.f32 %v2459, %v2574
          %v2621 = vadd.f32 %v2460, %v2579
          %v2622 = vadd.f32 %v2461, %v2584
          %v2623 = vadd.f32 %v2462, %v2589
          %v2624 = vadd.f32 %v2463, %v2594
          %v2625 = vadd.f32 %v2464, %v2599
          %v2626 = vadd.f32 %v2465, %v2604
          %v2627 = vadd.f32 %v2466, %v2609
          %2628 = vst [vmem:[#allocation7] sm:$0xff] %v2612
          %2629 = vst [vmem:[#allocation7 + $0x8] sm:$0xff] %v2613
          %2630 = vst [vmem:[#allocation7 + $0x10] sm:$0xff] %v2614
          %2631 = vst [vmem:[#allocation7 + $0x18] sm:$0xff] %v2615
          %2632 = vst [vmem:[#allocation7 + $0x20] sm:$0xff] %v2616
          %2633 = vst [vmem:[#allocation7 + $0x28] sm:$0xff] %v2617
          %2634 = vst [vmem:[#allocation7 + $0x30] sm:$0xff] %v2618
          %2635 = vst [vmem:[#allocation7 + $0x38] sm:$0xff] %v2619
          %2636 = vst [vmem:[#allocation7 + $0x40] sm:$0xff] %v2620
          %2637 = vst [vmem:[#allocation7 + $0x48] sm:$0xff] %v2621
          %2638 = vst [vmem:[#allocation7 + $0x50] sm:$0xff] %v2622
          %2639 = vst [vmem:[#allocation7 + $0x58] sm:$0xff] %v2623
          %2640 = vst [vmem:[#allocation7 + $0x60] sm:$0xff] %v2624
          %2641 = vst [vmem:[#allocation7 + $0x68] sm:$0xff] %v2625
          %2642 = vst [vmem:[#allocation7 + $0x70] sm:$0xff] %v2626
          %2643 = vst [vmem:[#allocation7 + $0x78] sm:$0xff] %v2627
          %2644 = vst.msk [vmem:[#allocation5] sm:$0xff] %vm2338, %v2066
          %2645 = vst.msk [vmem:[#allocation5 + $0x8] sm:$0xff] %vm2338, %v2067
          %2646 = vst.msk [vmem:[#allocation5 + $0x10] sm:$0xff] %vm2338, %v2068
          %2647 = vst.msk [vmem:[#allocation5 + $0x18] sm:$0xff] %vm2338, %v2069
          %2648 = vst.msk [vmem:[#allocation5 + $0x20] sm:$0xff] %vm2338, %v2070
          %2649 = vst.msk [vmem:[#allocation5 + $0x28] sm:$0xff] %vm2338, %v2071
          %2650 = vst.msk [vmem:[#allocation5 + $0x30] sm:$0xff] %vm2338, %v2072
          %2651 = vst.msk [vmem:[#allocation5 + $0x38] sm:$0xff] %vm2338, %v2073
          %2652 = vst.msk [vmem:[#allocation5 + $0x40] sm:$0xff] %vm2338, %v2074
          %2653 = vst.msk [vmem:[#allocation5 + $0x48] sm:$0xff] %vm2338, %v2075
          %2654 = vst.msk [vmem:[#allocation5 + $0x50] sm:$0xff] %vm2338, %v2076
          %2655 = vst.msk [vmem:[#allocation5 + $0x58] sm:$0xff] %vm2338, %v2077
          %2656 = vst.msk [vmem:[#allocation5 + $0x60] sm:$0xff] %vm2338, %v2078
          %2657 = vst.msk [vmem:[#allocation5 + $0x68] sm:$0xff] %vm2338, %v2079
          %2658 = vst.msk [vmem:[#allocation5 + $0x70] sm:$0xff] %vm2338, %v2080
          %2659 = vst.msk [vmem:[#allocation5 + $0x78] sm:$0xff] %vm2338, %v2081
          %v2660 = vld [vmem:[#allocation7] sm:$0xff]
          %v2661 = vld [vmem:[#allocation7 + $0x8] sm:$0xff]
          %v2662 = vld [vmem:[#allocation7 + $0x10] sm:$0xff]
          %v2663 = vld [vmem:[#allocation7 + $0x18] sm:$0xff]
          %v2664 = vld [vmem:[#allocation7 + $0x20] sm:$0xff]
          %v2665 = vld [vmem:[#allocation7 + $0x28] sm:$0xff]
          %v2666 = vld [vmem:[#allocation7 + $0x30] sm:$0xff]
          %v2667 = vld [vmem:[#allocation7 + $0x38] sm:$0xff]
          %v2668 = vld [vmem:[#allocation7 + $0x40] sm:$0xff]
          %v2669 = vld [vmem:[#allocation7 + $0x48] sm:$0xff]
          %v2670 = vld [vmem:[#allocation7 + $0x50] sm:$0xff]
          %v2671 = vld [vmem:[#allocation7 + $0x58] sm:$0xff]
          %v2672 = vld [vmem:[#allocation7 + $0x60] sm:$0xff]
          %v2673 = vld [vmem:[#allocation7 + $0x68] sm:$0xff]
          %v2674 = vld [vmem:[#allocation7 + $0x70] sm:$0xff]
          %v2675 = vld [vmem:[#allocation7 + $0x78] sm:$0xff]
          %v2676 = vld [vmem:[#allocation6] sm:$0xff]
          %v2677 = vld [vmem:[#allocation6 + $0x8] sm:$0xff]
          %v2678 = vld [vmem:[#allocation6 + $0x10] sm:$0xff]
          %v2679 = vld [vmem:[#allocation6 + $0x18] sm:$0xff]
          %v2680 = vld [vmem:[#allocation6 + $0x20] sm:$0xff]
          %v2681 = vld [vmem:[#allocation6 + $0x28] sm:$0xff]
          %v2682 = vld [vmem:[#allocation6 + $0x30] sm:$0xff]
          %v2683 = vld [vmem:[#allocation6 + $0x38] sm:$0xff]
          %v2684 = vld [vmem:[#allocation6 + $0x40] sm:$0xff]
          %v2685 = vld [vmem:[#allocation6 + $0x48] sm:$0xff]
          %v2686 = vld [vmem:[#allocation6 + $0x50] sm:$0xff]
          %v2687 = vld [vmem:[#allocation6 + $0x58] sm:$0xff]
          %v2688 = vld [vmem:[#allocation6 + $0x60] sm:$0xff]
          %v2689 = vld [vmem:[#allocation6 + $0x68] sm:$0xff]
          %v2690 = vld [vmem:[#allocation6 + $0x70] sm:$0xff]
          %v2691 = vld [vmem:[#allocation6 + $0x78] sm:$0xff]
          %2693 = vset.pattern.permute.xlu0 0
          %2694 = vperm.xlu0 %2693, %v2676
          %v2695 = vpop.permute.xlu0 %2694
          %2698 = vset.pattern.permute.xlu0 0
          %2699 = vperm.xlu0 %2698, %v2677
          %v2700 = vpop.permute.xlu0 %2699
          %2703 = vset.pattern.permute.xlu0 0
          %2704 = vperm.xlu0 %2703, %v2678
          %v2705 = vpop.permute.xlu0 %2704
          %2708 = vset.pattern.permute.xlu0 0
          %2709 = vperm.xlu0 %2708, %v2679
          %v2710 = vpop.permute.xlu0 %2709
          %2713 = vset.pattern.permute.xlu0 0
          %2714 = vperm.xlu0 %2713, %v2680
          %v2715 = vpop.permute.xlu0 %2714
          %2718 = vset.pattern.permute.xlu0 0
          %2719 = vperm.xlu0 %2718, %v2681
          %v2720 = vpop.permute.xlu0 %2719
          %2723 = vset.pattern.permute.xlu0 0
          %2724 = vperm.xlu0 %2723, %v2682
          %v2725 = vpop.permute.xlu0 %2724
          %2728 = vset.pattern.permute.xlu0 0
          %2729 = vperm.xlu0 %2728, %v2683
          %v2730 = vpop.permute.xlu0 %2729
          %2733 = vset.pattern.permute.xlu0 0
          %2734 = vperm.xlu0 %2733, %v2684
          %v2735 = vpop.permute.xlu0 %2734
          %2738 = vset.pattern.permute.xlu0 0
          %2739 = vperm.xlu0 %2738, %v2685
          %v2740 = vpop.permute.xlu0 %2739
          %2743 = vset.pattern.permute.xlu0 0
          %2744 = vperm.xlu0 %2743, %v2686
          %v2745 = vpop.permute.xlu0 %2744
          %2748 = vset.pattern.permute.xlu0 0
          %2749 = vperm.xlu0 %2748, %v2687
          %v2750 = vpop.permute.xlu0 %2749
          %2753 = vset.pattern.permute.xlu0 0
          %2754 = vperm.xlu0 %2753, %v2688
          %v2755 = vpop.permute.xlu0 %2754
          %2758 = vset.pattern.permute.xlu0 0
          %2759 = vperm.xlu0 %2758, %v2689
          %v2760 = vpop.permute.xlu0 %2759
          %2763 = vset.pattern.permute.xlu0 0
          %2764 = vperm.xlu0 %2763, %v2690
          %v2765 = vpop.permute.xlu0 %2764
          %2768 = vset.pattern.permute.xlu0 0
          %2769 = vperm.xlu0 %2768, %v2691
          %v2770 = vpop.permute.xlu0 %2769
          %v2772 = vrcp.pop %v2695
          %v2773 = vmul.f32 %v2660, %v2772
          %v2774 = vrcp.pop %v2700
          %v2775 = vmul.f32 %v2661, %v2774
          %v2776 = vrcp.pop %v2705
          %v2777 = vmul.f32 %v2662, %v2776
          %v2778 = vrcp.pop %v2710
          %v2779 = vmul.f32 %v2663, %v2778
          %v2780 = vrcp.pop %v2715
          %v2781 = vmul.f32 %v2664, %v2780
          %v2782 = vrcp.pop %v2720
          %v2783 = vmul.f32 %v2665, %v2782
          %v2784 = vrcp.pop %v2725
          %v2785 = vmul.f32 %v2666, %v2784
          %v2786 = vrcp.pop %v2730
          %v2787 = vmul.f32 %v2667, %v2786
          %v2788 = vrcp.pop %v2735
          %v2789 = vmul.f32 %v2668, %v2788
          %v2790 = vrcp.pop %v2740
          %v2791 = vmul.f32 %v2669, %v2790
          %v2792 = vrcp.pop %v2745
          %v2793 = vmul.f32 %v2670, %v2792
          %v2794 = vrcp.pop %v2750
          %v2795 = vmul.f32 %v2671, %v2794
          %v2796 = vrcp.pop %v2755
          %v2797 = vmul.f32 %v2672, %v2796
          %v2798 = vrcp.pop %v2760
          %v2799 = vmul.f32 %v2673, %v2798
          %v2800 = vrcp.pop %v2765
          %v2801 = vmul.f32 %v2674, %v2800
          %v2802 = vrcp.pop %v2770
          %v2803 = vmul.f32 %v2675, %v2802
          %2804 = vst [vmem:[%s234] sm:$0xff] %v2773
          %2805 = vst [vmem:[%s234 + $0x8] sm:$0xff] %v2775
          %2806 = vst [vmem:[%s234 + $0x10] sm:$0xff] %v2777
          %2807 = vst [vmem:[%s234 + $0x18] sm:$0xff] %v2779
          %2808 = vst [vmem:[%s234 + $0x20] sm:$0xff] %v2781
          %2809 = vst [vmem:[%s234 + $0x28] sm:$0xff] %v2783
          %2810 = vst [vmem:[%s234 + $0x30] sm:$0xff] %v2785
          %2811 = vst [vmem:[%s234 + $0x38] sm:$0xff] %v2787
          %2812 = vst [vmem:[%s234 + $0x40] sm:$0xff] %v2789
          %2813 = vst [vmem:[%s234 + $0x48] sm:$0xff] %v2791
          %2814 = vst [vmem:[%s234 + $0x50] sm:$0xff] %v2793
          %2815 = vst [vmem:[%s234 + $0x58] sm:$0xff] %v2795
          %2816 = vst [vmem:[%s234 + $0x60] sm:$0xff] %v2797
          %2817 = vst [vmem:[%s234 + $0x68] sm:$0xff] %v2799
          %2818 = vst [vmem:[%s234 + $0x70] sm:$0xff] %v2801
          %2819 = vst [vmem:[%s234 + $0x78] sm:$0xff] %v2803
        $region48: #{tpu_custom_call.1} parent=35 // pred_fallthru
          _
        %s2820 = sand.u32 %s147, 1
        %s2821 = scalar_lea.sflag [#allocation12], %s2820
        %s2822 = sand.u32 %s147, 1
        %s2823 = smul.addr %s2822, 128
        %s2824 = scalar_lea.vmem [#allocation11], %s2823
        // Predicated region
        $region49: #{tpu_custom_call.1} parent=35 // pred_check
          %p2825 = pneg %p157
        $region50: #{tpu_custom_call.1} parent=35 // pred_check_branch
          %2827 = sbr.rel (%p2825) target = $region52
        $region51: #{tpu_custom_call.1} parent=35 // pred_region
          %s2828 = sld [smem:[#allocation9 + %s35]]
          %s2829 = smul.u32 16, %s2828
          %s2831 = ssub.s32 2048, 2048
          %2832 = vsyncadd %s2821, %s2831
          %s2833 = smul.addr %s34, 32
          %s2834 = sadd.s32 %s2829, %s2833
          %s2835 = smul.addr %s2834, 128
          %s2836 = scalar_lea.hbm %s6, %s2835
          %s2837 = sshll.u32 %s2824, 4
          %s2838 = int_to_ptr.vmem [resolvable:$true] %s2837
          %2843 = dma.vmem_to_hbm [thread:$0]  %s2838, 2048, %s2836, %s2821, 128, 128, 8
        $region52: #{tpu_custom_call.1} parent=35 // pred_fallthru
          _
      $region36: #{tpu_custom_call.1} parent=5 // pred_fallthru
        _
      %p2844 = scmp.le.s32.totalorder 2, %s25
      // Predicated region
      $region53: #{tpu_custom_call.1} parent=5 // pred_check
        %p2845 = pneg %p2844
      $region54: #{tpu_custom_call.1} parent=5 // pred_check_branch
        %2847 = sbr.rel (%p2845) target = $region56
      $region55: #{tpu_custom_call.1} parent=5 // pred_region
        %s2848 = ssub.s32 %s25, 2
        // Predicated region
        $region57: #{tpu_custom_call.1} parent=55 // pred_check
          %p2849 = pneg %p163
        $region58: #{tpu_custom_call.1} parent=55 // pred_check_branch
          %2851 = sbr.rel (%p2849) target = $region60
        $region59: #{tpu_custom_call.1} parent=55 // pred_region
          %s2852 = sand.u32 %s148, 1
          %s2853 = scalar_lea.sflag [#allocation12], %s2852
          %s2854 = sand.u32 %s148, 1
          %s2855 = smul.addr %s2854, 128
          %s2856 = scalar_lea.vmem [#allocation11], %s2855
          %2857 = dma.done %s2853, 2048
        $region60: #{tpu_custom_call.1} parent=55 // pred_fallthru
          _
      $region56: #{tpu_custom_call.1} parent=5 // pred_fallthru
        _
    $region6: #{tpu_custom_call.1} parent=1 // loop_footer
      %s29 = sadd.s32 1, %s25
    $region7: #{tpu_custom_call.1} parent=1 // loop_footer_branch
      %24 = sbr.rel target = $region3
    $region8: #{tpu_custom_call.1} parent=1 // loop_exit
      _
    %2858 = vsyncpa [#allocation12], 1
    %s2859 = scalar_lea.sflag [#allocation12], 1
    %2860 = vsyncpa %s2859, 1

</llo_original>
